<compile_context>
chip_gen: v6e
topology: v6e:2x2x1
jax: 0.10.0
libtpu: 0.0.40
codegen_flags: <defaults>
</compile_context>

<pallas_src>
import functools

import jax
import jax.numpy as jnp
from jax import lax
from jax.experimental import pallas as pl
from jax.experimental.pallas import tpu as pltpu

NEG_SLOPE = 0.01  # F.leaky_relu default


def _leaky_relu(x):
    return jnp.where(x > 0, x, NEG_SLOPE * x)


def _round_up(x, m):
    return ((x + m - 1) // m) * m


def _act_dtype_for_device():
    """bf16 element-wise math on bf16-capable VPUs (v6e/v7x), f32 otherwise."""
    try:
        kind = jax.devices()[0].device_kind.lower()
    except Exception:
        kind = ""
    if any(tag in kind for tag in ("v6", "v7", "7x")):
        return jnp.bfloat16
    return jnp.float32


def generator_kernel(
    x_ref,
    w1, b1, w2, b2, w3, b3, w4, b4, w5, b5, w6, b6, w7, b7,
    o_ref,
    *, chunks, act_dtype,
):
    hidden_w = (w1, w2, w3, w4, w5, w6)
    hidden_b = (b1, b2, b3, b4, b5, b6)
    bf16_act = act_dtype == jnp.bfloat16

    # ---- hoisted loop invariants (computed once per grid step) --------------
    b_vals = [b[...].astype(act_dtype) for b in hidden_b]   # (1, out) rows
    b7v = b7[...]                                            # (1, 4) f32
    out_dim = o_ref.shape[-1]
    col0 = lax.broadcasted_iota(jnp.int32, (1, out_dim), 1) == 0

    # ---- static chunk loop: offsets/sizes are Python constants --------------
    for (r0, rows) in chunks:
        h = x_ref[r0:r0 + rows, :].astype(jnp.bfloat16)
        for w_ref, bv in zip(hidden_w, b_vals):
            y = jnp.dot(h, w_ref[...], preferred_element_type=jnp.float32)
            if bf16_act:
                # v6e/v7x: bias add + leaky_relu in bf16 (half the vregs/VALU).
                h = _leaky_relu(y.astype(jnp.bfloat16) + bv)
            else:
                # v5e and older: keep element-wise math in f32, downcast after.
                h = _leaky_relu(y + bv).astype(jnp.bfloat16)
        l7 = jnp.dot(h, w7[...], preferred_element_type=jnp.float32) + b7v
        # l7[:, 0] = sigmoid(l7[:, 0]); remaining columns pass through.
        out = jnp.where(col0, jax.nn.sigmoid(l7), l7)
        o_ref[r0:r0 + rows, :] = out.astype(o_ref.dtype)


def _choose_tiling(n, tm_target, row_align=8):
    """Pick (tm, grid, n_pad): tm ~ tm_target rows, an even grid >= 2 when N
    allows (v7x megacore), padding only to a multiple of `row_align` rows."""
    n_al = _round_up(n, row_align)
    g = max(2, 2 * pl.cdiv(pl.cdiv(n_al, tm_target), 2))   # even, >= 2
    tm = _round_up(pl.cdiv(n_al, g), row_align)
    g = pl.cdiv(n_al, tm)                                   # may shrink to 1
    return int(tm), int(g), int(g) * int(tm)


def generator_sand_rand(points, params, *, tm_target=2048, sub_tm=256):
    """points: (N, z_dim + point_dim) float32.  Returns (N, 4) float32."""
    N, Din = points.shape
    out_dim = params[-1][0].shape[1]   # 4

    tm, grid, n_pad = _choose_tiling(N, tm_target)
    if n_pad != N:
        points = jnp.pad(points, ((0, n_pad - N), (0, 0)))

    # Static per-block chunk plan (last chunk may be smaller than sub_tm).
    chunks = []
    r = 0
    while r < tm:
        rows = min(sub_tm, tm - r)
        chunks.append((r, rows))
        r += rows

    # Flatten params into an interleaved (w, b) arg list; weights as bf16.
    flat_args = []
    weight_specs = []
    for (w, b) in params:
        flat_args += [w.astype(jnp.bfloat16), b.astype(jnp.float32)]
        weight_specs += [
            pl.BlockSpec(w.shape, lambda i: (0, 0)),   # resident across grid
            pl.BlockSpec(b.shape, lambda i: (0, 0)),
        ]

    flops_per_row = sum(2 * w.shape[0] * w.shape[1] for (w, _) in params)
    param_bytes = sum(w.shape[0] * w.shape[1] * 2 + b.shape[1] * 4
                      for (w, b) in params)
    cost = pl.CostEstimate(
        flops=flops_per_row * n_pad,
        transcendentals=out_dim * n_pad,           # sigmoid on the last layer
        bytes_accessed=n_pad * (Din + out_dim) * 4 + param_bytes,
    )

    kernel = functools.partial(
        generator_kernel,
        chunks=tuple(chunks),
        act_dtype=_act_dtype_for_device(),
    )

    out = pl.pallas_call(
        kernel,
        out_shape=jax.ShapeDtypeStruct((n_pad, out_dim), jnp.float32),
        grid_spec=pltpu.PrefetchScalarGridSpec(
            num_scalar_prefetch=0,
            grid=(grid,),
            in_specs=[pl.BlockSpec((tm, Din), lambda i: (i, 0))] + weight_specs,
            out_specs=pl.BlockSpec((tm, out_dim), lambda i: (i, 0)),
        ),
        compiler_params=pltpu.CompilerParams(
            dimension_semantics=("parallel",)
        ),
        cost_estimate=cost,
    )(points, *flat_args)

    return out[:N] if n_pad != N else out


def init_params(key, z_dim, point_dim, gf_dim):
    """Deterministic init mimicking nn.Linear's default U(-1/sqrt(in), 1/sqrt(in)).

    Weights are returned already transposed to (in_features, out_features).
    Biases are (1, out_features).
    """
    dims = [
        (z_dim + point_dim, gf_dim * 8),
        (gf_dim * 8, gf_dim * 8),
        (gf_dim * 8, gf_dim * 8),
        (gf_dim * 8, gf_dim * 4),
        (gf_dim * 4, gf_dim * 2),
        (gf_dim * 2, gf_dim * 1),
        (gf_dim * 1, 4),
    ]
    params = []
    for (fan_in, fan_out) in dims:
        key, kw, kb = jax.random.split(key, 3)
        bound = 1.0 / (fan_in ** 0.5)
        w = jax.random.uniform(
            kw, (fan_in, fan_out), jnp.float32, minval=-bound, maxval=bound
        )
        b = jax.random.uniform(
            kb, (1, fan_out), jnp.float32, minval=-bound, maxval=bound
        )
        params.append((w, b))
    return params


def reference_forward_f32(points, params):
    """Pure-JAX f32 reference of the PyTorch forward."""
    h = points
    for i, (w, b) in enumerate(params):
        h = h @ w + b
        if i < len(params) - 1:
            h = _leaky_relu(h)
    first = jax.nn.sigmoid(h[:, :1])
    return jnp.concatenate([first, h[:, 1:]], axis=1)


def reference_forward_matched(points, params, act_dtype):
    """Pure-JAX reference mirroring the kernel's exact cast/accumulate scheme."""
    bf16_act = act_dtype == jnp.bfloat16
    h = points.astype(jnp.bfloat16)
    for (w, b) in params[:-1]:
        y = jnp.dot(h, w.astype(jnp.bfloat16),
                    preferred_element_type=jnp.float32)
        if bf16_act:
            h = _leaky_relu(y.astype(jnp.bfloat16) + b.astype(jnp.bfloat16))
        else:
            h = _leaky_relu(y + b).astype(jnp.bfloat16)
    w7, b7 = params[-1]
    y = jnp.dot(h, w7.astype(jnp.bfloat16),
                preferred_element_type=jnp.float32) + b7
    first = jax.nn.sigmoid(y[:, :1])
    return jnp.concatenate([first, y[:, 1:]], axis=1)


if __name__ == "__main__":
    # z_dim=29, point_dim=3 -> Din=32; gf_dim=16 -> layers 32/128/128/128/64/32/16/4.
    # N=1000 exercises the padding path (-> 1008 rows), a 2-step grid (both v7x
    # TensorCores get a block), and a ragged last chunk (256 + 248 rows).
    z_dim, point_dim, gf_dim = 29, 3, 16
    N = 1000

    key = jax.random.PRNGKey(0)
    key, kx = jax.random.split(key)
    points = jax.random.normal(kx, (N, z_dim + point_dim), jnp.float32)

    params = init_params(jax.random.PRNGKey(0), z_dim, point_dim, gf_dim)

    out = generator_sand_rand(points, params)
    out = jax.block_until_ready(out)

    assert out.shape == (N, 4)

    # Tight check vs. a reference using the same bf16/f32 cast scheme as the kernel.
    ref_m = reference_forward_matched(points, params, _act_dtype_for_device())
    assert jnp.allclose(out, ref_m, atol=5e-3, rtol=5e-3), \
        "mismatch vs precision-matched reference"

    # Loose check vs. the exact f32 semantics of the PyTorch module.
    ref_f32 = reference_forward_f32(points, params)
    assert jnp.allclose(out, ref_f32, atol=1e-1, rtol=1e-1), \
        "mismatch vs f32 reference"

    print("KERNEL_OK")
</pallas_src>

<mosaic_0001>
module attributes {stable_mosaic.version = 11 : i64} {
  func.func @generator_kernel(%arg0: i32, %arg1: memref<504x32xf32, #tpu.memory_space<vmem>>, %arg2: memref<32x128xbf16, #tpu.memory_space<vmem>>, %arg3: memref<1x128xf32, #tpu.memory_space<vmem>>, %arg4: memref<128x128xbf16, #tpu.memory_space<vmem>>, %arg5: memref<1x128xf32, #tpu.memory_space<vmem>>, %arg6: memref<128x128xbf16, #tpu.memory_space<vmem>>, %arg7: memref<1x128xf32, #tpu.memory_space<vmem>>, %arg8: memref<128x64xbf16, #tpu.memory_space<vmem>>, %arg9: memref<1x64xf32, #tpu.memory_space<vmem>>, %arg10: memref<64x32xbf16, #tpu.memory_space<vmem>>, %arg11: memref<1x32xf32, #tpu.memory_space<vmem>>, %arg12: memref<32x16xbf16, #tpu.memory_space<vmem>>, %arg13: memref<1x16xf32, #tpu.memory_space<vmem>>, %arg14: memref<16x4xbf16, #tpu.memory_space<vmem>>, %arg15: memref<1x4xf32, #tpu.memory_space<vmem>>, %arg16: memref<504x4xf32, #tpu.memory_space<vmem>>) attributes {dimension_semantics = [#tpu.dimension_semantics<parallel>], iteration_bounds = array<i64: 2>, scalar_prefetch = 0 : i64, scratch_operands = 0 : i64, tpu.core_type = #tpu.core_type<tc>, window_params = [{transform_indices = @transform_0, window_bounds = array<i64: 504, 32>}, {pipeline_mode = #tpu.pipeline_mode<synchronous>, transform_indices = @transform_1, window_bounds = array<i64: 32, 128>}, {pipeline_mode = #tpu.pipeline_mode<synchronous>, transform_indices = @transform_2, window_bounds = array<i64: 1, 128>}, {pipeline_mode = #tpu.pipeline_mode<synchronous>, transform_indices = @transform_3, window_bounds = array<i64: 128, 128>}, {pipeline_mode = #tpu.pipeline_mode<synchronous>, transform_indices = @transform_4, window_bounds = array<i64: 1, 128>}, {pipeline_mode = #tpu.pipeline_mode<synchronous>, transform_indices = @transform_5, window_bounds = array<i64: 128, 128>}, {pipeline_mode = #tpu.pipeline_mode<synchronous>, transform_indices = @transform_6, window_bounds = array<i64: 1, 128>}, {pipeline_mode = #tpu.pipeline_mode<synchronous>, transform_indices = @transform_7, window_bounds = array<i64: 128, 64>}, {pipeline_mode = #tpu.pipeline_mode<synchronous>, transform_indices = @transform_8, window_bounds = array<i64: 1, 64>}, {pipeline_mode = #tpu.pipeline_mode<synchronous>, transform_indices = @transform_9, window_bounds = array<i64: 64, 32>}, {pipeline_mode = #tpu.pipeline_mode<synchronous>, transform_indices = @transform_10, window_bounds = array<i64: 1, 32>}, {pipeline_mode = #tpu.pipeline_mode<synchronous>, transform_indices = @transform_11, window_bounds = array<i64: 32, 16>}, {pipeline_mode = #tpu.pipeline_mode<synchronous>, transform_indices = @transform_12, window_bounds = array<i64: 1, 16>}, {pipeline_mode = #tpu.pipeline_mode<synchronous>, transform_indices = @transform_13, window_bounds = array<i64: 16, 4>}, {pipeline_mode = #tpu.pipeline_mode<synchronous>, transform_indices = @transform_14, window_bounds = array<i64: 1, 4>}, {transform_indices = @transform_15, window_bounds = array<i64: 504, 4>}]} {
    %c0 = arith.constant 0 : index
    %c0_0 = arith.constant 0 : index
    %0 = vector.load %arg3[%c0, %c0_0] : memref<1x128xf32, #tpu.memory_space<vmem>>, vector<1x128xf32>
    %c0_1 = arith.constant 0 : index
    %c0_2 = arith.constant 0 : index
    %1 = vector.load %arg5[%c0_1, %c0_2] : memref<1x128xf32, #tpu.memory_space<vmem>>, vector<1x128xf32>
    %c0_3 = arith.constant 0 : index
    %c0_4 = arith.constant 0 : index
    %2 = vector.load %arg7[%c0_3, %c0_4] : memref<1x128xf32, #tpu.memory_space<vmem>>, vector<1x128xf32>
    %c0_5 = arith.constant 0 : index
    %c0_6 = arith.constant 0 : index
    %3 = vector.load %arg9[%c0_5, %c0_6] : memref<1x64xf32, #tpu.memory_space<vmem>>, vector<1x64xf32>
    %c0_7 = arith.constant 0 : index
    %c0_8 = arith.constant 0 : index
    %4 = vector.load %arg11[%c0_7, %c0_8] : memref<1x32xf32, #tpu.memory_space<vmem>>, vector<1x32xf32>
    %c0_9 = arith.constant 0 : index
    %c0_10 = arith.constant 0 : index
    %5 = vector.load %arg13[%c0_9, %c0_10] : memref<1x16xf32, #tpu.memory_space<vmem>>, vector<1x16xf32>
    %c0_11 = arith.constant 0 : index
    %c0_12 = arith.constant 0 : index
    %6 = vector.load %arg15[%c0_11, %c0_12] : memref<1x4xf32, #tpu.memory_space<vmem>>, vector<1x4xf32>
    %7 = tpu.iota {dimensions = array<i32: 1>} : vector<1x4xi32>
    %c0_i32 = arith.constant 0 : i32
    %8 = vector.broadcast %c0_i32 : i32 to vector<1x4xi32>
    %9 = arith.cmpi eq, %7, %8 : vector<1x4xi32>
    %c0_13 = arith.constant 0 : index
    %c0_14 = arith.constant 0 : index
    %10 = vector.load %arg1[%c0_13, %c0_14] : memref<504x32xf32, #tpu.memory_space<vmem>>, vector<256x32xf32>
    %11 = arith.truncf %10 : vector<256x32xf32> to vector<256x32xbf16>
    %c0_15 = arith.constant 0 : index
    %c0_16 = arith.constant 0 : index
    %12 = vector.load %arg2[%c0_15, %c0_16] : memref<32x128xbf16, #tpu.memory_space<vmem>>, vector<32x128xbf16>
    %cst = arith.constant dense<0.000000e+00> : vector<256x128xf32>
    %13 = tpu.matmul %11, %12, %cst {dimension_numbers = #tpu.dot_dimension_numbers<[1], [0], [0], [1], [0, 0, 1, 1], [], []>} : vector<256x32xbf16>, vector<32x128xbf16>, vector<256x128xf32> -> vector<256x128xf32>
    %14 = vector.broadcast %0 : vector<1x128xf32> to vector<256x128xf32>
    %15 = arith.addf %13, %14 : vector<256x128xf32>
    %cst_17 = arith.constant 0.000000e+00 : f32
    %16 = vector.broadcast %cst_17 : f32 to vector<256x128xf32>
    %17 = arith.cmpf ogt, %15, %16 : vector<256x128xf32>
    %cst_18 = arith.constant 0.00999999977 : f32
    %18 = vector.broadcast %cst_18 : f32 to vector<256x128xf32>
    %19 = arith.mulf %18, %15 : vector<256x128xf32>
    %20 = arith.select %17, %15, %19 : vector<256x128xi1>, vector<256x128xf32>
    %21 = arith.truncf %20 : vector<256x128xf32> to vector<256x128xbf16>
    %c0_19 = arith.constant 0 : index
    %c0_20 = arith.constant 0 : index
    %22 = vector.load %arg4[%c0_19, %c0_20] : memref<128x128xbf16, #tpu.memory_space<vmem>>, vector<128x128xbf16>
    %cst_21 = arith.constant dense<0.000000e+00> : vector<256x128xf32>
    %23 = tpu.matmul %21, %22, %cst_21 {dimension_numbers = #tpu.dot_dimension_numbers<[1], [0], [0], [1], [0, 0, 1, 1], [], []>} : vector<256x128xbf16>, vector<128x128xbf16>, vector<256x128xf32> -> vector<256x128xf32>
    %24 = vector.broadcast %1 : vector<1x128xf32> to vector<256x128xf32>
    %25 = arith.addf %23, %24 : vector<256x128xf32>
    %cst_22 = arith.constant 0.000000e+00 : f32
    %26 = vector.broadcast %cst_22 : f32 to vector<256x128xf32>
    %27 = arith.cmpf ogt, %25, %26 : vector<256x128xf32>
    %cst_23 = arith.constant 0.00999999977 : f32
    %28 = vector.broadcast %cst_23 : f32 to vector<256x128xf32>
    %29 = arith.mulf %28, %25 : vector<256x128xf32>
    %30 = arith.select %27, %25, %29 : vector<256x128xi1>, vector<256x128xf32>
    %31 = arith.truncf %30 : vector<256x128xf32> to vector<256x128xbf16>
    %c0_24 = arith.constant 0 : index
    %c0_25 = arith.constant 0 : index
    %32 = vector.load %arg6[%c0_24, %c0_25] : memref<128x128xbf16, #tpu.memory_space<vmem>>, vector<128x128xbf16>
    %cst_26 = arith.constant dense<0.000000e+00> : vector<256x128xf32>
    %33 = tpu.matmul %31, %32, %cst_26 {dimension_numbers = #tpu.dot_dimension_numbers<[1], [0], [0], [1], [0, 0, 1, 1], [], []>} : vector<256x128xbf16>, vector<128x128xbf16>, vector<256x128xf32> -> vector<256x128xf32>
    %34 = vector.broadcast %2 : vector<1x128xf32> to vector<256x128xf32>
    %35 = arith.addf %33, %34 : vector<256x128xf32>
    %cst_27 = arith.constant 0.000000e+00 : f32
    %36 = vector.broadcast %cst_27 : f32 to vector<256x128xf32>
    %37 = arith.cmpf ogt, %35, %36 : vector<256x128xf32>
    %cst_28 = arith.constant 0.00999999977 : f32
    %38 = vector.broadcast %cst_28 : f32 to vector<256x128xf32>
    %39 = arith.mulf %38, %35 : vector<256x128xf32>
    %40 = arith.select %37, %35, %39 : vector<256x128xi1>, vector<256x128xf32>
    %41 = arith.truncf %40 : vector<256x128xf32> to vector<256x128xbf16>
    %c0_29 = arith.constant 0 : index
    %c0_30 = arith.constant 0 : index
    %42 = vector.load %arg8[%c0_29, %c0_30] : memref<128x64xbf16, #tpu.memory_space<vmem>>, vector<128x64xbf16>
    %cst_31 = arith.constant dense<0.000000e+00> : vector<256x64xf32>
    %43 = tpu.matmul %41, %42, %cst_31 {dimension_numbers = #tpu.dot_dimension_numbers<[1], [0], [0], [1], [0, 0, 1, 1], [], []>} : vector<256x128xbf16>, vector<128x64xbf16>, vector<256x64xf32> -> vector<256x64xf32>
    %44 = vector.broadcast %3 : vector<1x64xf32> to vector<256x64xf32>
    %45 = arith.addf %43, %44 : vector<256x64xf32>
    %cst_32 = arith.constant 0.000000e+00 : f32
    %46 = vector.broadcast %cst_32 : f32 to vector<256x64xf32>
    %47 = arith.cmpf ogt, %45, %46 : vector<256x64xf32>
    %cst_33 = arith.constant 0.00999999977 : f32
    %48 = vector.broadcast %cst_33 : f32 to vector<256x64xf32>
    %49 = arith.mulf %48, %45 : vector<256x64xf32>
    %50 = arith.select %47, %45, %49 : vector<256x64xi1>, vector<256x64xf32>
    %51 = arith.truncf %50 : vector<256x64xf32> to vector<256x64xbf16>
    %c0_34 = arith.constant 0 : index
    %c0_35 = arith.constant 0 : index
    %52 = vector.load %arg10[%c0_34, %c0_35] : memref<64x32xbf16, #tpu.memory_space<vmem>>, vector<64x32xbf16>
    %cst_36 = arith.constant dense<0.000000e+00> : vector<256x32xf32>
    %53 = tpu.matmul %51, %52, %cst_36 {dimension_numbers = #tpu.dot_dimension_numbers<[1], [0], [0], [1], [0, 0, 1, 1], [], []>} : vector<256x64xbf16>, vector<64x32xbf16>, vector<256x32xf32> -> vector<256x32xf32>
    %54 = vector.broadcast %4 : vector<1x32xf32> to vector<256x32xf32>
    %55 = arith.addf %53, %54 : vector<256x32xf32>
    %cst_37 = arith.constant 0.000000e+00 : f32
    %56 = vector.broadcast %cst_37 : f32 to vector<256x32xf32>
    %57 = arith.cmpf ogt, %55, %56 : vector<256x32xf32>
    %cst_38 = arith.constant 0.00999999977 : f32
    %58 = vector.broadcast %cst_38 : f32 to vector<256x32xf32>
    %59 = arith.mulf %58, %55 : vector<256x32xf32>
    %60 = arith.select %57, %55, %59 : vector<256x32xi1>, vector<256x32xf32>
    %61 = arith.truncf %60 : vector<256x32xf32> to vector<256x32xbf16>
    %c0_39 = arith.constant 0 : index
    %c0_40 = arith.constant 0 : index
    %62 = vector.load %arg12[%c0_39, %c0_40] : memref<32x16xbf16, #tpu.memory_space<vmem>>, vector<32x16xbf16>
    %cst_41 = arith.constant dense<0.000000e+00> : vector<256x16xf32>
    %63 = tpu.matmul %61, %62, %cst_41 {dimension_numbers = #tpu.dot_dimension_numbers<[1], [0], [0], [1], [0, 0, 1, 1], [], []>} : vector<256x32xbf16>, vector<32x16xbf16>, vector<256x16xf32> -> vector<256x16xf32>
    %64 = vector.broadcast %5 : vector<1x16xf32> to vector<256x16xf32>
    %65 = arith.addf %63, %64 : vector<256x16xf32>
    %cst_42 = arith.constant 0.000000e+00 : f32
    %66 = vector.broadcast %cst_42 : f32 to vector<256x16xf32>
    %67 = arith.cmpf ogt, %65, %66 : vector<256x16xf32>
    %cst_43 = arith.constant 0.00999999977 : f32
    %68 = vector.broadcast %cst_43 : f32 to vector<256x16xf32>
    %69 = arith.mulf %68, %65 : vector<256x16xf32>
    %70 = arith.select %67, %65, %69 : vector<256x16xi1>, vector<256x16xf32>
    %71 = arith.truncf %70 : vector<256x16xf32> to vector<256x16xbf16>
    %c0_44 = arith.constant 0 : index
    %c0_45 = arith.constant 0 : index
    %72 = vector.load %arg14[%c0_44, %c0_45] : memref<16x4xbf16, #tpu.memory_space<vmem>>, vector<16x4xbf16>
    %cst_46 = arith.constant dense<0.000000e+00> : vector<256x4xf32>
    %73 = tpu.matmul %71, %72, %cst_46 {dimension_numbers = #tpu.dot_dimension_numbers<[1], [0], [0], [1], [0, 0, 1, 1], [], []>} : vector<256x16xbf16>, vector<16x4xbf16>, vector<256x4xf32> -> vector<256x4xf32>
    %74 = vector.broadcast %6 : vector<1x4xf32> to vector<256x4xf32>
    %75 = arith.addf %73, %74 : vector<256x4xf32>
    %76 = arith.negf %75 : vector<256x4xf32>
    %77 = math.exp %76 : vector<256x4xf32>
    %cst_47 = arith.constant 1.000000e+00 : f32
    %78 = vector.broadcast %cst_47 : f32 to vector<256x4xf32>
    %79 = arith.addf %78, %77 : vector<256x4xf32>
    %80 = arith.divf %78, %79 : vector<256x4xf32>
    %81 = vector.shape_cast %9 : vector<1x4xi1> to vector<1x4xi1>
    %82 = vector.broadcast %81 : vector<1x4xi1> to vector<256x4xi1>
    %83 = arith.select %82, %80, %75 : vector<256x4xi1>, vector<256x4xf32>
    %c0_48 = arith.constant 0 : index
    %c0_49 = arith.constant 0 : index
    %84 = vector.load %arg16[%c0_48, %c0_49] : memref<504x4xf32, #tpu.memory_space<vmem>>, vector<256x4xf32>
    tpu.vector_store %arg16[%c0_48, %c0_49], %83 {strides = array<i32>} : memref<504x4xf32, #tpu.memory_space<vmem>>, vector<256x4xf32>,
    %c256 = arith.constant 256 : index
    %c0_50 = arith.constant 0 : index
    %85 = vector.load %arg1[%c256, %c0_50] : memref<504x32xf32, #tpu.memory_space<vmem>>, vector<248x32xf32>
    %86 = arith.truncf %85 : vector<248x32xf32> to vector<248x32xbf16>
    %c0_51 = arith.constant 0 : index
    %c0_52 = arith.constant 0 : index
    %87 = vector.load %arg2[%c0_51, %c0_52] : memref<32x128xbf16, #tpu.memory_space<vmem>>, vector<32x128xbf16>
    %cst_53 = arith.constant dense<0.000000e+00> : vector<248x128xf32>
    %88 = tpu.matmul %86, %87, %cst_53 {dimension_numbers = #tpu.dot_dimension_numbers<[1], [0], [0], [1], [0, 0, 1, 1], [], []>} : vector<248x32xbf16>, vector<32x128xbf16>, vector<248x128xf32> -> vector<248x128xf32>
    %89 = vector.broadcast %0 : vector<1x128xf32> to vector<248x128xf32>
    %90 = arith.addf %88, %89 : vector<248x128xf32>
    %cst_54 = arith.constant 0.000000e+00 : f32
    %91 = vector.broadcast %cst_54 : f32 to vector<248x128xf32>
    %92 = arith.cmpf ogt, %90, %91 : vector<248x128xf32>
    %cst_55 = arith.constant 0.00999999977 : f32
    %93 = vector.broadcast %cst_55 : f32 to vector<248x128xf32>
    %94 = arith.mulf %93, %90 : vector<248x128xf32>
    %95 = arith.select %92, %90, %94 : vector<248x128xi1>, vector<248x128xf32>
    %96 = arith.truncf %95 : vector<248x128xf32> to vector<248x128xbf16>
    %c0_56 = arith.constant 0 : index
    %c0_57 = arith.constant 0 : index
    %97 = vector.load %arg4[%c0_56, %c0_57] : memref<128x128xbf16, #tpu.memory_space<vmem>>, vector<128x128xbf16>
    %cst_58 = arith.constant dense<0.000000e+00> : vector<248x128xf32>
    %98 = tpu.matmul %96, %97, %cst_58 {dimension_numbers = #tpu.dot_dimension_numbers<[1], [0], [0], [1], [0, 0, 1, 1], [], []>} : vector<248x128xbf16>, vector<128x128xbf16>, vector<248x128xf32> -> vector<248x128xf32>
    %99 = vector.broadcast %1 : vector<1x128xf32> to vector<248x128xf32>
    %100 = arith.addf %98, %99 : vector<248x128xf32>
    %cst_59 = arith.constant 0.000000e+00 : f32
    %101 = vector.broadcast %cst_59 : f32 to vector<248x128xf32>
    %102 = arith.cmpf ogt, %100, %101 : vector<248x128xf32>
    %cst_60 = arith.constant 0.00999999977 : f32
    %103 = vector.broadcast %cst_60 : f32 to vector<248x128xf32>
    %104 = arith.mulf %103, %100 : vector<248x128xf32>
    %105 = arith.select %102, %100, %104 : vector<248x128xi1>, vector<248x128xf32>
    %106 = arith.truncf %105 : vector<248x128xf32> to vector<248x128xbf16>
    %c0_61 = arith.constant 0 : index
    %c0_62 = arith.constant 0 : index
    %107 = vector.load %arg6[%c0_61, %c0_62] : memref<128x128xbf16, #tpu.memory_space<vmem>>, vector<128x128xbf16>
    %cst_63 = arith.constant dense<0.000000e+00> : vector<248x128xf32>
    %108 = tpu.matmul %106, %107, %cst_63 {dimension_numbers = #tpu.dot_dimension_numbers<[1], [0], [0], [1], [0, 0, 1, 1], [], []>} : vector<248x128xbf16>, vector<128x128xbf16>, vector<248x128xf32> -> vector<248x128xf32>
    %109 = vector.broadcast %2 : vector<1x128xf32> to vector<248x128xf32>
    %110 = arith.addf %108, %109 : vector<248x128xf32>
    %cst_64 = arith.constant 0.000000e+00 : f32
    %111 = vector.broadcast %cst_64 : f32 to vector<248x128xf32>
    %112 = arith.cmpf ogt, %110, %111 : vector<248x128xf32>
    %cst_65 = arith.constant 0.00999999977 : f32
    %113 = vector.broadcast %cst_65 : f32 to vector<248x128xf32>
    %114 = arith.mulf %113, %110 : vector<248x128xf32>
    %115 = arith.select %112, %110, %114 : vector<248x128xi1>, vector<248x128xf32>
    %116 = arith.truncf %115 : vector<248x128xf32> to vector<248x128xbf16>
    %c0_66 = arith.constant 0 : index
    %c0_67 = arith.constant 0 : index
    %117 = vector.load %arg8[%c0_66, %c0_67] : memref<128x64xbf16, #tpu.memory_space<vmem>>, vector<128x64xbf16>
    %cst_68 = arith.constant dense<0.000000e+00> : vector<248x64xf32>
    %118 = tpu.matmul %116, %117, %cst_68 {dimension_numbers = #tpu.dot_dimension_numbers<[1], [0], [0], [1], [0, 0, 1, 1], [], []>} : vector<248x128xbf16>, vector<128x64xbf16>, vector<248x64xf32> -> vector<248x64xf32>
    %119 = vector.broadcast %3 : vector<1x64xf32> to vector<248x64xf32>
    %120 = arith.addf %118, %119 : vector<248x64xf32>
    %cst_69 = arith.constant 0.000000e+00 : f32
    %121 = vector.broadcast %cst_69 : f32 to vector<248x64xf32>
    %122 = arith.cmpf ogt, %120, %121 : vector<248x64xf32>
    %cst_70 = arith.constant 0.00999999977 : f32
    %123 = vector.broadcast %cst_70 : f32 to vector<248x64xf32>
    %124 = arith.mulf %123, %120 : vector<248x64xf32>
    %125 = arith.select %122, %120, %124 : vector<248x64xi1>, vector<248x64xf32>
    %126 = arith.truncf %125 : vector<248x64xf32> to vector<248x64xbf16>
    %c0_71 = arith.constant 0 : index
    %c0_72 = arith.constant 0 : index
    %127 = vector.load %arg10[%c0_71, %c0_72] : memref<64x32xbf16, #tpu.memory_space<vmem>>, vector<64x32xbf16>
    %cst_73 = arith.constant dense<0.000000e+00> : vector<248x32xf32>
    %128 = tpu.matmul %126, %127, %cst_73 {dimension_numbers = #tpu.dot_dimension_numbers<[1], [0], [0], [1], [0, 0, 1, 1], [], []>} : vector<248x64xbf16>, vector<64x32xbf16>, vector<248x32xf32> -> vector<248x32xf32>
    %129 = vector.broadcast %4 : vector<1x32xf32> to vector<248x32xf32>
    %130 = arith.addf %128, %129 : vector<248x32xf32>
    %cst_74 = arith.constant 0.000000e+00 : f32
    %131 = vector.broadcast %cst_74 : f32 to vector<248x32xf32>
    %132 = arith.cmpf ogt, %130, %131 : vector<248x32xf32>
    %cst_75 = arith.constant 0.00999999977 : f32
    %133 = vector.broadcast %cst_75 : f32 to vector<248x32xf32>
    %134 = arith.mulf %133, %130 : vector<248x32xf32>
    %135 = arith.select %132, %130, %134 : vector<248x32xi1>, vector<248x32xf32>
    %136 = arith.truncf %135 : vector<248x32xf32> to vector<248x32xbf16>
    %c0_76 = arith.constant 0 : index
    %c0_77 = arith.constant 0 : index
    %137 = vector.load %arg12[%c0_76, %c0_77] : memref<32x16xbf16, #tpu.memory_space<vmem>>, vector<32x16xbf16>
    %cst_78 = arith.constant dense<0.000000e+00> : vector<248x16xf32>
    %138 = tpu.matmul %136, %137, %cst_78 {dimension_numbers = #tpu.dot_dimension_numbers<[1], [0], [0], [1], [0, 0, 1, 1], [], []>} : vector<248x32xbf16>, vector<32x16xbf16>, vector<248x16xf32> -> vector<248x16xf32>
    %139 = vector.broadcast %5 : vector<1x16xf32> to vector<248x16xf32>
    %140 = arith.addf %138, %139 : vector<248x16xf32>
    %cst_79 = arith.constant 0.000000e+00 : f32
    %141 = vector.broadcast %cst_79 : f32 to vector<248x16xf32>
    %142 = arith.cmpf ogt, %140, %141 : vector<248x16xf32>
    %cst_80 = arith.constant 0.00999999977 : f32
    %143 = vector.broadcast %cst_80 : f32 to vector<248x16xf32>
    %144 = arith.mulf %143, %140 : vector<248x16xf32>
    %145 = arith.select %142, %140, %144 : vector<248x16xi1>, vector<248x16xf32>
    %146 = arith.truncf %145 : vector<248x16xf32> to vector<248x16xbf16>
    %c0_81 = arith.constant 0 : index
    %c0_82 = arith.constant 0 : index
    %147 = vector.load %arg14[%c0_81, %c0_82] : memref<16x4xbf16, #tpu.memory_space<vmem>>, vector<16x4xbf16>
    %cst_83 = arith.constant dense<0.000000e+00> : vector<248x4xf32>
    %148 = tpu.matmul %146, %147, %cst_83 {dimension_numbers = #tpu.dot_dimension_numbers<[1], [0], [0], [1], [0, 0, 1, 1], [], []>} : vector<248x16xbf16>, vector<16x4xbf16>, vector<248x4xf32> -> vector<248x4xf32>
    %149 = vector.broadcast %6 : vector<1x4xf32> to vector<248x4xf32>
    %150 = arith.addf %148, %149 : vector<248x4xf32>
    %151 = arith.negf %150 : vector<248x4xf32>
    %152 = math.exp %151 : vector<248x4xf32>
    %cst_84 = arith.constant 1.000000e+00 : f32
    %153 = vector.broadcast %cst_84 : f32 to vector<248x4xf32>
    %154 = arith.addf %153, %152 : vector<248x4xf32>
    %155 = arith.divf %153, %154 : vector<248x4xf32>
    %156 = vector.shape_cast %9 : vector<1x4xi1> to vector<1x4xi1>
    %157 = vector.broadcast %156 : vector<1x4xi1> to vector<248x4xi1>
    %158 = arith.select %157, %155, %150 : vector<248x4xi1>, vector<248x4xf32>
    %c256_85 = arith.constant 256 : index
    %c0_86 = arith.constant 0 : index
    %159 = vector.load %arg16[%c256_85, %c0_86] : memref<504x4xf32, #tpu.memory_space<vmem>>, vector<248x4xf32>
    tpu.vector_store %arg16[%c256_85, %c0_86], %158 {strides = array<i32>} : memref<504x4xf32, #tpu.memory_space<vmem>>, vector<248x4xf32>,
    return
  }
  func.func @transform_0(%arg0: i32) -> (i32, i32) {
    %c0_i32 = arith.constant 0 : i32
    %c0_i32_0 = arith.constant 0 : i32
    return %arg0, %c0_i32 : i32, i32
  }
  func.func @transform_1(%arg0: i32) -> (i32, i32) {
    %c0_i32 = arith.constant 0 : i32
    %c0_i32_0 = arith.constant 0 : i32
    %c0_i32_1 = arith.constant 0 : i32
    return %c0_i32, %c0_i32_0 : i32, i32
  }
  func.func @transform_2(%arg0: i32) -> (i32, i32) {
    %c0_i32 = arith.constant 0 : i32
    %c0_i32_0 = arith.constant 0 : i32
    %c0_i32_1 = arith.constant 0 : i32
    return %c0_i32, %c0_i32_0 : i32, i32
  }
  func.func @transform_3(%arg0: i32) -> (i32, i32) {
    %c0_i32 = arith.constant 0 : i32
    %c0_i32_0 = arith.constant 0 : i32
    %c0_i32_1 = arith.constant 0 : i32
    return %c0_i32, %c0_i32_0 : i32, i32
  }
  func.func @transform_4(%arg0: i32) -> (i32, i32) {
    %c0_i32 = arith.constant 0 : i32
    %c0_i32_0 = arith.constant 0 : i32
    %c0_i32_1 = arith.constant 0 : i32
    return %c0_i32, %c0_i32_0 : i32, i32
  }
  func.func @transform_5(%arg0: i32) -> (i32, i32) {
    %c0_i32 = arith.constant 0 : i32
    %c0_i32_0 = arith.constant 0 : i32
    %c0_i32_1 = arith.constant 0 : i32
    return %c0_i32, %c0_i32_0 : i32, i32
  }
  func.func @transform_6(%arg0: i32) -> (i32, i32) {
    %c0_i32 = arith.constant 0 : i32
    %c0_i32_0 = arith.constant 0 : i32
    %c0_i32_1 = arith.constant 0 : i32
    return %c0_i32, %c0_i32_0 : i32, i32
  }
  func.func @transform_7(%arg0: i32) -> (i32, i32) {
    %c0_i32 = arith.constant 0 : i32
    %c0_i32_0 = arith.constant 0 : i32
    %c0_i32_1 = arith.constant 0 : i32
    return %c0_i32, %c0_i32_0 : i32, i32
  }
  func.func @transform_8(%arg0: i32) -> (i32, i32) {
    %c0_i32 = arith.constant 0 : i32
    %c0_i32_0 = arith.constant 0 : i32
    %c0_i32_1 = arith.constant 0 : i32
    return %c0_i32, %c0_i32_0 : i32, i32
  }
  func.func @transform_9(%arg0: i32) -> (i32, i32) {
    %c0_i32 = arith.constant 0 : i32
    %c0_i32_0 = arith.constant 0 : i32
    %c0_i32_1 = arith.constant 0 : i32
    return %c0_i32, %c0_i32_0 : i32, i32
  }
  func.func @transform_10(%arg0: i32) -> (i32, i32) {
    %c0_i32 = arith.constant 0 : i32
    %c0_i32_0 = arith.constant 0 : i32
    %c0_i32_1 = arith.constant 0 : i32
    return %c0_i32, %c0_i32_0 : i32, i32
  }
  func.func @transform_11(%arg0: i32) -> (i32, i32) {
    %c0_i32 = arith.constant 0 : i32
    %c0_i32_0 = arith.constant 0 : i32
    %c0_i32_1 = arith.constant 0 : i32
    return %c0_i32, %c0_i32_0 : i32, i32
  }
  func.func @transform_12(%arg0: i32) -> (i32, i32) {
    %c0_i32 = arith.constant 0 : i32
    %c0_i32_0 = arith.constant 0 : i32
    %c0_i32_1 = arith.constant 0 : i32
    return %c0_i32, %c0_i32_0 : i32, i32
  }
  func.func @transform_13(%arg0: i32) -> (i32, i32) {
    %c0_i32 = arith.constant 0 : i32
    %c0_i32_0 = arith.constant 0 : i32
    %c0_i32_1 = arith.constant 0 : i32
    return %c0_i32, %c0_i32_0 : i32, i32
  }
  func.func @transform_14(%arg0: i32) -> (i32, i32) {
    %c0_i32 = arith.constant 0 : i32
    %c0_i32_0 = arith.constant 0 : i32
    %c0_i32_1 = arith.constant 0 : i32
    return %c0_i32, %c0_i32_0 : i32, i32
  }
  func.func @transform_15(%arg0: i32) -> (i32, i32) {
    %c0_i32 = arith.constant 0 : i32
    %c0_i32_0 = arith.constant 0 : i32
    return %arg0, %c0_i32 : i32, i32
  }
}

</mosaic_0001>

<llo_original>
// kernel: tpu_custom_call.1
$region0: #{tpu_custom_call.1}
  #allocation0 [shape = 'u32[]', space=smem, size = 0x4, offset = 0x4, fixed_abs, tag = 'smem constant byte address 0x4 - core index']
  #allocation1 [shape = 'u32[144,128]{1,0:T(1,128)}', space=vmem, size = 0x12000, scoped, tag = 'internal scratch']
  %s0 = inlined_call_operand.vmem [shape: f32[1008,32], index: 0, kind: input, shape index: {}]
  %s1 = inlined_call_operand.vmem [shape: bf16[32,128], index: 1, kind: input, shape index: {}]
  %s2 = inlined_call_operand.vmem [shape: f32[1,128], index: 2, kind: input, shape index: {}]
  %s3 = inlined_call_operand.vmem [shape: bf16[128,128], index: 3, kind: input, shape index: {}]
  %s4 = inlined_call_operand.vmem [shape: f32[1,128], index: 4, kind: input, shape index: {}]
  %s5 = inlined_call_operand.vmem [shape: bf16[128,128], index: 5, kind: input, shape index: {}]
  %s6 = inlined_call_operand.vmem [shape: f32[1,128], index: 6, kind: input, shape index: {}]
  %s7 = inlined_call_operand.vmem [shape: bf16[128,64], index: 7, kind: input, shape index: {}]
  %s8 = inlined_call_operand.vmem [shape: f32[1,64], index: 8, kind: input, shape index: {}]
  %s9 = inlined_call_operand.vmem [shape: bf16[64,32], index: 9, kind: input, shape index: {}]
  %s10 = inlined_call_operand.vmem [shape: f32[1,32], index: 10, kind: input, shape index: {}]
  %s11 = inlined_call_operand.vmem [shape: bf16[32,16], index: 11, kind: input, shape index: {}]
  %s12 = inlined_call_operand.vmem [shape: f32[1,16], index: 12, kind: input, shape index: {}]
  %s13 = inlined_call_operand.vmem [shape: bf16[16,4], index: 13, kind: input, shape index: {}]
  %s14 = inlined_call_operand.vmem [shape: f32[1,4], index: 14, kind: input, shape index: {}]
  %s15 = inlined_call_operand.vmem [shape: f32[1008,4], index: 15, kind: output, shape index: {}]
  %s16 = sld [smem:[#allocation0]]
  $region93: #{tpu_custom_call.1} parent=0
    _
  %s18 = ssub.s32 1, %s16
  %s19 = scalar_select 0, %s18, %s16
  loop: start=0, step=1, limit=4
  $region2: #{tpu_custom_call.1} parent=0 // loop_pre_header
    _
  $region3: #{tpu_custom_call.1} parent=0 // loop_header
    %s21 = sphi 0, %s25
    %p22 = scmp.ge.s32.totalorder %s21, 4
    %s31 = sphi 0, %s33
    %s34 = sphi 0, %s31
    %s35 = sphi 0, %s34
    %s51 = sphi 0, %s35
    %s55 = sphi 0, %s55
    %s57 = sphi 0, %s55
    %s58 = sphi 0, %s57
    %s72 = sphi 0, %s58
    %s76 = sphi 0, %s76
    %s78 = sphi 0, %s76
    %s79 = sphi 0, %s78
    %s93 = sphi 0, %s79
    %s97 = sphi 0, %s97
    %s99 = sphi 0, %s97
    %s100 = sphi 0, %s99
    %s114 = sphi 0, %s100
    %s118 = sphi 0, %s118
    %s120 = sphi 0, %s118
    %s121 = sphi 0, %s120
    %s135 = sphi 0, %s121
    %s139 = sphi 0, %s139
    %s141 = sphi 0, %s139
    %s142 = sphi 0, %s141
    %s156 = sphi 0, %s142
    %s160 = sphi 0, %s160
    %s162 = sphi 0, %s160
    %s163 = sphi 0, %s162
    %s177 = sphi 0, %s163
    %s181 = sphi 0, %s181
    %s183 = sphi 0, %s181
    %s184 = sphi 0, %s183
    %s198 = sphi 0, %s184
    %s202 = sphi 0, %s202
    %s204 = sphi 0, %s202
    %s205 = sphi 0, %s204
    %s219 = sphi 0, %s205
    %s223 = sphi 0, %s223
    %s225 = sphi 0, %s223
    %s226 = sphi 0, %s225
    %s240 = sphi 0, %s226
    %s244 = sphi 0, %s244
    %s246 = sphi 0, %s244
    %s247 = sphi 0, %s246
    %s261 = sphi 0, %s247
    %s265 = sphi 0, %s265
    %s267 = sphi 0, %s265
    %s268 = sphi 0, %s267
    %s282 = sphi 0, %s268
    %s286 = sphi 0, %s286
    %s288 = sphi 0, %s286
    %s289 = sphi 0, %s288
    %s303 = sphi 0, %s289
    %s307 = sphi 0, %s307
    %s309 = sphi 0, %s307
    %s310 = sphi 0, %s309
    %s324 = sphi 0, %s310
    %s328 = sphi 0, %s328
    %s330 = sphi 0, %s328
    %s331 = sphi 0, %s330
    %s345 = sphi 0, %s331
    %s351 = sphi 0, %s353
    %s354 = sphi 0, %s351
    %s355 = sphi 0, %s354
    %s371 = sphi 0, %s355
  $region4: #{tpu_custom_call.1} parent=0 // loop_header_branch
    %24 = sbr.rel (%p22) target = $region8
  $region5: #{tpu_custom_call.1} parent=0 // loop_body
    %s26 = ssub.s32 %s21, 1
    %s27 = ssub.s32 %s21, 2
    %s28 = sadd.s32 %s21, 1
    %s29 = ssub.s32 %s21, %s28
    %p30 = scmp.eq.s32.totalorder %s29, 0
    %s32 = sadd.s32 %s31, 1
    %s33 = scalar_select %p30, %s31, %s32
    %p36 = pneg %p30
    %p37 = scmp.eq.s32.totalorder %s21, 1
    %p38 = por %p36, %p37
    %p39 = scmp.ne.s32.totalorder %s31, %s34
    %p40 = scmp.eq.s32.totalorder %s21, 0
    %p41 = por %p39, %p40
    %p42 = scmp.ne.s32.totalorder %s31, %s34
    %p43 = scmp.eq.s32.totalorder %s26, 1
    %p44 = por %p42, %p43
    %p45 = scmp.ne.s32.totalorder %s34, %s35
    %p46 = scmp.eq.s32.totalorder %s26, 0
    %p47 = por %p45, %p46
    %p48 = scmp.ne.s32.totalorder %s34, %s35
    %p49 = scmp.eq.s32.totalorder %s27, 1
    %p50 = por %p48, %p49
    %p52 = scmp.ne.s32.totalorder %s35, %s51
    %p53 = scmp.eq.s32.totalorder %s27, 0
    %p54 = por %p52, %p53
    %s56 = sadd.s32 %s55, 1
    %p59 = scmp.eq.s32.totalorder %s21, 1
    %p60 = scmp.ne.s32.totalorder %s55, %s57
    %p61 = scmp.eq.s32.totalorder %s21, 0
    %p62 = por %p60, %p61
    %p63 = scmp.ne.s32.totalorder %s55, %s57
    %p64 = scmp.eq.s32.totalorder %s26, 1
    %p65 = por %p63, %p64
    %p66 = scmp.ne.s32.totalorder %s57, %s58
    %p67 = scmp.eq.s32.totalorder %s26, 0
    %p68 = por %p66, %p67
    %p69 = scmp.ne.s32.totalorder %s57, %s58
    %p70 = scmp.eq.s32.totalorder %s27, 1
    %p71 = por %p69, %p70
    %p73 = scmp.ne.s32.totalorder %s58, %s72
    %p74 = scmp.eq.s32.totalorder %s27, 0
    %p75 = por %p73, %p74
    %s77 = sadd.s32 %s76, 1
    %p80 = scmp.eq.s32.totalorder %s21, 1
    %p81 = scmp.ne.s32.totalorder %s76, %s78
    %p82 = scmp.eq.s32.totalorder %s21, 0
    %p83 = por %p81, %p82
    %p84 = scmp.ne.s32.totalorder %s76, %s78
    %p85 = scmp.eq.s32.totalorder %s26, 1
    %p86 = por %p84, %p85
    %p87 = scmp.ne.s32.totalorder %s78, %s79
    %p88 = scmp.eq.s32.totalorder %s26, 0
    %p89 = por %p87, %p88
    %p90 = scmp.ne.s32.totalorder %s78, %s79
    %p91 = scmp.eq.s32.totalorder %s27, 1
    %p92 = por %p90, %p91
    %p94 = scmp.ne.s32.totalorder %s79, %s93
    %p95 = scmp.eq.s32.totalorder %s27, 0
    %p96 = por %p94, %p95
    %s98 = sadd.s32 %s97, 1
    %p101 = scmp.eq.s32.totalorder %s21, 1
    %p102 = scmp.ne.s32.totalorder %s97, %s99
    %p103 = scmp.eq.s32.totalorder %s21, 0
    %p104 = por %p102, %p103
    %p105 = scmp.ne.s32.totalorder %s97, %s99
    %p106 = scmp.eq.s32.totalorder %s26, 1
    %p107 = por %p105, %p106
    %p108 = scmp.ne.s32.totalorder %s99, %s100
    %p109 = scmp.eq.s32.totalorder %s26, 0
    %p110 = por %p108, %p109
    %p111 = scmp.ne.s32.totalorder %s99, %s100
    %p112 = scmp.eq.s32.totalorder %s27, 1
    %p113 = por %p111, %p112
    %p115 = scmp.ne.s32.totalorder %s100, %s114
    %p116 = scmp.eq.s32.totalorder %s27, 0
    %p117 = por %p115, %p116
    %s119 = sadd.s32 %s118, 1
    %p122 = scmp.eq.s32.totalorder %s21, 1
    %p123 = scmp.ne.s32.totalorder %s118, %s120
    %p124 = scmp.eq.s32.totalorder %s21, 0
    %p125 = por %p123, %p124
    %p126 = scmp.ne.s32.totalorder %s118, %s120
    %p127 = scmp.eq.s32.totalorder %s26, 1
    %p128 = por %p126, %p127
    %p129 = scmp.ne.s32.totalorder %s120, %s121
    %p130 = scmp.eq.s32.totalorder %s26, 0
    %p131 = por %p129, %p130
    %p132 = scmp.ne.s32.totalorder %s120, %s121
    %p133 = scmp.eq.s32.totalorder %s27, 1
    %p134 = por %p132, %p133
    %p136 = scmp.ne.s32.totalorder %s121, %s135
    %p137 = scmp.eq.s32.totalorder %s27, 0
    %p138 = por %p136, %p137
    %s140 = sadd.s32 %s139, 1
    %p143 = scmp.eq.s32.totalorder %s21, 1
    %p144 = scmp.ne.s32.totalorder %s139, %s141
    %p145 = scmp.eq.s32.totalorder %s21, 0
    %p146 = por %p144, %p145
    %p147 = scmp.ne.s32.totalorder %s139, %s141
    %p148 = scmp.eq.s32.totalorder %s26, 1
    %p149 = por %p147, %p148
    %p150 = scmp.ne.s32.totalorder %s141, %s142
    %p151 = scmp.eq.s32.totalorder %s26, 0
    %p152 = por %p150, %p151
    %p153 = scmp.ne.s32.totalorder %s141, %s142
    %p154 = scmp.eq.s32.totalorder %s27, 1
    %p155 = por %p153, %p154
    %p157 = scmp.ne.s32.totalorder %s142, %s156
    %p158 = scmp.eq.s32.totalorder %s27, 0
    %p159 = por %p157, %p158
    %s161 = sadd.s32 %s160, 1
    %p164 = scmp.eq.s32.totalorder %s21, 1
    %p165 = scmp.ne.s32.totalorder %s160, %s162
    %p166 = scmp.eq.s32.totalorder %s21, 0
    %p167 = por %p165, %p166
    %p168 = scmp.ne.s32.totalorder %s160, %s162
    %p169 = scmp.eq.s32.totalorder %s26, 1
    %p170 = por %p168, %p169
    %p171 = scmp.ne.s32.totalorder %s162, %s163
    %p172 = scmp.eq.s32.totalorder %s26, 0
    %p173 = por %p171, %p172
    %p174 = scmp.ne.s32.totalorder %s162, %s163
    %p175 = scmp.eq.s32.totalorder %s27, 1
    %p176 = por %p174, %p175
    %p178 = scmp.ne.s32.totalorder %s163, %s177
    %p179 = scmp.eq.s32.totalorder %s27, 0
    %p180 = por %p178, %p179
    %s182 = sadd.s32 %s181, 1
    %p185 = scmp.eq.s32.totalorder %s21, 1
    %p186 = scmp.ne.s32.totalorder %s181, %s183
    %p187 = scmp.eq.s32.totalorder %s21, 0
    %p188 = por %p186, %p187
    %p189 = scmp.ne.s32.totalorder %s181, %s183
    %p190 = scmp.eq.s32.totalorder %s26, 1
    %p191 = por %p189, %p190
    %p192 = scmp.ne.s32.totalorder %s183, %s184
    %p193 = scmp.eq.s32.totalorder %s26, 0
    %p194 = por %p192, %p193
    %p195 = scmp.ne.s32.totalorder %s183, %s184
    %p196 = scmp.eq.s32.totalorder %s27, 1
    %p197 = por %p195, %p196
    %p199 = scmp.ne.s32.totalorder %s184, %s198
    %p200 = scmp.eq.s32.totalorder %s27, 0
    %p201 = por %p199, %p200
    %s203 = sadd.s32 %s202, 1
    %p206 = scmp.eq.s32.totalorder %s21, 1
    %p207 = scmp.ne.s32.totalorder %s202, %s204
    %p208 = scmp.eq.s32.totalorder %s21, 0
    %p209 = por %p207, %p208
    %p210 = scmp.ne.s32.totalorder %s202, %s204
    %p211 = scmp.eq.s32.totalorder %s26, 1
    %p212 = por %p210, %p211
    %p213 = scmp.ne.s32.totalorder %s204, %s205
    %p214 = scmp.eq.s32.totalorder %s26, 0
    %p215 = por %p213, %p214
    %p216 = scmp.ne.s32.totalorder %s204, %s205
    %p217 = scmp.eq.s32.totalorder %s27, 1
    %p218 = por %p216, %p217
    %p220 = scmp.ne.s32.totalorder %s205, %s219
    %p221 = scmp.eq.s32.totalorder %s27, 0
    %p222 = por %p220, %p221
    %s224 = sadd.s32 %s223, 1
    %p227 = scmp.eq.s32.totalorder %s21, 1
    %p228 = scmp.ne.s32.totalorder %s223, %s225
    %p229 = scmp.eq.s32.totalorder %s21, 0
    %p230 = por %p228, %p229
    %p231 = scmp.ne.s32.totalorder %s223, %s225
    %p232 = scmp.eq.s32.totalorder %s26, 1
    %p233 = por %p231, %p232
    %p234 = scmp.ne.s32.totalorder %s225, %s226
    %p235 = scmp.eq.s32.totalorder %s26, 0
    %p236 = por %p234, %p235
    %p237 = scmp.ne.s32.totalorder %s225, %s226
    %p238 = scmp.eq.s32.totalorder %s27, 1
    %p239 = por %p237, %p238
    %p241 = scmp.ne.s32.totalorder %s226, %s240
    %p242 = scmp.eq.s32.totalorder %s27, 0
    %p243 = por %p241, %p242
    %s245 = sadd.s32 %s244, 1
    %p248 = scmp.eq.s32.totalorder %s21, 1
    %p249 = scmp.ne.s32.totalorder %s244, %s246
    %p250 = scmp.eq.s32.totalorder %s21, 0
    %p251 = por %p249, %p250
    %p252 = scmp.ne.s32.totalorder %s244, %s246
    %p253 = scmp.eq.s32.totalorder %s26, 1
    %p254 = por %p252, %p253
    %p255 = scmp.ne.s32.totalorder %s246, %s247
    %p256 = scmp.eq.s32.totalorder %s26, 0
    %p257 = por %p255, %p256
    %p258 = scmp.ne.s32.totalorder %s246, %s247
    %p259 = scmp.eq.s32.totalorder %s27, 1
    %p260 = por %p258, %p259
    %p262 = scmp.ne.s32.totalorder %s247, %s261
    %p263 = scmp.eq.s32.totalorder %s27, 0
    %p264 = por %p262, %p263
    %s266 = sadd.s32 %s265, 1
    %p269 = scmp.eq.s32.totalorder %s21, 1
    %p270 = scmp.ne.s32.totalorder %s265, %s267
    %p271 = scmp.eq.s32.totalorder %s21, 0
    %p272 = por %p270, %p271
    %p273 = scmp.ne.s32.totalorder %s265, %s267
    %p274 = scmp.eq.s32.totalorder %s26, 1
    %p275 = por %p273, %p274
    %p276 = scmp.ne.s32.totalorder %s267, %s268
    %p277 = scmp.eq.s32.totalorder %s26, 0
    %p278 = por %p276, %p277
    %p279 = scmp.ne.s32.totalorder %s267, %s268
    %p280 = scmp.eq.s32.totalorder %s27, 1
    %p281 = por %p279, %p280
    %p283 = scmp.ne.s32.totalorder %s268, %s282
    %p284 = scmp.eq.s32.totalorder %s27, 0
    %p285 = por %p283, %p284
    %s287 = sadd.s32 %s286, 1
    %p290 = scmp.eq.s32.totalorder %s21, 1
    %p291 = scmp.ne.s32.totalorder %s286, %s288
    %p292 = scmp.eq.s32.totalorder %s21, 0
    %p293 = por %p291, %p292
    %p294 = scmp.ne.s32.totalorder %s286, %s288
    %p295 = scmp.eq.s32.totalorder %s26, 1
    %p296 = por %p294, %p295
    %p297 = scmp.ne.s32.totalorder %s288, %s289
    %p298 = scmp.eq.s32.totalorder %s26, 0
    %p299 = por %p297, %p298
    %p300 = scmp.ne.s32.totalorder %s288, %s289
    %p301 = scmp.eq.s32.totalorder %s27, 1
    %p302 = por %p300, %p301
    %p304 = scmp.ne.s32.totalorder %s289, %s303
    %p305 = scmp.eq.s32.totalorder %s27, 0
    %p306 = por %p304, %p305
    %s308 = sadd.s32 %s307, 1
    %p311 = scmp.eq.s32.totalorder %s21, 1
    %p312 = scmp.ne.s32.totalorder %s307, %s309
    %p313 = scmp.eq.s32.totalorder %s21, 0
    %p314 = por %p312, %p313
    %p315 = scmp.ne.s32.totalorder %s307, %s309
    %p316 = scmp.eq.s32.totalorder %s26, 1
    %p317 = por %p315, %p316
    %p318 = scmp.ne.s32.totalorder %s309, %s310
    %p319 = scmp.eq.s32.totalorder %s26, 0
    %p320 = por %p318, %p319
    %p321 = scmp.ne.s32.totalorder %s309, %s310
    %p322 = scmp.eq.s32.totalorder %s27, 1
    %p323 = por %p321, %p322
    %p325 = scmp.ne.s32.totalorder %s310, %s324
    %p326 = scmp.eq.s32.totalorder %s27, 0
    %p327 = por %p325, %p326
    %s329 = sadd.s32 %s328, 1
    %p332 = scmp.eq.s32.totalorder %s21, 1
    %p333 = scmp.ne.s32.totalorder %s328, %s330
    %p334 = scmp.eq.s32.totalorder %s21, 0
    %p335 = por %p333, %p334
    %p336 = scmp.ne.s32.totalorder %s328, %s330
    %p337 = scmp.eq.s32.totalorder %s26, 1
    %p338 = por %p336, %p337
    %p339 = scmp.ne.s32.totalorder %s330, %s331
    %p340 = scmp.eq.s32.totalorder %s26, 0
    %p341 = por %p339, %p340
    %p342 = scmp.ne.s32.totalorder %s330, %s331
    %p343 = scmp.eq.s32.totalorder %s27, 1
    %p344 = por %p342, %p343
    %p346 = scmp.ne.s32.totalorder %s331, %s345
    %p347 = scmp.eq.s32.totalorder %s27, 0
    %p348 = por %p346, %p347
    %s349 = ssub.s32 %s21, %s28
    %p350 = scmp.eq.s32.totalorder %s349, 0
    %s352 = sadd.s32 %s351, 1
    %s353 = scalar_select %p350, %s351, %s352
    %p356 = pneg %p350
    %p357 = scmp.eq.s32.totalorder %s21, 1
    %p358 = por %p356, %p357
    %p359 = scmp.ne.s32.totalorder %s351, %s354
    %p360 = scmp.eq.s32.totalorder %s21, 0
    %p361 = por %p359, %p360
    %p362 = scmp.ne.s32.totalorder %s351, %s354
    %p363 = scmp.eq.s32.totalorder %s26, 1
    %p364 = por %p362, %p363
    %p365 = scmp.ne.s32.totalorder %s354, %s355
    %p366 = scmp.eq.s32.totalorder %s26, 0
    %p367 = por %p365, %p366
    %p368 = scmp.ne.s32.totalorder %s354, %s355
    %p369 = scmp.eq.s32.totalorder %s27, 1
    %p370 = por %p368, %p369
    %p372 = scmp.ne.s32.totalorder %s355, %s371
    %p373 = scmp.eq.s32.totalorder %s27, 0
    %p374 = por %p372, %p373
    %p375 = scmp.le.s32.totalorder 1, %s21
    %p376 = scmp.lt.s32.totalorder %s21, 3
    %p377 = pnand %p375, %p376
    %p378 = pneg %p377
    // Predicated region
    $region9: #{tpu_custom_call.1} parent=5 // pred_check
      _
    $region10: #{tpu_custom_call.1} parent=5 // pred_check_branch
      %380 = sbr.rel (%p377) target = $region12
    $region11: #{tpu_custom_call.1} parent=5 // pred_region
      %s381 = ssub.s32 %s21, 1
      // Predicated region
      $region13: #{tpu_custom_call.1} parent=11 // pred_check
        %p382 = pneg %p68
      $region14: #{tpu_custom_call.1} parent=11 // pred_check_branch
        %384 = sbr.rel (%p382) target = $region16
      $region15: #{tpu_custom_call.1} parent=11 // pred_region
        _
      $region16: #{tpu_custom_call.1} parent=11 // pred_fallthru
        _
      // Predicated region
      $region17: #{tpu_custom_call.1} parent=11 // pred_check
        %p385 = pneg %p89
      $region18: #{tpu_custom_call.1} parent=11 // pred_check_branch
        %387 = sbr.rel (%p385) target = $region20
      $region19: #{tpu_custom_call.1} parent=11 // pred_region
        _
      $region20: #{tpu_custom_call.1} parent=11 // pred_fallthru
        _
      // Predicated region
      $region21: #{tpu_custom_call.1} parent=11 // pred_check
        %p388 = pneg %p110
      $region22: #{tpu_custom_call.1} parent=11 // pred_check_branch
        %390 = sbr.rel (%p388) target = $region24
      $region23: #{tpu_custom_call.1} parent=11 // pred_region
        _
      $region24: #{tpu_custom_call.1} parent=11 // pred_fallthru
        _
      // Predicated region
      $region25: #{tpu_custom_call.1} parent=11 // pred_check
        %p391 = pneg %p131
      $region26: #{tpu_custom_call.1} parent=11 // pred_check_branch
        %393 = sbr.rel (%p391) target = $region28
      $region27: #{tpu_custom_call.1} parent=11 // pred_region
        _
      $region28: #{tpu_custom_call.1} parent=11 // pred_fallthru
        _
      // Predicated region
      $region29: #{tpu_custom_call.1} parent=11 // pred_check
        %p394 = pneg %p152
      $region30: #{tpu_custom_call.1} parent=11 // pred_check_branch
        %396 = sbr.rel (%p394) target = $region32
      $region31: #{tpu_custom_call.1} parent=11 // pred_region
        _
      $region32: #{tpu_custom_call.1} parent=11 // pred_fallthru
        _
      // Predicated region
      $region33: #{tpu_custom_call.1} parent=11 // pred_check
        %p397 = pneg %p173
      $region34: #{tpu_custom_call.1} parent=11 // pred_check_branch
        %399 = sbr.rel (%p397) target = $region36
      $region35: #{tpu_custom_call.1} parent=11 // pred_region
        _
      $region36: #{tpu_custom_call.1} parent=11 // pred_fallthru
        _
      // Predicated region
      $region37: #{tpu_custom_call.1} parent=11 // pred_check
        %p400 = pneg %p194
      $region38: #{tpu_custom_call.1} parent=11 // pred_check_branch
        %402 = sbr.rel (%p400) target = $region40
      $region39: #{tpu_custom_call.1} parent=11 // pred_region
        _
      $region40: #{tpu_custom_call.1} parent=11 // pred_fallthru
        _
      // Predicated region
      $region41: #{tpu_custom_call.1} parent=11 // pred_check
        %p403 = pneg %p215
      $region42: #{tpu_custom_call.1} parent=11 // pred_check_branch
        %405 = sbr.rel (%p403) target = $region44
      $region43: #{tpu_custom_call.1} parent=11 // pred_region
        _
      $region44: #{tpu_custom_call.1} parent=11 // pred_fallthru
        _
      // Predicated region
      $region45: #{tpu_custom_call.1} parent=11 // pred_check
        %p406 = pneg %p236
      $region46: #{tpu_custom_call.1} parent=11 // pred_check_branch
        %408 = sbr.rel (%p406) target = $region48
      $region47: #{tpu_custom_call.1} parent=11 // pred_region
        _
      $region48: #{tpu_custom_call.1} parent=11 // pred_fallthru
        _
      // Predicated region
      $region49: #{tpu_custom_call.1} parent=11 // pred_check
        %p409 = pneg %p257
      $region50: #{tpu_custom_call.1} parent=11 // pred_check_branch
        %411 = sbr.rel (%p409) target = $region52
      $region51: #{tpu_custom_call.1} parent=11 // pred_region
        _
      $region52: #{tpu_custom_call.1} parent=11 // pred_fallthru
        _
      // Predicated region
      $region53: #{tpu_custom_call.1} parent=11 // pred_check
        %p412 = pneg %p278
      $region54: #{tpu_custom_call.1} parent=11 // pred_check_branch
        %414 = sbr.rel (%p412) target = $region56
      $region55: #{tpu_custom_call.1} parent=11 // pred_region
        _
      $region56: #{tpu_custom_call.1} parent=11 // pred_fallthru
        _
      // Predicated region
      $region57: #{tpu_custom_call.1} parent=11 // pred_check
        %p415 = pneg %p299
      $region58: #{tpu_custom_call.1} parent=11 // pred_check_branch
        %417 = sbr.rel (%p415) target = $region60
      $region59: #{tpu_custom_call.1} parent=11 // pred_region
        _
      $region60: #{tpu_custom_call.1} parent=11 // pred_fallthru
        _
      // Predicated region
      $region61: #{tpu_custom_call.1} parent=11 // pred_check
        %p418 = pneg %p320
      $region62: #{tpu_custom_call.1} parent=11 // pred_check_branch
        %420 = sbr.rel (%p418) target = $region64
      $region63: #{tpu_custom_call.1} parent=11 // pred_region
        _
      $region64: #{tpu_custom_call.1} parent=11 // pred_fallthru
        _
      // Predicated region
      $region65: #{tpu_custom_call.1} parent=11 // pred_check
        %p421 = pneg %p341
      $region66: #{tpu_custom_call.1} parent=11 // pred_check_branch
        %423 = sbr.rel (%p421) target = $region68
      $region67: #{tpu_custom_call.1} parent=11 // pred_region
        _
      $region68: #{tpu_custom_call.1} parent=11 // pred_fallthru
        _
    $region12: #{tpu_custom_call.1} parent=5 // pred_fallthru
      _
    %p424 = scmp.lt.s32.totalorder %s21, 2
    // Predicated region
    $region69: #{tpu_custom_call.1} parent=5 // pred_check
      %p425 = pneg %p424
    $region70: #{tpu_custom_call.1} parent=5 // pred_check_branch
      %427 = sbr.rel (%p425) target = $region72
    $region71: #{tpu_custom_call.1} parent=5 // pred_region
      // Predicated region
      $region73: #{tpu_custom_call.1} parent=71 // pred_check
        %p428 = pneg %p41
      $region74: #{tpu_custom_call.1} parent=71 // pred_check_branch
        %430 = sbr.rel (%p428) target = $region76
      $region75: #{tpu_custom_call.1} parent=71 // pred_region
        %s431 = smul.u32 63, %s21
        %p432 = scmp.lt.s32.totalorder %s431, 125
        %s433 = scalar_select %p432, %s431, 125
        %s434 = smul.addr %s433, 8
        %s435 = scalar_lea.vmem %s0, %s434
        %s436 = smul.u32 63, %s21
      $region76: #{tpu_custom_call.1} parent=71 // pred_fallthru
        _
    $region72: #{tpu_custom_call.1} parent=5 // pred_fallthru
      _
    %p437 = scmp.le.s32.totalorder 1, %s21
    %p438 = scmp.lt.s32.totalorder %s21, 3
    %p439 = pnand %p437, %p438
    %p440 = pneg %p439
    // Predicated region
    $region77: #{tpu_custom_call.1} parent=5 // pred_check
      _
    $region78: #{tpu_custom_call.1} parent=5 // pred_check_branch
      %442 = sbr.rel (%p439) target = $region80
    $region79: #{tpu_custom_call.1} parent=5 // pred_region
      %s443 = ssub.s32 %s21, 1
      %s444 = smul.u32 63, %s26
      %p445 = scmp.lt.s32.totalorder %s444, 125
      %s446 = scalar_select %p445, %s444, 125
      %s447 = smul.addr %s446, 8
      %s448 = scalar_lea.vmem %s0, %s447
      %p449 = pneg %p47
      %p450 = pneg %p44
      %p451 = pneg %p68
      %p452 = pneg %p65
      %p453 = pneg %p89
      %p454 = pneg %p86
      %p455 = pneg %p110
      %p456 = pneg %p107
      %p457 = pneg %p131
      %p458 = pneg %p128
      %p459 = pneg %p152
      %p460 = pneg %p149
      %p461 = pneg %p173
      %p462 = pneg %p170
      %p463 = pneg %p194
      %p464 = pneg %p191
      %p465 = pneg %p215
      %p466 = pneg %p212
      %p467 = pneg %p236
      %p468 = pneg %p233
      %p469 = pneg %p257
      %p470 = pneg %p254
      %p471 = pneg %p278
      %p472 = pneg %p275
      %p473 = pneg %p299
      %p474 = pneg %p296
      %p475 = pneg %p320
      %p476 = pneg %p317
      %p477 = pneg %p341
      %p478 = pneg %p338
      %p479 = pneg %p367
      %p480 = pneg %p364
      %s481 = smul.u32 63, %s26
      %p482 = scmp.lt.s32.totalorder %s481, 125
      %s483 = scalar_select %p482, %s481, 125
      %s484 = smul.addr %s483, 8
      %s485 = scalar_lea.vmem %s15, %s484
      %s486 = smul.u32 63, %s26
      %p487 = scmp.lt.s32.totalorder %s486, 125
      %s488 = scalar_select %p487, %s486, 125
      %s489 = smul.addr %s488, 8
      %s490 = scalar_lea.vmem %s0, %s489
      %s491 = smul.u32 63, %s26
      %s492 = smul.u32 63, %s26
      %p493 = scmp.lt.s32.totalorder %s492, 125
      %s494 = scalar_select %p493, %s492, 125
      %s495 = smul.addr %s494, 8
      %s496 = scalar_lea.vmem %s15, %s495
      %s497 = smul.u32 63, %s26
      %v499 = vld [vmem:[%s2] sm:$0x1]
      %v500 = vld [vmem:[%s4] sm:$0x1]
      %v501 = vld [vmem:[%s6] sm:$0x1]
      %v502 = vld [vmem:[%s8] sm:$0x1]
      %v503 = vld [vmem:[%s10] sm:$0x1]
      %v504 = vld [vmem:[%s12] sm:$0x1]
      %v505 = vld [vmem:[%s14] sm:$0x1]
      %v506 = vlaneseq
      %v507 = vand.u32 %v506, 127
      %vm508 = vcmp.eq.s32.totalorder %v507, 0
      %v509 = vld [vmem:[%s490] sm:$0xff]
      %v510 = vld [vmem:[%s490 + $0x8] sm:$0xff]
      %v511 = vld [vmem:[%s490 + $0x10] sm:$0xff]
      %v512 = vld [vmem:[%s490 + $0x18] sm:$0xff]
      %v513 = vld [vmem:[%s490 + $0x20] sm:$0xff]
      %v514 = vld [vmem:[%s490 + $0x28] sm:$0xff]
      %v515 = vld [vmem:[%s490 + $0x30] sm:$0xff]
      %v516 = vld [vmem:[%s490 + $0x38] sm:$0xff]
      %v517 = vld [vmem:[%s490 + $0x40] sm:$0xff]
      %v518 = vld [vmem:[%s490 + $0x48] sm:$0xff]
      %v519 = vld [vmem:[%s490 + $0x50] sm:$0xff]
      %v520 = vld [vmem:[%s490 + $0x58] sm:$0xff]
      %v521 = vld [vmem:[%s490 + $0x60] sm:$0xff]
      %v522 = vld [vmem:[%s490 + $0x68] sm:$0xff]
      %v523 = vld [vmem:[%s490 + $0x70] sm:$0xff]
      %v524 = vld [vmem:[%s490 + $0x78] sm:$0xff]
      %v525 = vld [vmem:[%s490 + $0x80] sm:$0xff]
      %v526 = vld [vmem:[%s490 + $0x88] sm:$0xff]
      %v527 = vld [vmem:[%s490 + $0x90] sm:$0xff]
      %v528 = vld [vmem:[%s490 + $0x98] sm:$0xff]
      %v529 = vld [vmem:[%s490 + $0xa0] sm:$0xff]
      %v530 = vld [vmem:[%s490 + $0xa8] sm:$0xff]
      %v531 = vld [vmem:[%s490 + $0xb0] sm:$0xff]
      %v532 = vld [vmem:[%s490 + $0xb8] sm:$0xff]
      %v533 = vld [vmem:[%s490 + $0xc0] sm:$0xff]
      %v534 = vld [vmem:[%s490 + $0xc8] sm:$0xff]
      %v535 = vld [vmem:[%s490 + $0xd0] sm:$0xff]
      %v536 = vld [vmem:[%s490 + $0xd8] sm:$0xff]
      %v537 = vld [vmem:[%s490 + $0xe0] sm:$0xff]
      %v538 = vld [vmem:[%s490 + $0xe8] sm:$0xff]
      %v539 = vld [vmem:[%s490 + $0xf0] sm:$0xff]
      %v540 = vld [vmem:[%s490 + $0xf8] sm:$0xff]
      %v541 = vpack.c.bf16 %v510, %v509
      %v542 = vpack.c.bf16 %v512, %v511
      %v543 = vpack.c.bf16 %v514, %v513
      %v544 = vpack.c.bf16 %v516, %v515
      %v545 = vpack.c.bf16 %v518, %v517
      %v546 = vpack.c.bf16 %v520, %v519
      %v547 = vpack.c.bf16 %v522, %v521
      %v548 = vpack.c.bf16 %v524, %v523
      %v549 = vpack.c.bf16 %v526, %v525
      %v550 = vpack.c.bf16 %v528, %v527
      %v551 = vpack.c.bf16 %v530, %v529
      %v552 = vpack.c.bf16 %v532, %v531
      %v553 = vpack.c.bf16 %v534, %v533
      %v554 = vpack.c.bf16 %v536, %v535
      %v555 = vpack.c.bf16 %v538, %v537
      %v556 = vpack.c.bf16 %v540, %v539
      %v557 = vld [vmem:[%s1] sm:$0xf]
      %v558 = vld [vmem:[%s1 + $0x4] sm:$0xf]
      %v559 = vld [vmem:[%s1 + $0x8] sm:$0xf]
      %v560 = vld [vmem:[%s1 + $0xc] sm:$0xf]
      %v562 = vlaneseq
      %v563 = vshrl.u32 %v562, 7
      %v564 = vsub.s32 0, %v563
      %v565 = vrot.slane %v499, %v564
      %v571 = vunpack.c.l.b16 %v557
      %v572 = vunpack.c.l.b16 %v558
      %v573 = vunpack.c.l.b16 %v559
      %v574 = vunpack.c.l.b16 %v560
      %v575 = vpack.c.b16 %v572, %v571
      %v576 = vpack.c.b16 %v574, %v573
      %vm579 = vcmask 261120
      %v581 = vsel %vm579, %v541, 0
      %v584 = vsel %vm579, %v542, 0
      %v587 = vsel %vm579, %v543, 0
      %v590 = vsel %vm579, %v544, 0
      %v593 = vsel %vm579, %v545, 0
      %v596 = vsel %vm579, %v546, 0
      %v599 = vsel %vm579, %v547, 0
      %v602 = vsel %vm579, %v548, 0
      %v605 = vsel %vm579, %v549, 0
      %v608 = vsel %vm579, %v550, 0
      %v611 = vsel %vm579, %v551, 0
      %v614 = vsel %vm579, %v552, 0
      %v617 = vsel %vm579, %v553, 0
      %v620 = vsel %vm579, %v554, 0
      %v623 = vsel %vm579, %v555, 0
      %v626 = vsel %vm579, %v556, 0
      %628 = vmatprep.subr.bf16.mxu0 0
      %629 = vmatpush1.bf16.msra.mxu0 0
      %630 = vmatprep.subr.bf16.mxu0 0
      %631 = vmatpush1.bf16.msra.mxu0 0
      %632 = vmatprep.subr.bf16.mxu0 0
      %633 = vmatpush1.bf16.msra.mxu0 0
      %634 = vmatprep.subr.bf16.mxu0 0
      %635 = vmatpush1.bf16.msra.mxu0 0
      %636 = vmatprep.subr.bf16.mxu0 0
      %637 = vmatpush1.bf16.msra.mxu0 0
      %638 = vmatprep.subr.bf16.mxu0 0
      %639 = vmatpush1.bf16.msra.mxu0 0
      %640 = vmatprep.subr.bf16.mxu0 0
      %641 = vmatpush1.bf16.msra.mxu0 %v576
      %642 = vmatprep.subr.bf16.mxu0 0
      %643 = vmatpush1.bf16.msra.mxu0 %v575
      %644 = vmatprep.subr.bf16.mxu0 0
      %645 = vmatpush2.bf16.msra.mxu0 0
      %646 = vmatprep.subr.bf16.mxu0 0
      %647 = vmatpush2.bf16.msra.mxu0 0
      %648 = vmatprep.subr.bf16.mxu0 0
      %649 = vmatpush2.bf16.msra.mxu0 0
      %650 = vmatprep.subr.bf16.mxu0 0
      %651 = vmatpush2.bf16.msra.mxu0 0
      %652 = vmatprep.subr.bf16.mxu0 0
      %653 = vmatpush2.bf16.msra.mxu0 0
      %654 = vmatprep.subr.bf16.mxu0 0
      %655 = vmatpush2.bf16.msra.mxu0 0
      %656 = vmatprep.subr.bf16.mxu0 0
      %657 = vmatpush2.bf16.msra.mxu0 0
      %658 = vmatprep.subr.bf16.mxu0 0
      %659 = vmatpush2.bf16.msra.mxu0 0
      %660 = vmatprep.mubr.bf16.mxu0 0
      %661 = vmatmul.mubr.bf16.gmra.mxu0 %v581
      %v662 = vpop.f32.mrf.mxu0
      %v663 = vadd.f32 %v565, %v662
      %v664 = vpop.f32.mrf.mxu0
      %v665 = vpop.f32.mrf.mxu0
      %v666 = vadd.f32 %v565, %v665
      %v667 = vpop.f32.mrf.mxu0
      %668 = vmatprep.mubr.bf16.mxu0 0
      %669 = vmatmul.mubr.bf16.gmra.mxu0 %v584
      %v670 = vpop.f32.mrf.mxu0
      %v671 = vadd.f32 %v565, %v670
      %v672 = vpop.f32.mrf.mxu0
      %v673 = vpop.f32.mrf.mxu0
      %v674 = vadd.f32 %v565, %v673
      %v675 = vpop.f32.mrf.mxu0
      %676 = vmatprep.mubr.bf16.mxu0 0
      %677 = vmatmul.mubr.bf16.gmra.mxu0 %v587
      %v678 = vpop.f32.mrf.mxu0
      %v679 = vadd.f32 %v565, %v678
      %v680 = vpop.f32.mrf.mxu0
      %v681 = vpop.f32.mrf.mxu0
      %v682 = vadd.f32 %v565, %v681
      %v683 = vpop.f32.mrf.mxu0
      %684 = vmatprep.mubr.bf16.mxu0 0
      %685 = vmatmul.mubr.bf16.gmra.mxu0 %v590
      %v686 = vpop.f32.mrf.mxu0
      %v687 = vadd.f32 %v565, %v686
      %v688 = vpop.f32.mrf.mxu0
      %v689 = vpop.f32.mrf.mxu0
      %v690 = vadd.f32 %v565, %v689
      %v691 = vpop.f32.mrf.mxu0
      %692 = vmatprep.mubr.bf16.mxu0 0
      %693 = vmatmul.mubr.bf16.gmra.mxu0 %v593
      %v694 = vpop.f32.mrf.mxu0
      %v695 = vadd.f32 %v565, %v694
      %v696 = vpop.f32.mrf.mxu0
      %v697 = vpop.f32.mrf.mxu0
      %v698 = vadd.f32 %v565, %v697
      %v699 = vpop.f32.mrf.mxu0
      %700 = vmatprep.mubr.bf16.mxu0 0
      %701 = vmatmul.mubr.bf16.gmra.mxu0 %v596
      %v702 = vpop.f32.mrf.mxu0
      %v703 = vadd.f32 %v565, %v702
      %v704 = vpop.f32.mrf.mxu0
      %v705 = vpop.f32.mrf.mxu0
      %v706 = vadd.f32 %v565, %v705
      %v707 = vpop.f32.mrf.mxu0
      %708 = vmatprep.mubr.bf16.mxu0 0
      %709 = vmatmul.mubr.bf16.gmra.mxu0 %v599
      %v710 = vpop.f32.mrf.mxu0
      %v711 = vadd.f32 %v565, %v710
      %v712 = vpop.f32.mrf.mxu0
      %v713 = vpop.f32.mrf.mxu0
      %v714 = vadd.f32 %v565, %v713
      %v715 = vpop.f32.mrf.mxu0
      %716 = vmatprep.mubr.bf16.mxu0 0
      %717 = vmatmul.mubr.bf16.gmra.mxu0 %v602
      %v718 = vpop.f32.mrf.mxu0
      %v719 = vadd.f32 %v565, %v718
      %v720 = vpop.f32.mrf.mxu0
      %v721 = vpop.f32.mrf.mxu0
      %v722 = vadd.f32 %v565, %v721
      %v723 = vpop.f32.mrf.mxu0
      %724 = vmatprep.mubr.bf16.mxu0 0
      %725 = vmatmul.mubr.bf16.gmra.mxu0 %v605
      %v726 = vpop.f32.mrf.mxu0
      %v727 = vadd.f32 %v565, %v726
      %v728 = vpop.f32.mrf.mxu0
      %v729 = vpop.f32.mrf.mxu0
      %v730 = vadd.f32 %v565, %v729
      %v731 = vpop.f32.mrf.mxu0
      %732 = vmatprep.mubr.bf16.mxu0 0
      %733 = vmatmul.mubr.bf16.gmra.mxu0 %v608
      %v734 = vpop.f32.mrf.mxu0
      %v735 = vadd.f32 %v565, %v734
      %v736 = vpop.f32.mrf.mxu0
      %v737 = vpop.f32.mrf.mxu0
      %v738 = vadd.f32 %v565, %v737
      %v739 = vpop.f32.mrf.mxu0
      %740 = vmatprep.mubr.bf16.mxu0 0
      %741 = vmatmul.mubr.bf16.gmra.mxu0 %v611
      %v742 = vpop.f32.mrf.mxu0
      %v743 = vadd.f32 %v565, %v742
      %v744 = vpop.f32.mrf.mxu0
      %v745 = vpop.f32.mrf.mxu0
      %v746 = vadd.f32 %v565, %v745
      %v747 = vpop.f32.mrf.mxu0
      %748 = vmatprep.mubr.bf16.mxu0 0
      %749 = vmatmul.mubr.bf16.gmra.mxu0 %v614
      %v750 = vpop.f32.mrf.mxu0
      %v751 = vadd.f32 %v565, %v750
      %v752 = vpop.f32.mrf.mxu0
      %v753 = vpop.f32.mrf.mxu0
      %v754 = vadd.f32 %v565, %v753
      %v755 = vpop.f32.mrf.mxu0
      %756 = vmatprep.mubr.bf16.mxu0 0
      %757 = vmatmul.mubr.bf16.gmra.mxu0 %v617
      %v758 = vpop.f32.mrf.mxu0
      %v759 = vadd.f32 %v565, %v758
      %v760 = vpop.f32.mrf.mxu0
      %v761 = vpop.f32.mrf.mxu0
      %v762 = vadd.f32 %v565, %v761
      %v763 = vpop.f32.mrf.mxu0
      %764 = vmatprep.mubr.bf16.mxu0 0
      %765 = vmatmul.mubr.bf16.gmra.mxu0 %v620
      %v766 = vpop.f32.mrf.mxu0
      %v767 = vadd.f32 %v565, %v766
      %v768 = vpop.f32.mrf.mxu0
      %v769 = vpop.f32.mrf.mxu0
      %v770 = vadd.f32 %v565, %v769
      %v771 = vpop.f32.mrf.mxu0
      %772 = vmatprep.mubr.bf16.mxu0 0
      %773 = vmatmul.mubr.bf16.gmra.mxu0 %v623
      %v774 = vpop.f32.mrf.mxu0
      %v775 = vadd.f32 %v565, %v774
      %v776 = vpop.f32.mrf.mxu0
      %v777 = vpop.f32.mrf.mxu0
      %v778 = vadd.f32 %v565, %v777
      %v779 = vpop.f32.mrf.mxu0
      %780 = vmatprep.mubr.bf16.mxu0 0
      %781 = vmatmul.mubr.bf16.gmra.mxu0 %v626
      %v782 = vpop.f32.mrf.mxu0
      %v783 = vadd.f32 %v565, %v782
      %v784 = vpop.f32.mrf.mxu0
      %v785 = vpop.f32.mrf.mxu0
      %v786 = vadd.f32 %v565, %v785
      %v787 = vpop.f32.mrf.mxu0
      %788 = vdwg.mxu0
      %vm789 = vcmp.gt.f32.partialorder %v663, 0.0
      %vm790 = vcmp.gt.f32.partialorder %v666, 0.0
      %vm791 = vcmp.gt.f32.partialorder %v671, 0.0
      %vm792 = vcmp.gt.f32.partialorder %v674, 0.0
      %vm793 = vcmp.gt.f32.partialorder %v679, 0.0
      %vm794 = vcmp.gt.f32.partialorder %v682, 0.0
      %vm795 = vcmp.gt.f32.partialorder %v687, 0.0
      %vm796 = vcmp.gt.f32.partialorder %v690, 0.0
      %vm797 = vcmp.gt.f32.partialorder %v695, 0.0
      %vm798 = vcmp.gt.f32.partialorder %v698, 0.0
      %vm799 = vcmp.gt.f32.partialorder %v703, 0.0
      %vm800 = vcmp.gt.f32.partialorder %v706, 0.0
      %vm801 = vcmp.gt.f32.partialorder %v711, 0.0
      %vm802 = vcmp.gt.f32.partialorder %v714, 0.0
      %vm803 = vcmp.gt.f32.partialorder %v719, 0.0
      %vm804 = vcmp.gt.f32.partialorder %v722, 0.0
      %vm805 = vcmp.gt.f32.partialorder %v727, 0.0
      %vm806 = vcmp.gt.f32.partialorder %v730, 0.0
      %vm807 = vcmp.gt.f32.partialorder %v735, 0.0
      %vm808 = vcmp.gt.f32.partialorder %v738, 0.0
      %vm809 = vcmp.gt.f32.partialorder %v743, 0.0
      %vm810 = vcmp.gt.f32.partialorder %v746, 0.0
      %vm811 = vcmp.gt.f32.partialorder %v751, 0.0
      %vm812 = vcmp.gt.f32.partialorder %v754, 0.0
      %vm813 = vcmp.gt.f32.partialorder %v759, 0.0
      %vm814 = vcmp.gt.f32.partialorder %v762, 0.0
      %vm815 = vcmp.gt.f32.partialorder %v767, 0.0
      %vm816 = vcmp.gt.f32.partialorder %v770, 0.0
      %vm817 = vcmp.gt.f32.partialorder %v775, 0.0
      %vm818 = vcmp.gt.f32.partialorder %v778, 0.0
      %vm819 = vcmp.gt.f32.partialorder %v783, 0.0
      %vm820 = vcmp.gt.f32.partialorder %v786, 0.0
      %v821 = vmul.f32 %v663, 0.01
      %v822 = vmul.f32 %v666, 0.01
      %v823 = vmul.f32 %v671, 0.01
      %v824 = vmul.f32 %v674, 0.01
      %v825 = vmul.f32 %v679, 0.01
      %v826 = vmul.f32 %v682, 0.01
      %v827 = vmul.f32 %v687, 0.01
      %v828 = vmul.f32 %v690, 0.01
      %v829 = vmul.f32 %v695, 0.01
      %v830 = vmul.f32 %v698, 0.01
      %v831 = vmul.f32 %v703, 0.01
      %v832 = vmul.f32 %v706, 0.01
      %v833 = vmul.f32 %v711, 0.01
      %v834 = vmul.f32 %v714, 0.01
      %v835 = vmul.f32 %v719, 0.01
      %v836 = vmul.f32 %v722, 0.01
      %v837 = vmul.f32 %v727, 0.01
      %v838 = vmul.f32 %v730, 0.01
      %v839 = vmul.f32 %v735, 0.01
      %v840 = vmul.f32 %v738, 0.01
      %v841 = vmul.f32 %v743, 0.01
      %v842 = vmul.f32 %v746, 0.01
      %v843 = vmul.f32 %v751, 0.01
      %v844 = vmul.f32 %v754, 0.01
      %v845 = vmul.f32 %v759, 0.01
      %v846 = vmul.f32 %v762, 0.01
      %v847 = vmul.f32 %v767, 0.01
      %v848 = vmul.f32 %v770, 0.01
      %v849 = vmul.f32 %v775, 0.01
      %v850 = vmul.f32 %v778, 0.01
      %v851 = vmul.f32 %v783, 0.01
      %v852 = vmul.f32 %v786, 0.01
      %v853 = vsel %vm789, %v663, %v821
      %v854 = vsel %vm790, %v666, %v822
      %v855 = vsel %vm791, %v671, %v823
      %v856 = vsel %vm792, %v674, %v824
      %v857 = vsel %vm793, %v679, %v825
      %v858 = vsel %vm794, %v682, %v826
      %v859 = vsel %vm795, %v687, %v827
      %v860 = vsel %vm796, %v690, %v828
      %v861 = vsel %vm797, %v695, %v829
      %v862 = vsel %vm798, %v698, %v830
      %v863 = vsel %vm799, %v703, %v831
      %v864 = vsel %vm800, %v706, %v832
      %v865 = vsel %vm801, %v711, %v833
      %v866 = vsel %vm802, %v714, %v834
      %v867 = vsel %vm803, %v719, %v835
      %v868 = vsel %vm804, %v722, %v836
      %v869 = vsel %vm805, %v727, %v837
      %v870 = vsel %vm806, %v730, %v838
      %v871 = vsel %vm807, %v735, %v839
      %v872 = vsel %vm808, %v738, %v840
      %v873 = vsel %vm809, %v743, %v841
      %v874 = vsel %vm810, %v746, %v842
      %v875 = vsel %vm811, %v751, %v843
      %v876 = vsel %vm812, %v754, %v844
      %v877 = vsel %vm813, %v759, %v845
      %v878 = vsel %vm814, %v762, %v846
      %v879 = vsel %vm815, %v767, %v847
      %v880 = vsel %vm816, %v770, %v848
      %v881 = vsel %vm817, %v775, %v849
      %v882 = vsel %vm818, %v778, %v850
      %v883 = vsel %vm819, %v783, %v851
      %v884 = vsel %vm820, %v786, %v852
      %v885 = vpack.c.bf16 %v854, %v853
      %v886 = vpack.c.bf16 %v856, %v855
      %v887 = vpack.c.bf16 %v858, %v857
      %v888 = vpack.c.bf16 %v860, %v859
      %v889 = vpack.c.bf16 %v862, %v861
      %v890 = vpack.c.bf16 %v864, %v863
      %v891 = vpack.c.bf16 %v866, %v865
      %v892 = vpack.c.bf16 %v868, %v867
      %v893 = vpack.c.bf16 %v870, %v869
      %v894 = vpack.c.bf16 %v872, %v871
      %v895 = vpack.c.bf16 %v874, %v873
      %v896 = vpack.c.bf16 %v876, %v875
      %v897 = vpack.c.bf16 %v878, %v877
      %v898 = vpack.c.bf16 %v880, %v879
      %v899 = vpack.c.bf16 %v882, %v881
      %v900 = vpack.c.bf16 %v884, %v883
      %v901 = vld [vmem:[%s3] sm:$0xf]
      %v902 = vld [vmem:[%s3 + $0x4] sm:$0xf]
      %v903 = vld [vmem:[%s3 + $0x8] sm:$0xf]
      %v904 = vld [vmem:[%s3 + $0xc] sm:$0xf]
      %v905 = vld [vmem:[%s3 + $0x10] sm:$0xf]
      %v906 = vld [vmem:[%s3 + $0x14] sm:$0xf]
      %v907 = vld [vmem:[%s3 + $0x18] sm:$0xf]
      %v908 = vld [vmem:[%s3 + $0x1c] sm:$0xf]
      %v909 = vld [vmem:[%s3 + $0x20] sm:$0xf]
      %v910 = vld [vmem:[%s3 + $0x24] sm:$0xf]
      %v911 = vld [vmem:[%s3 + $0x28] sm:$0xf]
      %v912 = vld [vmem:[%s3 + $0x2c] sm:$0xf]
      %v913 = vld [vmem:[%s3 + $0x30] sm:$0xf]
      %v914 = vld [vmem:[%s3 + $0x34] sm:$0xf]
      %v915 = vld [vmem:[%s3 + $0x38] sm:$0xf]
      %v916 = vld [vmem:[%s3 + $0x3c] sm:$0xf]
      %v918 = vlaneseq
      %v919 = vshrl.u32 %v918, 7
      %v920 = vsub.s32 0, %v919
      %v921 = vrot.slane %v500, %v920
      %v939 = vunpack.c.l.b16 %v901
      %v940 = vunpack.c.l.b16 %v902
      %v941 = vunpack.c.l.b16 %v903
      %v942 = vunpack.c.l.b16 %v904
      %v943 = vunpack.c.l.b16 %v905
      %v944 = vunpack.c.l.b16 %v906
      %v945 = vunpack.c.l.b16 %v907
      %v946 = vunpack.c.l.b16 %v908
      %v947 = vunpack.c.l.b16 %v909
      %v948 = vunpack.c.l.b16 %v910
      %v949 = vunpack.c.l.b16 %v911
      %v950 = vunpack.c.l.b16 %v912
      %v951 = vunpack.c.l.b16 %v913
      %v952 = vunpack.c.l.b16 %v914
      %v953 = vunpack.c.l.b16 %v915
      %v954 = vunpack.c.l.b16 %v916
      %v955 = vpack.c.b16 %v940, %v939
      %v956 = vpack.c.b16 %v942, %v941
      %v957 = vpack.c.b16 %v944, %v943
      %v958 = vpack.c.b16 %v946, %v945
      %v959 = vpack.c.b16 %v948, %v947
      %v960 = vpack.c.b16 %v950, %v949
      %v961 = vpack.c.b16 %v952, %v951
      %v962 = vpack.c.b16 %v954, %v953
      %971 = vmatprep.subr.bf16.mxu0 0
      %972 = vmatpush1.bf16.msra.mxu0 %v962
      %973 = vmatprep.subr.bf16.mxu0 0
      %974 = vmatpush1.bf16.msra.mxu0 %v961
      %975 = vmatprep.subr.bf16.mxu0 0
      %976 = vmatpush1.bf16.msra.mxu0 %v960
      %977 = vmatprep.subr.bf16.mxu0 0
      %978 = vmatpush1.bf16.msra.mxu0 %v959
      %979 = vmatprep.subr.bf16.mxu0 0
      %980 = vmatpush1.bf16.msra.mxu0 %v958
      %981 = vmatprep.subr.bf16.mxu0 0
      %982 = vmatpush1.bf16.msra.mxu0 %v957
      %983 = vmatprep.subr.bf16.mxu0 0
      %984 = vmatpush1.bf16.msra.mxu0 %v956
      %985 = vmatprep.subr.bf16.mxu0 0
      %986 = vmatpush1.bf16.msra.mxu0 %v955
      %987 = vmatprep.subr.bf16.mxu0 0
      %988 = vmatpush2.bf16.msra.mxu0 0
      %989 = vmatprep.subr.bf16.mxu0 0
      %990 = vmatpush2.bf16.msra.mxu0 0
      %991 = vmatprep.subr.bf16.mxu0 0
      %992 = vmatpush2.bf16.msra.mxu0 0
      %993 = vmatprep.subr.bf16.mxu0 0
      %994 = vmatpush2.bf16.msra.mxu0 0
      %995 = vmatprep.subr.bf16.mxu0 0
      %996 = vmatpush2.bf16.msra.mxu0 0
      %997 = vmatprep.subr.bf16.mxu0 0
      %998 = vmatpush2.bf16.msra.mxu0 0
      %999 = vmatprep.subr.bf16.mxu0 0
      %1000 = vmatpush2.bf16.msra.mxu0 0
      %1001 = vmatprep.subr.bf16.mxu0 0
      %1002 = vmatpush2.bf16.msra.mxu0 0
      %1003 = vmatprep.mubr.bf16.mxu0 0
      %1004 = vmatmul.mubr.bf16.gmra.mxu0 %v885
      %v1005 = vpop.f32.mrf.mxu0
      %v1006 = vadd.f32 %v921, %v1005
      %v1007 = vpop.f32.mrf.mxu0
      %v1008 = vpop.f32.mrf.mxu0
      %v1009 = vadd.f32 %v921, %v1008
      %v1010 = vpop.f32.mrf.mxu0
      %1011 = vmatprep.mubr.bf16.mxu0 0
      %1012 = vmatmul.mubr.bf16.gmra.mxu0 %v886
      %v1013 = vpop.f32.mrf.mxu0
      %v1014 = vadd.f32 %v921, %v1013
      %v1015 = vpop.f32.mrf.mxu0
      %v1016 = vpop.f32.mrf.mxu0
      %v1017 = vadd.f32 %v921, %v1016
      %v1018 = vpop.f32.mrf.mxu0
      %1019 = vmatprep.mubr.bf16.mxu0 0
      %1020 = vmatmul.mubr.bf16.gmra.mxu0 %v887
      %v1021 = vpop.f32.mrf.mxu0
      %v1022 = vadd.f32 %v921, %v1021
      %v1023 = vpop.f32.mrf.mxu0
      %v1024 = vpop.f32.mrf.mxu0
      %v1025 = vadd.f32 %v921, %v1024
      %v1026 = vpop.f32.mrf.mxu0
      %1027 = vmatprep.mubr.bf16.mxu0 0
      %1028 = vmatmul.mubr.bf16.gmra.mxu0 %v888
      %v1029 = vpop.f32.mrf.mxu0
      %v1030 = vadd.f32 %v921, %v1029
      %v1031 = vpop.f32.mrf.mxu0
      %v1032 = vpop.f32.mrf.mxu0
      %v1033 = vadd.f32 %v921, %v1032
      %v1034 = vpop.f32.mrf.mxu0
      %1035 = vmatprep.mubr.bf16.mxu0 0
      %1036 = vmatmul.mubr.bf16.gmra.mxu0 %v889
      %v1037 = vpop.f32.mrf.mxu0
      %v1038 = vadd.f32 %v921, %v1037
      %v1039 = vpop.f32.mrf.mxu0
      %v1040 = vpop.f32.mrf.mxu0
      %v1041 = vadd.f32 %v921, %v1040
      %v1042 = vpop.f32.mrf.mxu0
      %1043 = vmatprep.mubr.bf16.mxu0 0
      %1044 = vmatmul.mubr.bf16.gmra.mxu0 %v890
      %v1045 = vpop.f32.mrf.mxu0
      %v1046 = vadd.f32 %v921, %v1045
      %v1047 = vpop.f32.mrf.mxu0
      %v1048 = vpop.f32.mrf.mxu0
      %v1049 = vadd.f32 %v921, %v1048
      %v1050 = vpop.f32.mrf.mxu0
      %1051 = vmatprep.mubr.bf16.mxu0 0
      %1052 = vmatmul.mubr.bf16.gmra.mxu0 %v891
      %v1053 = vpop.f32.mrf.mxu0
      %v1054 = vadd.f32 %v921, %v1053
      %v1055 = vpop.f32.mrf.mxu0
      %v1056 = vpop.f32.mrf.mxu0
      %v1057 = vadd.f32 %v921, %v1056
      %v1058 = vpop.f32.mrf.mxu0
      %1059 = vmatprep.mubr.bf16.mxu0 0
      %1060 = vmatmul.mubr.bf16.gmra.mxu0 %v892
      %v1061 = vpop.f32.mrf.mxu0
      %v1062 = vadd.f32 %v921, %v1061
      %v1063 = vpop.f32.mrf.mxu0
      %v1064 = vpop.f32.mrf.mxu0
      %v1065 = vadd.f32 %v921, %v1064
      %v1066 = vpop.f32.mrf.mxu0
      %1067 = vmatprep.mubr.bf16.mxu0 0
      %1068 = vmatmul.mubr.bf16.gmra.mxu0 %v893
      %v1069 = vpop.f32.mrf.mxu0
      %v1070 = vadd.f32 %v921, %v1069
      %v1071 = vpop.f32.mrf.mxu0
      %v1072 = vpop.f32.mrf.mxu0
      %v1073 = vadd.f32 %v921, %v1072
      %v1074 = vpop.f32.mrf.mxu0
      %1075 = vmatprep.mubr.bf16.mxu0 0
      %1076 = vmatmul.mubr.bf16.gmra.mxu0 %v894
      %v1077 = vpop.f32.mrf.mxu0
      %v1078 = vadd.f32 %v921, %v1077
      %v1079 = vpop.f32.mrf.mxu0
      %v1080 = vpop.f32.mrf.mxu0
      %v1081 = vadd.f32 %v921, %v1080
      %v1082 = vpop.f32.mrf.mxu0
      %1083 = vmatprep.mubr.bf16.mxu0 0
      %1084 = vmatmul.mubr.bf16.gmra.mxu0 %v895
      %v1085 = vpop.f32.mrf.mxu0
      %v1086 = vadd.f32 %v921, %v1085
      %v1087 = vpop.f32.mrf.mxu0
      %v1088 = vpop.f32.mrf.mxu0
      %v1089 = vadd.f32 %v921, %v1088
      %v1090 = vpop.f32.mrf.mxu0
      %1091 = vmatprep.mubr.bf16.mxu0 0
      %1092 = vmatmul.mubr.bf16.gmra.mxu0 %v896
      %v1093 = vpop.f32.mrf.mxu0
      %v1094 = vadd.f32 %v921, %v1093
      %v1095 = vpop.f32.mrf.mxu0
      %v1096 = vpop.f32.mrf.mxu0
      %v1097 = vadd.f32 %v921, %v1096
      %v1098 = vpop.f32.mrf.mxu0
      %1099 = vmatprep.mubr.bf16.mxu0 0
      %1100 = vmatmul.mubr.bf16.gmra.mxu0 %v897
      %v1101 = vpop.f32.mrf.mxu0
      %v1102 = vadd.f32 %v921, %v1101
      %v1103 = vpop.f32.mrf.mxu0
      %v1104 = vpop.f32.mrf.mxu0
      %v1105 = vadd.f32 %v921, %v1104
      %v1106 = vpop.f32.mrf.mxu0
      %1107 = vmatprep.mubr.bf16.mxu0 0
      %1108 = vmatmul.mubr.bf16.gmra.mxu0 %v898
      %v1109 = vpop.f32.mrf.mxu0
      %v1110 = vadd.f32 %v921, %v1109
      %v1111 = vpop.f32.mrf.mxu0
      %v1112 = vpop.f32.mrf.mxu0
      %v1113 = vadd.f32 %v921, %v1112
      %v1114 = vpop.f32.mrf.mxu0
      %1115 = vmatprep.mubr.bf16.mxu0 0
      %1116 = vmatmul.mubr.bf16.gmra.mxu0 %v899
      %v1117 = vpop.f32.mrf.mxu0
      %v1118 = vadd.f32 %v921, %v1117
      %v1119 = vpop.f32.mrf.mxu0
      %v1120 = vpop.f32.mrf.mxu0
      %v1121 = vadd.f32 %v921, %v1120
      %v1122 = vpop.f32.mrf.mxu0
      %1123 = vmatprep.mubr.bf16.mxu0 0
      %1124 = vmatmul.mubr.bf16.gmra.mxu0 %v900
      %v1125 = vpop.f32.mrf.mxu0
      %v1126 = vadd.f32 %v921, %v1125
      %v1127 = vpop.f32.mrf.mxu0
      %v1128 = vpop.f32.mrf.mxu0
      %v1129 = vadd.f32 %v921, %v1128
      %v1130 = vpop.f32.mrf.mxu0
      %1131 = vdwg.mxu0
      %vm1132 = vcmp.gt.f32.partialorder %v1006, 0.0
      %vm1133 = vcmp.gt.f32.partialorder %v1009, 0.0
      %vm1134 = vcmp.gt.f32.partialorder %v1014, 0.0
      %vm1135 = vcmp.gt.f32.partialorder %v1017, 0.0
      %vm1136 = vcmp.gt.f32.partialorder %v1022, 0.0
      %vm1137 = vcmp.gt.f32.partialorder %v1025, 0.0
      %vm1138 = vcmp.gt.f32.partialorder %v1030, 0.0
      %vm1139 = vcmp.gt.f32.partialorder %v1033, 0.0
      %vm1140 = vcmp.gt.f32.partialorder %v1038, 0.0
      %vm1141 = vcmp.gt.f32.partialorder %v1041, 0.0
      %vm1142 = vcmp.gt.f32.partialorder %v1046, 0.0
      %vm1143 = vcmp.gt.f32.partialorder %v1049, 0.0
      %vm1144 = vcmp.gt.f32.partialorder %v1054, 0.0
      %vm1145 = vcmp.gt.f32.partialorder %v1057, 0.0
      %vm1146 = vcmp.gt.f32.partialorder %v1062, 0.0
      %vm1147 = vcmp.gt.f32.partialorder %v1065, 0.0
      %vm1148 = vcmp.gt.f32.partialorder %v1070, 0.0
      %vm1149 = vcmp.gt.f32.partialorder %v1073, 0.0
      %vm1150 = vcmp.gt.f32.partialorder %v1078, 0.0
      %vm1151 = vcmp.gt.f32.partialorder %v1081, 0.0
      %vm1152 = vcmp.gt.f32.partialorder %v1086, 0.0
      %vm1153 = vcmp.gt.f32.partialorder %v1089, 0.0
      %vm1154 = vcmp.gt.f32.partialorder %v1094, 0.0
      %vm1155 = vcmp.gt.f32.partialorder %v1097, 0.0
      %vm1156 = vcmp.gt.f32.partialorder %v1102, 0.0
      %vm1157 = vcmp.gt.f32.partialorder %v1105, 0.0
      %vm1158 = vcmp.gt.f32.partialorder %v1110, 0.0
      %vm1159 = vcmp.gt.f32.partialorder %v1113, 0.0
      %vm1160 = vcmp.gt.f32.partialorder %v1118, 0.0
      %vm1161 = vcmp.gt.f32.partialorder %v1121, 0.0
      %vm1162 = vcmp.gt.f32.partialorder %v1126, 0.0
      %vm1163 = vcmp.gt.f32.partialorder %v1129, 0.0
      %v1164 = vmul.f32 %v1006, 0.01
      %v1165 = vmul.f32 %v1009, 0.01
      %v1166 = vmul.f32 %v1014, 0.01
      %v1167 = vmul.f32 %v1017, 0.01
      %v1168 = vmul.f32 %v1022, 0.01
      %v1169 = vmul.f32 %v1025, 0.01
      %v1170 = vmul.f32 %v1030, 0.01
      %v1171 = vmul.f32 %v1033, 0.01
      %v1172 = vmul.f32 %v1038, 0.01
      %v1173 = vmul.f32 %v1041, 0.01
      %v1174 = vmul.f32 %v1046, 0.01
      %v1175 = vmul.f32 %v1049, 0.01
      %v1176 = vmul.f32 %v1054, 0.01
      %v1177 = vmul.f32 %v1057, 0.01
      %v1178 = vmul.f32 %v1062, 0.01
      %v1179 = vmul.f32 %v1065, 0.01
      %v1180 = vmul.f32 %v1070, 0.01
      %v1181 = vmul.f32 %v1073, 0.01
      %v1182 = vmul.f32 %v1078, 0.01
      %v1183 = vmul.f32 %v1081, 0.01
      %v1184 = vmul.f32 %v1086, 0.01
      %v1185 = vmul.f32 %v1089, 0.01
      %v1186 = vmul.f32 %v1094, 0.01
      %v1187 = vmul.f32 %v1097, 0.01
      %v1188 = vmul.f32 %v1102, 0.01
      %v1189 = vmul.f32 %v1105, 0.01
      %v1190 = vmul.f32 %v1110, 0.01
      %v1191 = vmul.f32 %v1113, 0.01
      %v1192 = vmul.f32 %v1118, 0.01
      %v1193 = vmul.f32 %v1121, 0.01
      %v1194 = vmul.f32 %v1126, 0.01
      %v1195 = vmul.f32 %v1129, 0.01
      %v1196 = vsel %vm1132, %v1006, %v1164
      %v1197 = vsel %vm1133, %v1009, %v1165
      %v1198 = vsel %vm1134, %v1014, %v1166
      %v1199 = vsel %vm1135, %v1017, %v1167
      %v1200 = vsel %vm1136, %v1022, %v1168
      %v1201 = vsel %vm1137, %v1025, %v1169
      %v1202 = vsel %vm1138, %v1030, %v1170
      %v1203 = vsel %vm1139, %v1033, %v1171
      %v1204 = vsel %vm1140, %v1038, %v1172
      %v1205 = vsel %vm1141, %v1041, %v1173
      %v1206 = vsel %vm1142, %v1046, %v1174
      %v1207 = vsel %vm1143, %v1049, %v1175
      %v1208 = vsel %vm1144, %v1054, %v1176
      %v1209 = vsel %vm1145, %v1057, %v1177
      %v1210 = vsel %vm1146, %v1062, %v1178
      %v1211 = vsel %vm1147, %v1065, %v1179
      %v1212 = vsel %vm1148, %v1070, %v1180
      %v1213 = vsel %vm1149, %v1073, %v1181
      %v1214 = vsel %vm1150, %v1078, %v1182
      %v1215 = vsel %vm1151, %v1081, %v1183
      %v1216 = vsel %vm1152, %v1086, %v1184
      %v1217 = vsel %vm1153, %v1089, %v1185
      %v1218 = vsel %vm1154, %v1094, %v1186
      %v1219 = vsel %vm1155, %v1097, %v1187
      %v1220 = vsel %vm1156, %v1102, %v1188
      %v1221 = vsel %vm1157, %v1105, %v1189
      %v1222 = vsel %vm1158, %v1110, %v1190
      %v1223 = vsel %vm1159, %v1113, %v1191
      %v1224 = vsel %vm1160, %v1118, %v1192
      %v1225 = vsel %vm1161, %v1121, %v1193
      %v1226 = vsel %vm1162, %v1126, %v1194
      %v1227 = vsel %vm1163, %v1129, %v1195
      %v1228 = vpack.c.bf16 %v1197, %v1196
      %v1229 = vpack.c.bf16 %v1199, %v1198
      %v1230 = vpack.c.bf16 %v1201, %v1200
      %v1231 = vpack.c.bf16 %v1203, %v1202
      %v1232 = vpack.c.bf16 %v1205, %v1204
      %v1233 = vpack.c.bf16 %v1207, %v1206
      %v1234 = vpack.c.bf16 %v1209, %v1208
      %v1235 = vpack.c.bf16 %v1211, %v1210
      %v1236 = vpack.c.bf16 %v1213, %v1212
      %v1237 = vpack.c.bf16 %v1215, %v1214
      %v1238 = vpack.c.bf16 %v1217, %v1216
      %v1239 = vpack.c.bf16 %v1219, %v1218
      %v1240 = vpack.c.bf16 %v1221, %v1220
      %v1241 = vpack.c.bf16 %v1223, %v1222
      %v1242 = vpack.c.bf16 %v1225, %v1224
      %v1243 = vpack.c.bf16 %v1227, %v1226
      %v1244 = vld [vmem:[%s5] sm:$0xf]
      %v1245 = vld [vmem:[%s5 + $0x4] sm:$0xf]
      %v1246 = vld [vmem:[%s5 + $0x8] sm:$0xf]
      %v1247 = vld [vmem:[%s5 + $0xc] sm:$0xf]
      %v1248 = vld [vmem:[%s5 + $0x10] sm:$0xf]
      %v1249 = vld [vmem:[%s5 + $0x14] sm:$0xf]
      %v1250 = vld [vmem:[%s5 + $0x18] sm:$0xf]
      %v1251 = vld [vmem:[%s5 + $0x1c] sm:$0xf]
      %v1252 = vld [vmem:[%s5 + $0x20] sm:$0xf]
      %v1253 = vld [vmem:[%s5 + $0x24] sm:$0xf]
      %v1254 = vld [vmem:[%s5 + $0x28] sm:$0xf]
      %v1255 = vld [vmem:[%s5 + $0x2c] sm:$0xf]
      %v1256 = vld [vmem:[%s5 + $0x30] sm:$0xf]
      %v1257 = vld [vmem:[%s5 + $0x34] sm:$0xf]
      %v1258 = vld [vmem:[%s5 + $0x38] sm:$0xf]
      %v1259 = vld [vmem:[%s5 + $0x3c] sm:$0xf]
      %v1261 = vlaneseq
      %v1262 = vshrl.u32 %v1261, 7
      %v1263 = vsub.s32 0, %v1262
      %v1264 = vrot.slane %v501, %v1263
      %v1282 = vunpack.c.l.b16 %v1244
      %v1283 = vunpack.c.l.b16 %v1245
      %v1284 = vunpack.c.l.b16 %v1246
      %v1285 = vunpack.c.l.b16 %v1247
      %v1286 = vunpack.c.l.b16 %v1248
      %v1287 = vunpack.c.l.b16 %v1249
      %v1288 = vunpack.c.l.b16 %v1250
      %v1289 = vunpack.c.l.b16 %v1251
      %v1290 = vunpack.c.l.b16 %v1252
      %v1291 = vunpack.c.l.b16 %v1253
      %v1292 = vunpack.c.l.b16 %v1254
      %v1293 = vunpack.c.l.b16 %v1255
      %v1294 = vunpack.c.l.b16 %v1256
      %v1295 = vunpack.c.l.b16 %v1257
      %v1296 = vunpack.c.l.b16 %v1258
      %v1297 = vunpack.c.l.b16 %v1259
      %v1298 = vpack.c.b16 %v1283, %v1282
      %v1299 = vpack.c.b16 %v1285, %v1284
      %v1300 = vpack.c.b16 %v1287, %v1286
      %v1301 = vpack.c.b16 %v1289, %v1288
      %v1302 = vpack.c.b16 %v1291, %v1290
      %v1303 = vpack.c.b16 %v1293, %v1292
      %v1304 = vpack.c.b16 %v1295, %v1294
      %v1305 = vpack.c.b16 %v1297, %v1296
      %1314 = vmatprep.subr.bf16.mxu0 0
      %1315 = vmatpush1.bf16.msra.mxu0 %v1305
      %1316 = vmatprep.subr.bf16.mxu0 0
      %1317 = vmatpush1.bf16.msra.mxu0 %v1304
      %1318 = vmatprep.subr.bf16.mxu0 0
      %1319 = vmatpush1.bf16.msra.mxu0 %v1303
      %1320 = vmatprep.subr.bf16.mxu0 0
      %1321 = vmatpush1.bf16.msra.mxu0 %v1302
      %1322 = vmatprep.subr.bf16.mxu0 0
      %1323 = vmatpush1.bf16.msra.mxu0 %v1301
      %1324 = vmatprep.subr.bf16.mxu0 0
      %1325 = vmatpush1.bf16.msra.mxu0 %v1300
      %1326 = vmatprep.subr.bf16.mxu0 0
      %1327 = vmatpush1.bf16.msra.mxu0 %v1299
      %1328 = vmatprep.subr.bf16.mxu0 0
      %1329 = vmatpush1.bf16.msra.mxu0 %v1298
      %1330 = vmatprep.subr.bf16.mxu0 0
      %1331 = vmatpush2.bf16.msra.mxu0 0
      %1332 = vmatprep.subr.bf16.mxu0 0
      %1333 = vmatpush2.bf16.msra.mxu0 0
      %1334 = vmatprep.subr.bf16.mxu0 0
      %1335 = vmatpush2.bf16.msra.mxu0 0
      %1336 = vmatprep.subr.bf16.mxu0 0
      %1337 = vmatpush2.bf16.msra.mxu0 0
      %1338 = vmatprep.subr.bf16.mxu0 0
      %1339 = vmatpush2.bf16.msra.mxu0 0
      %1340 = vmatprep.subr.bf16.mxu0 0
      %1341 = vmatpush2.bf16.msra.mxu0 0
      %1342 = vmatprep.subr.bf16.mxu0 0
      %1343 = vmatpush2.bf16.msra.mxu0 0
      %1344 = vmatprep.subr.bf16.mxu0 0
      %1345 = vmatpush2.bf16.msra.mxu0 0
      %1346 = vmatprep.mubr.bf16.mxu0 0
      %1347 = vmatmul.mubr.bf16.gmra.mxu0 %v1228
      %v1348 = vpop.f32.mrf.mxu0
      %v1349 = vadd.f32 %v1264, %v1348
      %v1350 = vpop.f32.mrf.mxu0
      %v1351 = vpop.f32.mrf.mxu0
      %v1352 = vadd.f32 %v1264, %v1351
      %v1353 = vpop.f32.mrf.mxu0
      %1354 = vmatprep.mubr.bf16.mxu0 0
      %1355 = vmatmul.mubr.bf16.gmra.mxu0 %v1229
      %v1356 = vpop.f32.mrf.mxu0
      %v1357 = vadd.f32 %v1264, %v1356
      %v1358 = vpop.f32.mrf.mxu0
      %v1359 = vpop.f32.mrf.mxu0
      %v1360 = vadd.f32 %v1264, %v1359
      %v1361 = vpop.f32.mrf.mxu0
      %1362 = vmatprep.mubr.bf16.mxu0 0
      %1363 = vmatmul.mubr.bf16.gmra.mxu0 %v1230
      %v1364 = vpop.f32.mrf.mxu0
      %v1365 = vadd.f32 %v1264, %v1364
      %v1366 = vpop.f32.mrf.mxu0
      %v1367 = vpop.f32.mrf.mxu0
      %v1368 = vadd.f32 %v1264, %v1367
      %v1369 = vpop.f32.mrf.mxu0
      %1370 = vmatprep.mubr.bf16.mxu0 0
      %1371 = vmatmul.mubr.bf16.gmra.mxu0 %v1231
      %v1372 = vpop.f32.mrf.mxu0
      %v1373 = vadd.f32 %v1264, %v1372
      %v1374 = vpop.f32.mrf.mxu0
      %v1375 = vpop.f32.mrf.mxu0
      %v1376 = vadd.f32 %v1264, %v1375
      %v1377 = vpop.f32.mrf.mxu0
      %1378 = vmatprep.mubr.bf16.mxu0 0
      %1379 = vmatmul.mubr.bf16.gmra.mxu0 %v1232
      %v1380 = vpop.f32.mrf.mxu0
      %v1381 = vadd.f32 %v1264, %v1380
      %v1382 = vpop.f32.mrf.mxu0
      %v1383 = vpop.f32.mrf.mxu0
      %v1384 = vadd.f32 %v1264, %v1383
      %v1385 = vpop.f32.mrf.mxu0
      %1386 = vmatprep.mubr.bf16.mxu0 0
      %1387 = vmatmul.mubr.bf16.gmra.mxu0 %v1233
      %v1388 = vpop.f32.mrf.mxu0
      %v1389 = vadd.f32 %v1264, %v1388
      %v1390 = vpop.f32.mrf.mxu0
      %v1391 = vpop.f32.mrf.mxu0
      %v1392 = vadd.f32 %v1264, %v1391
      %v1393 = vpop.f32.mrf.mxu0
      %1394 = vmatprep.mubr.bf16.mxu0 0
      %1395 = vmatmul.mubr.bf16.gmra.mxu0 %v1234
      %v1396 = vpop.f32.mrf.mxu0
      %v1397 = vadd.f32 %v1264, %v1396
      %v1398 = vpop.f32.mrf.mxu0
      %v1399 = vpop.f32.mrf.mxu0
      %v1400 = vadd.f32 %v1264, %v1399
      %v1401 = vpop.f32.mrf.mxu0
      %1402 = vmatprep.mubr.bf16.mxu0 0
      %1403 = vmatmul.mubr.bf16.gmra.mxu0 %v1235
      %v1404 = vpop.f32.mrf.mxu0
      %v1405 = vadd.f32 %v1264, %v1404
      %v1406 = vpop.f32.mrf.mxu0
      %v1407 = vpop.f32.mrf.mxu0
      %v1408 = vadd.f32 %v1264, %v1407
      %v1409 = vpop.f32.mrf.mxu0
      %1410 = vmatprep.mubr.bf16.mxu0 0
      %1411 = vmatmul.mubr.bf16.gmra.mxu0 %v1236
      %v1412 = vpop.f32.mrf.mxu0
      %v1413 = vadd.f32 %v1264, %v1412
      %v1414 = vpop.f32.mrf.mxu0
      %v1415 = vpop.f32.mrf.mxu0
      %v1416 = vadd.f32 %v1264, %v1415
      %v1417 = vpop.f32.mrf.mxu0
      %1418 = vmatprep.mubr.bf16.mxu0 0
      %1419 = vmatmul.mubr.bf16.gmra.mxu0 %v1237
      %v1420 = vpop.f32.mrf.mxu0
      %v1421 = vadd.f32 %v1264, %v1420
      %v1422 = vpop.f32.mrf.mxu0
      %v1423 = vpop.f32.mrf.mxu0
      %v1424 = vadd.f32 %v1264, %v1423
      %v1425 = vpop.f32.mrf.mxu0
      %1426 = vmatprep.mubr.bf16.mxu0 0
      %1427 = vmatmul.mubr.bf16.gmra.mxu0 %v1238
      %v1428 = vpop.f32.mrf.mxu0
      %v1429 = vadd.f32 %v1264, %v1428
      %v1430 = vpop.f32.mrf.mxu0
      %v1431 = vpop.f32.mrf.mxu0
      %v1432 = vadd.f32 %v1264, %v1431
      %v1433 = vpop.f32.mrf.mxu0
      %1434 = vmatprep.mubr.bf16.mxu0 0
      %1435 = vmatmul.mubr.bf16.gmra.mxu0 %v1239
      %v1436 = vpop.f32.mrf.mxu0
      %v1437 = vadd.f32 %v1264, %v1436
      %v1438 = vpop.f32.mrf.mxu0
      %v1439 = vpop.f32.mrf.mxu0
      %v1440 = vadd.f32 %v1264, %v1439
      %v1441 = vpop.f32.mrf.mxu0
      %1442 = vmatprep.mubr.bf16.mxu0 0
      %1443 = vmatmul.mubr.bf16.gmra.mxu0 %v1240
      %v1444 = vpop.f32.mrf.mxu0
      %v1445 = vadd.f32 %v1264, %v1444
      %v1446 = vpop.f32.mrf.mxu0
      %v1447 = vpop.f32.mrf.mxu0
      %v1448 = vadd.f32 %v1264, %v1447
      %v1449 = vpop.f32.mrf.mxu0
      %1450 = vmatprep.mubr.bf16.mxu0 0
      %1451 = vmatmul.mubr.bf16.gmra.mxu0 %v1241
      %v1452 = vpop.f32.mrf.mxu0
      %v1453 = vadd.f32 %v1264, %v1452
      %v1454 = vpop.f32.mrf.mxu0
      %v1455 = vpop.f32.mrf.mxu0
      %v1456 = vadd.f32 %v1264, %v1455
      %v1457 = vpop.f32.mrf.mxu0
      %1458 = vmatprep.mubr.bf16.mxu0 0
      %1459 = vmatmul.mubr.bf16.gmra.mxu0 %v1242
      %v1460 = vpop.f32.mrf.mxu0
      %v1461 = vadd.f32 %v1264, %v1460
      %v1462 = vpop.f32.mrf.mxu0
      %v1463 = vpop.f32.mrf.mxu0
      %v1464 = vadd.f32 %v1264, %v1463
      %v1465 = vpop.f32.mrf.mxu0
      %1466 = vmatprep.mubr.bf16.mxu0 0
      %1467 = vmatmul.mubr.bf16.gmra.mxu0 %v1243
      %v1468 = vpop.f32.mrf.mxu0
      %v1469 = vadd.f32 %v1264, %v1468
      %v1470 = vpop.f32.mrf.mxu0
      %v1471 = vpop.f32.mrf.mxu0
      %v1472 = vadd.f32 %v1264, %v1471
      %v1473 = vpop.f32.mrf.mxu0
      %1474 = vdwg.mxu0
      %vm1475 = vcmp.gt.f32.partialorder %v1349, 0.0
      %vm1476 = vcmp.gt.f32.partialorder %v1352, 0.0
      %vm1477 = vcmp.gt.f32.partialorder %v1357, 0.0
      %vm1478 = vcmp.gt.f32.partialorder %v1360, 0.0
      %vm1479 = vcmp.gt.f32.partialorder %v1365, 0.0
      %vm1480 = vcmp.gt.f32.partialorder %v1368, 0.0
      %vm1481 = vcmp.gt.f32.partialorder %v1373, 0.0
      %vm1482 = vcmp.gt.f32.partialorder %v1376, 0.0
      %vm1483 = vcmp.gt.f32.partialorder %v1381, 0.0
      %vm1484 = vcmp.gt.f32.partialorder %v1384, 0.0
      %vm1485 = vcmp.gt.f32.partialorder %v1389, 0.0
      %vm1486 = vcmp.gt.f32.partialorder %v1392, 0.0
      %vm1487 = vcmp.gt.f32.partialorder %v1397, 0.0
      %vm1488 = vcmp.gt.f32.partialorder %v1400, 0.0
      %vm1489 = vcmp.gt.f32.partialorder %v1405, 0.0
      %vm1490 = vcmp.gt.f32.partialorder %v1408, 0.0
      %vm1491 = vcmp.gt.f32.partialorder %v1413, 0.0
      %vm1492 = vcmp.gt.f32.partialorder %v1416, 0.0
      %vm1493 = vcmp.gt.f32.partialorder %v1421, 0.0
      %vm1494 = vcmp.gt.f32.partialorder %v1424, 0.0
      %vm1495 = vcmp.gt.f32.partialorder %v1429, 0.0
      %vm1496 = vcmp.gt.f32.partialorder %v1432, 0.0
      %vm1497 = vcmp.gt.f32.partialorder %v1437, 0.0
      %vm1498 = vcmp.gt.f32.partialorder %v1440, 0.0
      %vm1499 = vcmp.gt.f32.partialorder %v1445, 0.0
      %vm1500 = vcmp.gt.f32.partialorder %v1448, 0.0
      %vm1501 = vcmp.gt.f32.partialorder %v1453, 0.0
      %vm1502 = vcmp.gt.f32.partialorder %v1456, 0.0
      %vm1503 = vcmp.gt.f32.partialorder %v1461, 0.0
      %vm1504 = vcmp.gt.f32.partialorder %v1464, 0.0
      %vm1505 = vcmp.gt.f32.partialorder %v1469, 0.0
      %vm1506 = vcmp.gt.f32.partialorder %v1472, 0.0
      %v1507 = vmul.f32 %v1349, 0.01
      %v1508 = vmul.f32 %v1352, 0.01
      %v1509 = vmul.f32 %v1357, 0.01
      %v1510 = vmul.f32 %v1360, 0.01
      %v1511 = vmul.f32 %v1365, 0.01
      %v1512 = vmul.f32 %v1368, 0.01
      %v1513 = vmul.f32 %v1373, 0.01
      %v1514 = vmul.f32 %v1376, 0.01
      %v1515 = vmul.f32 %v1381, 0.01
      %v1516 = vmul.f32 %v1384, 0.01
      %v1517 = vmul.f32 %v1389, 0.01
      %v1518 = vmul.f32 %v1392, 0.01
      %v1519 = vmul.f32 %v1397, 0.01
      %v1520 = vmul.f32 %v1400, 0.01
      %v1521 = vmul.f32 %v1405, 0.01
      %v1522 = vmul.f32 %v1408, 0.01
      %v1523 = vmul.f32 %v1413, 0.01
      %v1524 = vmul.f32 %v1416, 0.01
      %v1525 = vmul.f32 %v1421, 0.01
      %v1526 = vmul.f32 %v1424, 0.01
      %v1527 = vmul.f32 %v1429, 0.01
      %v1528 = vmul.f32 %v1432, 0.01
      %v1529 = vmul.f32 %v1437, 0.01
      %v1530 = vmul.f32 %v1440, 0.01
      %v1531 = vmul.f32 %v1445, 0.01
      %v1532 = vmul.f32 %v1448, 0.01
      %v1533 = vmul.f32 %v1453, 0.01
      %v1534 = vmul.f32 %v1456, 0.01
      %v1535 = vmul.f32 %v1461, 0.01
      %v1536 = vmul.f32 %v1464, 0.01
      %v1537 = vmul.f32 %v1469, 0.01
      %v1538 = vmul.f32 %v1472, 0.01
      %v1539 = vsel %vm1475, %v1349, %v1507
      %v1540 = vsel %vm1476, %v1352, %v1508
      %v1541 = vsel %vm1477, %v1357, %v1509
      %v1542 = vsel %vm1478, %v1360, %v1510
      %v1543 = vsel %vm1479, %v1365, %v1511
      %v1544 = vsel %vm1480, %v1368, %v1512
      %v1545 = vsel %vm1481, %v1373, %v1513
      %v1546 = vsel %vm1482, %v1376, %v1514
      %v1547 = vsel %vm1483, %v1381, %v1515
      %v1548 = vsel %vm1484, %v1384, %v1516
      %v1549 = vsel %vm1485, %v1389, %v1517
      %v1550 = vsel %vm1486, %v1392, %v1518
      %v1551 = vsel %vm1487, %v1397, %v1519
      %v1552 = vsel %vm1488, %v1400, %v1520
      %v1553 = vsel %vm1489, %v1405, %v1521
      %v1554 = vsel %vm1490, %v1408, %v1522
      %v1555 = vsel %vm1491, %v1413, %v1523
      %v1556 = vsel %vm1492, %v1416, %v1524
      %v1557 = vsel %vm1493, %v1421, %v1525
      %v1558 = vsel %vm1494, %v1424, %v1526
      %v1559 = vsel %vm1495, %v1429, %v1527
      %v1560 = vsel %vm1496, %v1432, %v1528
      %v1561 = vsel %vm1497, %v1437, %v1529
      %v1562 = vsel %vm1498, %v1440, %v1530
      %v1563 = vsel %vm1499, %v1445, %v1531
      %v1564 = vsel %vm1500, %v1448, %v1532
      %v1565 = vsel %vm1501, %v1453, %v1533
      %v1566 = vsel %vm1502, %v1456, %v1534
      %v1567 = vsel %vm1503, %v1461, %v1535
      %v1568 = vsel %vm1504, %v1464, %v1536
      %v1569 = vsel %vm1505, %v1469, %v1537
      %v1570 = vsel %vm1506, %v1472, %v1538
      %v1571 = vpack.c.bf16 %v1540, %v1539
      %v1572 = vpack.c.bf16 %v1542, %v1541
      %v1573 = vpack.c.bf16 %v1544, %v1543
      %v1574 = vpack.c.bf16 %v1546, %v1545
      %v1575 = vpack.c.bf16 %v1548, %v1547
      %v1576 = vpack.c.bf16 %v1550, %v1549
      %v1577 = vpack.c.bf16 %v1552, %v1551
      %v1578 = vpack.c.bf16 %v1554, %v1553
      %v1579 = vpack.c.bf16 %v1556, %v1555
      %v1580 = vpack.c.bf16 %v1558, %v1557
      %v1581 = vpack.c.bf16 %v1560, %v1559
      %v1582 = vpack.c.bf16 %v1562, %v1561
      %v1583 = vpack.c.bf16 %v1564, %v1563
      %v1584 = vpack.c.bf16 %v1566, %v1565
      %v1585 = vpack.c.bf16 %v1568, %v1567
      %v1586 = vpack.c.bf16 %v1570, %v1569
      %v1587 = vld [vmem:[%s7] sm:$0xf]
      %v1588 = vld [vmem:[%s7 + $0x4] sm:$0xf]
      %v1589 = vld [vmem:[%s7 + $0x8] sm:$0xf]
      %v1590 = vld [vmem:[%s7 + $0xc] sm:$0xf]
      %v1591 = vld [vmem:[%s7 + $0x10] sm:$0xf]
      %v1592 = vld [vmem:[%s7 + $0x14] sm:$0xf]
      %v1593 = vld [vmem:[%s7 + $0x18] sm:$0xf]
      %v1594 = vld [vmem:[%s7 + $0x1c] sm:$0xf]
      %v1595 = vld [vmem:[%s7 + $0x20] sm:$0xf]
      %v1596 = vld [vmem:[%s7 + $0x24] sm:$0xf]
      %v1597 = vld [vmem:[%s7 + $0x28] sm:$0xf]
      %v1598 = vld [vmem:[%s7 + $0x2c] sm:$0xf]
      %v1599 = vld [vmem:[%s7 + $0x30] sm:$0xf]
      %v1600 = vld [vmem:[%s7 + $0x34] sm:$0xf]
      %v1601 = vld [vmem:[%s7 + $0x38] sm:$0xf]
      %v1602 = vld [vmem:[%s7 + $0x3c] sm:$0xf]
      %v1604 = vlaneseq
      %v1605 = vshrl.u32 %v1604, 7
      %v1606 = vsub.s32 0, %v1605
      %v1607 = vrot.slane %v502, %v1606
      %v1625 = vunpack.c.l.b16 %v1587
      %v1626 = vunpack.c.l.b16 %v1588
      %v1627 = vunpack.c.l.b16 %v1589
      %v1628 = vunpack.c.l.b16 %v1590
      %v1629 = vunpack.c.l.b16 %v1591
      %v1630 = vunpack.c.l.b16 %v1592
      %v1631 = vunpack.c.l.b16 %v1593
      %v1632 = vunpack.c.l.b16 %v1594
      %v1633 = vunpack.c.l.b16 %v1595
      %v1634 = vunpack.c.l.b16 %v1596
      %v1635 = vunpack.c.l.b16 %v1597
      %v1636 = vunpack.c.l.b16 %v1598
      %v1637 = vunpack.c.l.b16 %v1599
      %v1638 = vunpack.c.l.b16 %v1600
      %v1639 = vunpack.c.l.b16 %v1601
      %v1640 = vunpack.c.l.b16 %v1602
      %v1641 = vpack.c.b16 %v1626, %v1625
      %v1642 = vpack.c.b16 %v1628, %v1627
      %v1643 = vpack.c.b16 %v1630, %v1629
      %v1644 = vpack.c.b16 %v1632, %v1631
      %v1645 = vpack.c.b16 %v1634, %v1633
      %v1646 = vpack.c.b16 %v1636, %v1635
      %v1647 = vpack.c.b16 %v1638, %v1637
      %v1648 = vpack.c.b16 %v1640, %v1639
      %1657 = vmatprep.subr.bf16.mxu0 0
      %1658 = vmatpush1.bf16.msra.mxu0 %v1648
      %1659 = vmatprep.subr.bf16.mxu0 0
      %1660 = vmatpush1.bf16.msra.mxu0 %v1647
      %1661 = vmatprep.subr.bf16.mxu0 0
      %1662 = vmatpush1.bf16.msra.mxu0 %v1646
      %1663 = vmatprep.subr.bf16.mxu0 0
      %1664 = vmatpush1.bf16.msra.mxu0 %v1645
      %1665 = vmatprep.subr.bf16.mxu0 0
      %1666 = vmatpush1.bf16.msra.mxu0 %v1644
      %1667 = vmatprep.subr.bf16.mxu0 0
      %1668 = vmatpush1.bf16.msra.mxu0 %v1643
      %1669 = vmatprep.subr.bf16.mxu0 0
      %1670 = vmatpush1.bf16.msra.mxu0 %v1642
      %1671 = vmatprep.subr.bf16.mxu0 0
      %1672 = vmatpush1.bf16.msra.mxu0 %v1641
      %1673 = vmatprep.subr.bf16.mxu0 0
      %1674 = vmatpush2.bf16.msra.mxu0 0
      %1675 = vmatprep.subr.bf16.mxu0 0
      %1676 = vmatpush2.bf16.msra.mxu0 0
      %1677 = vmatprep.subr.bf16.mxu0 0
      %1678 = vmatpush2.bf16.msra.mxu0 0
      %1679 = vmatprep.subr.bf16.mxu0 0
      %1680 = vmatpush2.bf16.msra.mxu0 0
      %1681 = vmatprep.subr.bf16.mxu0 0
      %1682 = vmatpush2.bf16.msra.mxu0 0
      %1683 = vmatprep.subr.bf16.mxu0 0
      %1684 = vmatpush2.bf16.msra.mxu0 0
      %1685 = vmatprep.subr.bf16.mxu0 0
      %1686 = vmatpush2.bf16.msra.mxu0 0
      %1687 = vmatprep.subr.bf16.mxu0 0
      %1688 = vmatpush2.bf16.msra.mxu0 0
      %1689 = vmatprep.mubr.bf16.mxu0 0
      %1690 = vmatmul.mubr.bf16.gmra.mxu0 %v1571
      %v1691 = vpop.f32.mrf.mxu0
      %v1692 = vadd.f32 %v1607, %v1691
      %v1693 = vpop.f32.mrf.mxu0
      %v1694 = vpop.f32.mrf.mxu0
      %v1695 = vadd.f32 %v1607, %v1694
      %v1696 = vpop.f32.mrf.mxu0
      %1697 = vmatprep.mubr.bf16.mxu0 0
      %1698 = vmatmul.mubr.bf16.gmra.mxu0 %v1572
      %v1699 = vpop.f32.mrf.mxu0
      %v1700 = vadd.f32 %v1607, %v1699
      %v1701 = vpop.f32.mrf.mxu0
      %v1702 = vpop.f32.mrf.mxu0
      %v1703 = vadd.f32 %v1607, %v1702
      %v1704 = vpop.f32.mrf.mxu0
      %1705 = vmatprep.mubr.bf16.mxu0 0
      %1706 = vmatmul.mubr.bf16.gmra.mxu0 %v1573
      %v1707 = vpop.f32.mrf.mxu0
      %v1708 = vadd.f32 %v1607, %v1707
      %v1709 = vpop.f32.mrf.mxu0
      %v1710 = vpop.f32.mrf.mxu0
      %v1711 = vadd.f32 %v1607, %v1710
      %v1712 = vpop.f32.mrf.mxu0
      %1713 = vmatprep.mubr.bf16.mxu0 0
      %1714 = vmatmul.mubr.bf16.gmra.mxu0 %v1574
      %v1715 = vpop.f32.mrf.mxu0
      %v1716 = vadd.f32 %v1607, %v1715
      %v1717 = vpop.f32.mrf.mxu0
      %v1718 = vpop.f32.mrf.mxu0
      %v1719 = vadd.f32 %v1607, %v1718
      %v1720 = vpop.f32.mrf.mxu0
      %1721 = vmatprep.mubr.bf16.mxu0 0
      %1722 = vmatmul.mubr.bf16.gmra.mxu0 %v1575
      %v1723 = vpop.f32.mrf.mxu0
      %v1724 = vadd.f32 %v1607, %v1723
      %v1725 = vpop.f32.mrf.mxu0
      %v1726 = vpop.f32.mrf.mxu0
      %v1727 = vadd.f32 %v1607, %v1726
      %v1728 = vpop.f32.mrf.mxu0
      %1729 = vmatprep.mubr.bf16.mxu0 0
      %1730 = vmatmul.mubr.bf16.gmra.mxu0 %v1576
      %v1731 = vpop.f32.mrf.mxu0
      %v1732 = vadd.f32 %v1607, %v1731
      %v1733 = vpop.f32.mrf.mxu0
      %v1734 = vpop.f32.mrf.mxu0
      %v1735 = vadd.f32 %v1607, %v1734
      %v1736 = vpop.f32.mrf.mxu0
      %1737 = vmatprep.mubr.bf16.mxu0 0
      %1738 = vmatmul.mubr.bf16.gmra.mxu0 %v1577
      %v1739 = vpop.f32.mrf.mxu0
      %v1740 = vadd.f32 %v1607, %v1739
      %v1741 = vpop.f32.mrf.mxu0
      %v1742 = vpop.f32.mrf.mxu0
      %v1743 = vadd.f32 %v1607, %v1742
      %v1744 = vpop.f32.mrf.mxu0
      %1745 = vmatprep.mubr.bf16.mxu0 0
      %1746 = vmatmul.mubr.bf16.gmra.mxu0 %v1578
      %v1747 = vpop.f32.mrf.mxu0
      %v1748 = vadd.f32 %v1607, %v1747
      %v1749 = vpop.f32.mrf.mxu0
      %v1750 = vpop.f32.mrf.mxu0
      %v1751 = vadd.f32 %v1607, %v1750
      %v1752 = vpop.f32.mrf.mxu0
      %1753 = vmatprep.mubr.bf16.mxu0 0
      %1754 = vmatmul.mubr.bf16.gmra.mxu0 %v1579
      %v1755 = vpop.f32.mrf.mxu0
      %v1756 = vadd.f32 %v1607, %v1755
      %v1757 = vpop.f32.mrf.mxu0
      %v1758 = vpop.f32.mrf.mxu0
      %v1759 = vadd.f32 %v1607, %v1758
      %v1760 = vpop.f32.mrf.mxu0
      %1761 = vmatprep.mubr.bf16.mxu0 0
      %1762 = vmatmul.mubr.bf16.gmra.mxu0 %v1580
      %v1763 = vpop.f32.mrf.mxu0
      %v1764 = vadd.f32 %v1607, %v1763
      %v1765 = vpop.f32.mrf.mxu0
      %v1766 = vpop.f32.mrf.mxu0
      %v1767 = vadd.f32 %v1607, %v1766
      %v1768 = vpop.f32.mrf.mxu0
      %1769 = vmatprep.mubr.bf16.mxu0 0
      %1770 = vmatmul.mubr.bf16.gmra.mxu0 %v1581
      %v1771 = vpop.f32.mrf.mxu0
      %v1772 = vadd.f32 %v1607, %v1771
      %v1773 = vpop.f32.mrf.mxu0
      %v1774 = vpop.f32.mrf.mxu0
      %v1775 = vadd.f32 %v1607, %v1774
      %v1776 = vpop.f32.mrf.mxu0
      %1777 = vmatprep.mubr.bf16.mxu0 0
      %1778 = vmatmul.mubr.bf16.gmra.mxu0 %v1582
      %v1779 = vpop.f32.mrf.mxu0
      %v1780 = vadd.f32 %v1607, %v1779
      %v1781 = vpop.f32.mrf.mxu0
      %v1782 = vpop.f32.mrf.mxu0
      %v1783 = vadd.f32 %v1607, %v1782
      %v1784 = vpop.f32.mrf.mxu0
      %1785 = vmatprep.mubr.bf16.mxu0 0
      %1786 = vmatmul.mubr.bf16.gmra.mxu0 %v1583
      %v1787 = vpop.f32.mrf.mxu0
      %v1788 = vadd.f32 %v1607, %v1787
      %v1789 = vpop.f32.mrf.mxu0
      %v1790 = vpop.f32.mrf.mxu0
      %v1791 = vadd.f32 %v1607, %v1790
      %v1792 = vpop.f32.mrf.mxu0
      %1793 = vmatprep.mubr.bf16.mxu0 0
      %1794 = vmatmul.mubr.bf16.gmra.mxu0 %v1584
      %v1795 = vpop.f32.mrf.mxu0
      %v1796 = vadd.f32 %v1607, %v1795
      %v1797 = vpop.f32.mrf.mxu0
      %v1798 = vpop.f32.mrf.mxu0
      %v1799 = vadd.f32 %v1607, %v1798
      %v1800 = vpop.f32.mrf.mxu0
      %1801 = vmatprep.mubr.bf16.mxu0 0
      %1802 = vmatmul.mubr.bf16.gmra.mxu0 %v1585
      %v1803 = vpop.f32.mrf.mxu0
      %v1804 = vadd.f32 %v1607, %v1803
      %v1805 = vpop.f32.mrf.mxu0
      %v1806 = vpop.f32.mrf.mxu0
      %v1807 = vadd.f32 %v1607, %v1806
      %v1808 = vpop.f32.mrf.mxu0
      %1809 = vmatprep.mubr.bf16.mxu0 0
      %1810 = vmatmul.mubr.bf16.gmra.mxu0 %v1586
      %v1811 = vpop.f32.mrf.mxu0
      %v1812 = vadd.f32 %v1607, %v1811
      %v1813 = vpop.f32.mrf.mxu0
      %v1814 = vpop.f32.mrf.mxu0
      %v1815 = vadd.f32 %v1607, %v1814
      %v1816 = vpop.f32.mrf.mxu0
      %1817 = vdwg.mxu0
      %vm1818 = vcmp.gt.f32.partialorder %v1692, 0.0
      %vm1819 = vcmp.gt.f32.partialorder %v1695, 0.0
      %vm1820 = vcmp.gt.f32.partialorder %v1700, 0.0
      %vm1821 = vcmp.gt.f32.partialorder %v1703, 0.0
      %vm1822 = vcmp.gt.f32.partialorder %v1708, 0.0
      %vm1823 = vcmp.gt.f32.partialorder %v1711, 0.0
      %vm1824 = vcmp.gt.f32.partialorder %v1716, 0.0
      %vm1825 = vcmp.gt.f32.partialorder %v1719, 0.0
      %vm1826 = vcmp.gt.f32.partialorder %v1724, 0.0
      %vm1827 = vcmp.gt.f32.partialorder %v1727, 0.0
      %vm1828 = vcmp.gt.f32.partialorder %v1732, 0.0
      %vm1829 = vcmp.gt.f32.partialorder %v1735, 0.0
      %vm1830 = vcmp.gt.f32.partialorder %v1740, 0.0
      %vm1831 = vcmp.gt.f32.partialorder %v1743, 0.0
      %vm1832 = vcmp.gt.f32.partialorder %v1748, 0.0
      %vm1833 = vcmp.gt.f32.partialorder %v1751, 0.0
      %vm1834 = vcmp.gt.f32.partialorder %v1756, 0.0
      %vm1835 = vcmp.gt.f32.partialorder %v1759, 0.0
      %vm1836 = vcmp.gt.f32.partialorder %v1764, 0.0
      %vm1837 = vcmp.gt.f32.partialorder %v1767, 0.0
      %vm1838 = vcmp.gt.f32.partialorder %v1772, 0.0
      %vm1839 = vcmp.gt.f32.partialorder %v1775, 0.0
      %vm1840 = vcmp.gt.f32.partialorder %v1780, 0.0
      %vm1841 = vcmp.gt.f32.partialorder %v1783, 0.0
      %vm1842 = vcmp.gt.f32.partialorder %v1788, 0.0
      %vm1843 = vcmp.gt.f32.partialorder %v1791, 0.0
      %vm1844 = vcmp.gt.f32.partialorder %v1796, 0.0
      %vm1845 = vcmp.gt.f32.partialorder %v1799, 0.0
      %vm1846 = vcmp.gt.f32.partialorder %v1804, 0.0
      %vm1847 = vcmp.gt.f32.partialorder %v1807, 0.0
      %vm1848 = vcmp.gt.f32.partialorder %v1812, 0.0
      %vm1849 = vcmp.gt.f32.partialorder %v1815, 0.0
      %v1850 = vmul.f32 %v1692, 0.01
      %v1851 = vmul.f32 %v1695, 0.01
      %v1852 = vmul.f32 %v1700, 0.01
      %v1853 = vmul.f32 %v1703, 0.01
      %v1854 = vmul.f32 %v1708, 0.01
      %v1855 = vmul.f32 %v1711, 0.01
      %v1856 = vmul.f32 %v1716, 0.01
      %v1857 = vmul.f32 %v1719, 0.01
      %v1858 = vmul.f32 %v1724, 0.01
      %v1859 = vmul.f32 %v1727, 0.01
      %v1860 = vmul.f32 %v1732, 0.01
      %v1861 = vmul.f32 %v1735, 0.01
      %v1862 = vmul.f32 %v1740, 0.01
      %v1863 = vmul.f32 %v1743, 0.01
      %v1864 = vmul.f32 %v1748, 0.01
      %v1865 = vmul.f32 %v1751, 0.01
      %v1866 = vmul.f32 %v1756, 0.01
      %v1867 = vmul.f32 %v1759, 0.01
      %v1868 = vmul.f32 %v1764, 0.01
      %v1869 = vmul.f32 %v1767, 0.01
      %v1870 = vmul.f32 %v1772, 0.01
      %v1871 = vmul.f32 %v1775, 0.01
      %v1872 = vmul.f32 %v1780, 0.01
      %v1873 = vmul.f32 %v1783, 0.01
      %v1874 = vmul.f32 %v1788, 0.01
      %v1875 = vmul.f32 %v1791, 0.01
      %v1876 = vmul.f32 %v1796, 0.01
      %v1877 = vmul.f32 %v1799, 0.01
      %v1878 = vmul.f32 %v1804, 0.01
      %v1879 = vmul.f32 %v1807, 0.01
      %v1880 = vmul.f32 %v1812, 0.01
      %v1881 = vmul.f32 %v1815, 0.01
      %v1882 = vsel %vm1818, %v1692, %v1850
      %v1883 = vsel %vm1819, %v1695, %v1851
      %v1884 = vsel %vm1820, %v1700, %v1852
      %v1885 = vsel %vm1821, %v1703, %v1853
      %v1886 = vsel %vm1822, %v1708, %v1854
      %v1887 = vsel %vm1823, %v1711, %v1855
      %v1888 = vsel %vm1824, %v1716, %v1856
      %v1889 = vsel %vm1825, %v1719, %v1857
      %v1890 = vsel %vm1826, %v1724, %v1858
      %v1891 = vsel %vm1827, %v1727, %v1859
      %v1892 = vsel %vm1828, %v1732, %v1860
      %v1893 = vsel %vm1829, %v1735, %v1861
      %v1894 = vsel %vm1830, %v1740, %v1862
      %v1895 = vsel %vm1831, %v1743, %v1863
      %v1896 = vsel %vm1832, %v1748, %v1864
      %v1897 = vsel %vm1833, %v1751, %v1865
      %v1898 = vsel %vm1834, %v1756, %v1866
      %v1899 = vsel %vm1835, %v1759, %v1867
      %v1900 = vsel %vm1836, %v1764, %v1868
      %v1901 = vsel %vm1837, %v1767, %v1869
      %v1902 = vsel %vm1838, %v1772, %v1870
      %v1903 = vsel %vm1839, %v1775, %v1871
      %v1904 = vsel %vm1840, %v1780, %v1872
      %v1905 = vsel %vm1841, %v1783, %v1873
      %v1906 = vsel %vm1842, %v1788, %v1874
      %v1907 = vsel %vm1843, %v1791, %v1875
      %v1908 = vsel %vm1844, %v1796, %v1876
      %v1909 = vsel %vm1845, %v1799, %v1877
      %v1910 = vsel %vm1846, %v1804, %v1878
      %v1911 = vsel %vm1847, %v1807, %v1879
      %v1912 = vsel %vm1848, %v1812, %v1880
      %v1913 = vsel %vm1849, %v1815, %v1881
      %v1914 = vpack.c.bf16 %v1883, %v1882
      %v1915 = vpack.c.bf16 %v1885, %v1884
      %v1916 = vpack.c.bf16 %v1887, %v1886
      %v1917 = vpack.c.bf16 %v1889, %v1888
      %v1918 = vpack.c.bf16 %v1891, %v1890
      %v1919 = vpack.c.bf16 %v1893, %v1892
      %v1920 = vpack.c.bf16 %v1895, %v1894
      %v1921 = vpack.c.bf16 %v1897, %v1896
      %v1922 = vpack.c.bf16 %v1899, %v1898
      %v1923 = vpack.c.bf16 %v1901, %v1900
      %v1924 = vpack.c.bf16 %v1903, %v1902
      %v1925 = vpack.c.bf16 %v1905, %v1904
      %v1926 = vpack.c.bf16 %v1907, %v1906
      %v1927 = vpack.c.bf16 %v1909, %v1908
      %v1928 = vpack.c.bf16 %v1911, %v1910
      %v1929 = vpack.c.bf16 %v1913, %v1912
      %v1930 = vld [vmem:[%s9] sm:$0xf]
      %v1931 = vld [vmem:[%s9 + $0x4] sm:$0xf]
      %v1932 = vld [vmem:[%s9 + $0x8] sm:$0xf]
      %v1933 = vld [vmem:[%s9 + $0xc] sm:$0xf]
      %v1934 = vld [vmem:[%s9 + $0x10] sm:$0xf]
      %v1935 = vld [vmem:[%s9 + $0x14] sm:$0xf]
      %v1936 = vld [vmem:[%s9 + $0x18] sm:$0xf]
      %v1937 = vld [vmem:[%s9 + $0x1c] sm:$0xf]
      %v1939 = vlaneseq
      %v1940 = vshrl.u32 %v1939, 7
      %v1941 = vsub.s32 0, %v1940
      %v1942 = vrot.slane %v503, %v1941
      %v1952 = vunpack.c.l.b16 %v1930
      %v1953 = vunpack.c.l.b16 %v1931
      %v1954 = vunpack.c.l.b16 %v1932
      %v1955 = vunpack.c.l.b16 %v1933
      %v1956 = vunpack.c.l.b16 %v1934
      %v1957 = vunpack.c.l.b16 %v1935
      %v1958 = vunpack.c.l.b16 %v1936
      %v1959 = vunpack.c.l.b16 %v1937
      %v1960 = vpack.c.b16 %v1953, %v1952
      %v1961 = vpack.c.b16 %v1955, %v1954
      %v1962 = vpack.c.b16 %v1957, %v1956
      %v1963 = vpack.c.b16 %v1959, %v1958
      %vm1968 = vcmask 523264
      %v1970 = vsel %vm1968, %v1914, 0
      %v1973 = vsel %vm1968, %v1915, 0
      %v1976 = vsel %vm1968, %v1916, 0
      %v1979 = vsel %vm1968, %v1917, 0
      %v1982 = vsel %vm1968, %v1918, 0
      %v1985 = vsel %vm1968, %v1919, 0
      %v1988 = vsel %vm1968, %v1920, 0
      %v1991 = vsel %vm1968, %v1921, 0
      %v1994 = vsel %vm1968, %v1922, 0
      %v1997 = vsel %vm1968, %v1923, 0
      %v2000 = vsel %vm1968, %v1924, 0
      %v2003 = vsel %vm1968, %v1925, 0
      %v2006 = vsel %vm1968, %v1926, 0
      %v2009 = vsel %vm1968, %v1927, 0
      %v2012 = vsel %vm1968, %v1928, 0
      %v2015 = vsel %vm1968, %v1929, 0
      %2017 = vmatprep.subr.bf16.mxu0 0
      %2018 = vmatpush1.bf16.msra.mxu0 0
      %2019 = vmatprep.subr.bf16.mxu0 0
      %2020 = vmatpush1.bf16.msra.mxu0 0
      %2021 = vmatprep.subr.bf16.mxu0 0
      %2022 = vmatpush1.bf16.msra.mxu0 0
      %2023 = vmatprep.subr.bf16.mxu0 0
      %2024 = vmatpush1.bf16.msra.mxu0 0
      %2025 = vmatprep.subr.bf16.mxu0 0
      %2026 = vmatpush1.bf16.msra.mxu0 %v1963
      %2027 = vmatprep.subr.bf16.mxu0 0
      %2028 = vmatpush1.bf16.msra.mxu0 %v1962
      %2029 = vmatprep.subr.bf16.mxu0 0
      %2030 = vmatpush1.bf16.msra.mxu0 %v1961
      %2031 = vmatprep.subr.bf16.mxu0 0
      %2032 = vmatpush1.bf16.msra.mxu0 %v1960
      %2033 = vmatprep.subr.bf16.mxu0 0
      %2034 = vmatpush2.bf16.msra.mxu0 0
      %2035 = vmatprep.subr.bf16.mxu0 0
      %2036 = vmatpush2.bf16.msra.mxu0 0
      %2037 = vmatprep.subr.bf16.mxu0 0
      %2038 = vmatpush2.bf16.msra.mxu0 0
      %2039 = vmatprep.subr.bf16.mxu0 0
      %2040 = vmatpush2.bf16.msra.mxu0 0
      %2041 = vmatprep.subr.bf16.mxu0 0
      %2042 = vmatpush2.bf16.msra.mxu0 0
      %2043 = vmatprep.subr.bf16.mxu0 0
      %2044 = vmatpush2.bf16.msra.mxu0 0
      %2045 = vmatprep.subr.bf16.mxu0 0
      %2046 = vmatpush2.bf16.msra.mxu0 0
      %2047 = vmatprep.subr.bf16.mxu0 0
      %2048 = vmatpush2.bf16.msra.mxu0 0
      %2049 = vmatprep.mubr.bf16.mxu0 0
      %2050 = vmatmul.mubr.bf16.gmra.mxu0 %v1970
      %v2051 = vpop.f32.mrf.mxu0
      %v2052 = vadd.f32 %v1942, %v2051
      %v2053 = vpop.f32.mrf.mxu0
      %v2054 = vpop.f32.mrf.mxu0
      %v2055 = vadd.f32 %v1942, %v2054
      %v2056 = vpop.f32.mrf.mxu0
      %2057 = vmatprep.mubr.bf16.mxu0 0
      %2058 = vmatmul.mubr.bf16.gmra.mxu0 %v1973
      %v2059 = vpop.f32.mrf.mxu0
      %v2060 = vadd.f32 %v1942, %v2059
      %v2061 = vpop.f32.mrf.mxu0
      %v2062 = vpop.f32.mrf.mxu0
      %v2063 = vadd.f32 %v1942, %v2062
      %v2064 = vpop.f32.mrf.mxu0
      %2065 = vmatprep.mubr.bf16.mxu0 0
      %2066 = vmatmul.mubr.bf16.gmra.mxu0 %v1976
      %v2067 = vpop.f32.mrf.mxu0
      %v2068 = vadd.f32 %v1942, %v2067
      %v2069 = vpop.f32.mrf.mxu0
      %v2070 = vpop.f32.mrf.mxu0
      %v2071 = vadd.f32 %v1942, %v2070
      %v2072 = vpop.f32.mrf.mxu0
      %2073 = vmatprep.mubr.bf16.mxu0 0
      %2074 = vmatmul.mubr.bf16.gmra.mxu0 %v1979
      %v2075 = vpop.f32.mrf.mxu0
      %v2076 = vadd.f32 %v1942, %v2075
      %v2077 = vpop.f32.mrf.mxu0
      %v2078 = vpop.f32.mrf.mxu0
      %v2079 = vadd.f32 %v1942, %v2078
      %v2080 = vpop.f32.mrf.mxu0
      %2081 = vmatprep.mubr.bf16.mxu0 0
      %2082 = vmatmul.mubr.bf16.gmra.mxu0 %v1982
      %v2083 = vpop.f32.mrf.mxu0
      %v2084 = vadd.f32 %v1942, %v2083
      %v2085 = vpop.f32.mrf.mxu0
      %v2086 = vpop.f32.mrf.mxu0
      %v2087 = vadd.f32 %v1942, %v2086
      %v2088 = vpop.f32.mrf.mxu0
      %2089 = vmatprep.mubr.bf16.mxu0 0
      %2090 = vmatmul.mubr.bf16.gmra.mxu0 %v1985
      %v2091 = vpop.f32.mrf.mxu0
      %v2092 = vadd.f32 %v1942, %v2091
      %v2093 = vpop.f32.mrf.mxu0
      %v2094 = vpop.f32.mrf.mxu0
      %v2095 = vadd.f32 %v1942, %v2094
      %v2096 = vpop.f32.mrf.mxu0
      %2097 = vmatprep.mubr.bf16.mxu0 0
      %2098 = vmatmul.mubr.bf16.gmra.mxu0 %v1988
      %v2099 = vpop.f32.mrf.mxu0
      %v2100 = vadd.f32 %v1942, %v2099
      %v2101 = vpop.f32.mrf.mxu0
      %v2102 = vpop.f32.mrf.mxu0
      %v2103 = vadd.f32 %v1942, %v2102
      %v2104 = vpop.f32.mrf.mxu0
      %2105 = vmatprep.mubr.bf16.mxu0 0
      %2106 = vmatmul.mubr.bf16.gmra.mxu0 %v1991
      %v2107 = vpop.f32.mrf.mxu0
      %v2108 = vadd.f32 %v1942, %v2107
      %v2109 = vpop.f32.mrf.mxu0
      %v2110 = vpop.f32.mrf.mxu0
      %v2111 = vadd.f32 %v1942, %v2110
      %v2112 = vpop.f32.mrf.mxu0
      %2113 = vmatprep.mubr.bf16.mxu0 0
      %2114 = vmatmul.mubr.bf16.gmra.mxu0 %v1994
      %v2115 = vpop.f32.mrf.mxu0
      %v2116 = vadd.f32 %v1942, %v2115
      %v2117 = vpop.f32.mrf.mxu0
      %v2118 = vpop.f32.mrf.mxu0
      %v2119 = vadd.f32 %v1942, %v2118
      %v2120 = vpop.f32.mrf.mxu0
      %2121 = vmatprep.mubr.bf16.mxu0 0
      %2122 = vmatmul.mubr.bf16.gmra.mxu0 %v1997
      %v2123 = vpop.f32.mrf.mxu0
      %v2124 = vadd.f32 %v1942, %v2123
      %v2125 = vpop.f32.mrf.mxu0
      %v2126 = vpop.f32.mrf.mxu0
      %v2127 = vadd.f32 %v1942, %v2126
      %v2128 = vpop.f32.mrf.mxu0
      %2129 = vmatprep.mubr.bf16.mxu0 0
      %2130 = vmatmul.mubr.bf16.gmra.mxu0 %v2000
      %v2131 = vpop.f32.mrf.mxu0
      %v2132 = vadd.f32 %v1942, %v2131
      %v2133 = vpop.f32.mrf.mxu0
      %v2134 = vpop.f32.mrf.mxu0
      %v2135 = vadd.f32 %v1942, %v2134
      %v2136 = vpop.f32.mrf.mxu0
      %2137 = vmatprep.mubr.bf16.mxu0 0
      %2138 = vmatmul.mubr.bf16.gmra.mxu0 %v2003
      %v2139 = vpop.f32.mrf.mxu0
      %v2140 = vadd.f32 %v1942, %v2139
      %v2141 = vpop.f32.mrf.mxu0
      %v2142 = vpop.f32.mrf.mxu0
      %v2143 = vadd.f32 %v1942, %v2142
      %v2144 = vpop.f32.mrf.mxu0
      %2145 = vmatprep.mubr.bf16.mxu0 0
      %2146 = vmatmul.mubr.bf16.gmra.mxu0 %v2006
      %v2147 = vpop.f32.mrf.mxu0
      %v2148 = vadd.f32 %v1942, %v2147
      %v2149 = vpop.f32.mrf.mxu0
      %v2150 = vpop.f32.mrf.mxu0
      %v2151 = vadd.f32 %v1942, %v2150
      %v2152 = vpop.f32.mrf.mxu0
      %2153 = vmatprep.mubr.bf16.mxu0 0
      %2154 = vmatmul.mubr.bf16.gmra.mxu0 %v2009
      %v2155 = vpop.f32.mrf.mxu0
      %v2156 = vadd.f32 %v1942, %v2155
      %v2157 = vpop.f32.mrf.mxu0
      %v2158 = vpop.f32.mrf.mxu0
      %v2159 = vadd.f32 %v1942, %v2158
      %v2160 = vpop.f32.mrf.mxu0
      %2161 = vmatprep.mubr.bf16.mxu0 0
      %2162 = vmatmul.mubr.bf16.gmra.mxu0 %v2012
      %v2163 = vpop.f32.mrf.mxu0
      %v2164 = vadd.f32 %v1942, %v2163
      %v2165 = vpop.f32.mrf.mxu0
      %v2166 = vpop.f32.mrf.mxu0
      %v2167 = vadd.f32 %v1942, %v2166
      %v2168 = vpop.f32.mrf.mxu0
      %2169 = vmatprep.mubr.bf16.mxu0 0
      %2170 = vmatmul.mubr.bf16.gmra.mxu0 %v2015
      %v2171 = vpop.f32.mrf.mxu0
      %v2172 = vadd.f32 %v1942, %v2171
      %v2173 = vpop.f32.mrf.mxu0
      %v2174 = vpop.f32.mrf.mxu0
      %v2175 = vadd.f32 %v1942, %v2174
      %v2176 = vpop.f32.mrf.mxu0
      %2177 = vdwg.mxu0
      %vm2178 = vcmp.gt.f32.partialorder %v2052, 0.0
      %vm2179 = vcmp.gt.f32.partialorder %v2055, 0.0
      %vm2180 = vcmp.gt.f32.partialorder %v2060, 0.0
      %vm2181 = vcmp.gt.f32.partialorder %v2063, 0.0
      %vm2182 = vcmp.gt.f32.partialorder %v2068, 0.0
      %vm2183 = vcmp.gt.f32.partialorder %v2071, 0.0
      %vm2184 = vcmp.gt.f32.partialorder %v2076, 0.0
      %vm2185 = vcmp.gt.f32.partialorder %v2079, 0.0
      %vm2186 = vcmp.gt.f32.partialorder %v2084, 0.0
      %vm2187 = vcmp.gt.f32.partialorder %v2087, 0.0
      %vm2188 = vcmp.gt.f32.partialorder %v2092, 0.0
      %vm2189 = vcmp.gt.f32.partialorder %v2095, 0.0
      %vm2190 = vcmp.gt.f32.partialorder %v2100, 0.0
      %vm2191 = vcmp.gt.f32.partialorder %v2103, 0.0
      %vm2192 = vcmp.gt.f32.partialorder %v2108, 0.0
      %vm2193 = vcmp.gt.f32.partialorder %v2111, 0.0
      %vm2194 = vcmp.gt.f32.partialorder %v2116, 0.0
      %vm2195 = vcmp.gt.f32.partialorder %v2119, 0.0
      %vm2196 = vcmp.gt.f32.partialorder %v2124, 0.0
      %vm2197 = vcmp.gt.f32.partialorder %v2127, 0.0
      %vm2198 = vcmp.gt.f32.partialorder %v2132, 0.0
      %vm2199 = vcmp.gt.f32.partialorder %v2135, 0.0
      %vm2200 = vcmp.gt.f32.partialorder %v2140, 0.0
      %vm2201 = vcmp.gt.f32.partialorder %v2143, 0.0
      %vm2202 = vcmp.gt.f32.partialorder %v2148, 0.0
      %vm2203 = vcmp.gt.f32.partialorder %v2151, 0.0
      %vm2204 = vcmp.gt.f32.partialorder %v2156, 0.0
      %vm2205 = vcmp.gt.f32.partialorder %v2159, 0.0
      %vm2206 = vcmp.gt.f32.partialorder %v2164, 0.0
      %vm2207 = vcmp.gt.f32.partialorder %v2167, 0.0
      %vm2208 = vcmp.gt.f32.partialorder %v2172, 0.0
      %vm2209 = vcmp.gt.f32.partialorder %v2175, 0.0
      %v2210 = vmul.f32 %v2052, 0.01
      %v2211 = vmul.f32 %v2055, 0.01
      %v2212 = vmul.f32 %v2060, 0.01
      %v2213 = vmul.f32 %v2063, 0.01
      %v2214 = vmul.f32 %v2068, 0.01
      %v2215 = vmul.f32 %v2071, 0.01
      %v2216 = vmul.f32 %v2076, 0.01
      %v2217 = vmul.f32 %v2079, 0.01
      %v2218 = vmul.f32 %v2084, 0.01
      %v2219 = vmul.f32 %v2087, 0.01
      %v2220 = vmul.f32 %v2092, 0.01
      %v2221 = vmul.f32 %v2095, 0.01
      %v2222 = vmul.f32 %v2100, 0.01
      %v2223 = vmul.f32 %v2103, 0.01
      %v2224 = vmul.f32 %v2108, 0.01
      %v2225 = vmul.f32 %v2111, 0.01
      %v2226 = vmul.f32 %v2116, 0.01
      %v2227 = vmul.f32 %v2119, 0.01
      %v2228 = vmul.f32 %v2124, 0.01
      %v2229 = vmul.f32 %v2127, 0.01
      %v2230 = vmul.f32 %v2132, 0.01
      %v2231 = vmul.f32 %v2135, 0.01
      %v2232 = vmul.f32 %v2140, 0.01
      %v2233 = vmul.f32 %v2143, 0.01
      %v2234 = vmul.f32 %v2148, 0.01
      %v2235 = vmul.f32 %v2151, 0.01
      %v2236 = vmul.f32 %v2156, 0.01
      %v2237 = vmul.f32 %v2159, 0.01
      %v2238 = vmul.f32 %v2164, 0.01
      %v2239 = vmul.f32 %v2167, 0.01
      %v2240 = vmul.f32 %v2172, 0.01
      %v2241 = vmul.f32 %v2175, 0.01
      %v2242 = vsel %vm2178, %v2052, %v2210
      %v2243 = vsel %vm2179, %v2055, %v2211
      %v2244 = vsel %vm2180, %v2060, %v2212
      %v2245 = vsel %vm2181, %v2063, %v2213
      %v2246 = vsel %vm2182, %v2068, %v2214
      %v2247 = vsel %vm2183, %v2071, %v2215
      %v2248 = vsel %vm2184, %v2076, %v2216
      %v2249 = vsel %vm2185, %v2079, %v2217
      %v2250 = vsel %vm2186, %v2084, %v2218
      %v2251 = vsel %vm2187, %v2087, %v2219
      %v2252 = vsel %vm2188, %v2092, %v2220
      %v2253 = vsel %vm2189, %v2095, %v2221
      %v2254 = vsel %vm2190, %v2100, %v2222
      %v2255 = vsel %vm2191, %v2103, %v2223
      %v2256 = vsel %vm2192, %v2108, %v2224
      %v2257 = vsel %vm2193, %v2111, %v2225
      %v2258 = vsel %vm2194, %v2116, %v2226
      %v2259 = vsel %vm2195, %v2119, %v2227
      %v2260 = vsel %vm2196, %v2124, %v2228
      %v2261 = vsel %vm2197, %v2127, %v2229
      %v2262 = vsel %vm2198, %v2132, %v2230
      %v2263 = vsel %vm2199, %v2135, %v2231
      %v2264 = vsel %vm2200, %v2140, %v2232
      %v2265 = vsel %vm2201, %v2143, %v2233
      %v2266 = vsel %vm2202, %v2148, %v2234
      %v2267 = vsel %vm2203, %v2151, %v2235
      %v2268 = vsel %vm2204, %v2156, %v2236
      %v2269 = vsel %vm2205, %v2159, %v2237
      %v2270 = vsel %vm2206, %v2164, %v2238
      %v2271 = vsel %vm2207, %v2167, %v2239
      %v2272 = vsel %vm2208, %v2172, %v2240
      %v2273 = vsel %vm2209, %v2175, %v2241
      %v2274 = vpack.c.bf16 %v2243, %v2242
      %v2275 = vpack.c.bf16 %v2245, %v2244
      %v2276 = vpack.c.bf16 %v2247, %v2246
      %v2277 = vpack.c.bf16 %v2249, %v2248
      %v2278 = vpack.c.bf16 %v2251, %v2250
      %v2279 = vpack.c.bf16 %v2253, %v2252
      %v2280 = vpack.c.bf16 %v2255, %v2254
      %v2281 = vpack.c.bf16 %v2257, %v2256
      %v2282 = vpack.c.bf16 %v2259, %v2258
      %v2283 = vpack.c.bf16 %v2261, %v2260
      %v2284 = vpack.c.bf16 %v2263, %v2262
      %v2285 = vpack.c.bf16 %v2265, %v2264
      %v2286 = vpack.c.bf16 %v2267, %v2266
      %v2287 = vpack.c.bf16 %v2269, %v2268
      %v2288 = vpack.c.bf16 %v2271, %v2270
      %v2289 = vpack.c.bf16 %v2273, %v2272
      %v2290 = vld [vmem:[%s11] sm:$0xf]
      %v2291 = vld [vmem:[%s11 + $0x4] sm:$0xf]
      %v2292 = vld [vmem:[%s11 + $0x8] sm:$0xf]
      %v2293 = vld [vmem:[%s11 + $0xc] sm:$0xf]
      %v2295 = vlaneseq
      %v2296 = vshrl.u32 %v2295, 7
      %v2297 = vsub.s32 0, %v2296
      %v2298 = vrot.slane %v504, %v2297
      %v2304 = vunpack.c.l.b16 %v2290
      %v2305 = vunpack.c.l.b16 %v2291
      %v2306 = vunpack.c.l.b16 %v2292
      %v2307 = vunpack.c.l.b16 %v2293
      %v2308 = vpack.c.b16 %v2305, %v2304
      %v2309 = vpack.c.b16 %v2307, %v2306
      %v2313 = vsel %vm579, %v2274, 0
      %v2316 = vsel %vm579, %v2275, 0
      %v2319 = vsel %vm579, %v2276, 0
      %v2322 = vsel %vm579, %v2277, 0
      %v2325 = vsel %vm579, %v2278, 0
      %v2328 = vsel %vm579, %v2279, 0
      %v2331 = vsel %vm579, %v2280, 0
      %v2334 = vsel %vm579, %v2281, 0
      %v2337 = vsel %vm579, %v2282, 0
      %v2340 = vsel %vm579, %v2283, 0
      %v2343 = vsel %vm579, %v2284, 0
      %v2346 = vsel %vm579, %v2285, 0
      %v2349 = vsel %vm579, %v2286, 0
      %v2352 = vsel %vm579, %v2287, 0
      %v2355 = vsel %vm579, %v2288, 0
      %v2358 = vsel %vm579, %v2289, 0
      %2360 = vmatprep.subr.bf16.mxu0 0
      %2361 = vmatpush1.bf16.msra.mxu0 0
      %2362 = vmatprep.subr.bf16.mxu0 0
      %2363 = vmatpush1.bf16.msra.mxu0 0
      %2364 = vmatprep.subr.bf16.mxu0 0
      %2365 = vmatpush1.bf16.msra.mxu0 0
      %2366 = vmatprep.subr.bf16.mxu0 0
      %2367 = vmatpush1.bf16.msra.mxu0 0
      %2368 = vmatprep.subr.bf16.mxu0 0
      %2369 = vmatpush1.bf16.msra.mxu0 0
      %2370 = vmatprep.subr.bf16.mxu0 0
      %2371 = vmatpush1.bf16.msra.mxu0 0
      %2372 = vmatprep.subr.bf16.mxu0 0
      %2373 = vmatpush1.bf16.msra.mxu0 %v2309
      %2374 = vmatprep.subr.bf16.mxu0 0
      %2375 = vmatpush1.bf16.msra.mxu0 %v2308
      %2376 = vmatprep.subr.bf16.mxu0 0
      %2377 = vmatpush2.bf16.msra.mxu0 0
      %2378 = vmatprep.subr.bf16.mxu0 0
      %2379 = vmatpush2.bf16.msra.mxu0 0
      %2380 = vmatprep.subr.bf16.mxu0 0
      %2381 = vmatpush2.bf16.msra.mxu0 0
      %2382 = vmatprep.subr.bf16.mxu0 0
      %2383 = vmatpush2.bf16.msra.mxu0 0
      %2384 = vmatprep.subr.bf16.mxu0 0
      %2385 = vmatpush2.bf16.msra.mxu0 0
      %2386 = vmatprep.subr.bf16.mxu0 0
      %2387 = vmatpush2.bf16.msra.mxu0 0
      %2388 = vmatprep.subr.bf16.mxu0 0
      %2389 = vmatpush2.bf16.msra.mxu0 0
      %2390 = vmatprep.subr.bf16.mxu0 0
      %2391 = vmatpush2.bf16.msra.mxu0 0
      %2392 = vmatprep.mubr.bf16.mxu0 0
      %2393 = vmatmul.mubr.bf16.gmra.mxu0 %v2313
      %v2394 = vpop.f32.mrf.mxu0
      %v2395 = vadd.f32 %v2298, %v2394
      %v2396 = vpop.f32.mrf.mxu0
      %v2397 = vpop.f32.mrf.mxu0
      %v2398 = vadd.f32 %v2298, %v2397
      %v2399 = vpop.f32.mrf.mxu0
      %2400 = vmatprep.mubr.bf16.mxu0 0
      %2401 = vmatmul.mubr.bf16.gmra.mxu0 %v2316
      %v2402 = vpop.f32.mrf.mxu0
      %v2403 = vadd.f32 %v2298, %v2402
      %v2404 = vpop.f32.mrf.mxu0
      %v2405 = vpop.f32.mrf.mxu0
      %v2406 = vadd.f32 %v2298, %v2405
      %v2407 = vpop.f32.mrf.mxu0
      %2408 = vmatprep.mubr.bf16.mxu0 0
      %2409 = vmatmul.mubr.bf16.gmra.mxu0 %v2319
      %v2410 = vpop.f32.mrf.mxu0
      %v2411 = vadd.f32 %v2298, %v2410
      %v2412 = vpop.f32.mrf.mxu0
      %v2413 = vpop.f32.mrf.mxu0
      %v2414 = vadd.f32 %v2298, %v2413
      %v2415 = vpop.f32.mrf.mxu0
      %2416 = vmatprep.mubr.bf16.mxu0 0
      %2417 = vmatmul.mubr.bf16.gmra.mxu0 %v2322
      %v2418 = vpop.f32.mrf.mxu0
      %v2419 = vadd.f32 %v2298, %v2418
      %v2420 = vpop.f32.mrf.mxu0
      %v2421 = vpop.f32.mrf.mxu0
      %v2422 = vadd.f32 %v2298, %v2421
      %v2423 = vpop.f32.mrf.mxu0
      %2424 = vmatprep.mubr.bf16.mxu0 0
      %2425 = vmatmul.mubr.bf16.gmra.mxu0 %v2325
      %v2426 = vpop.f32.mrf.mxu0
      %v2427 = vadd.f32 %v2298, %v2426
      %v2428 = vpop.f32.mrf.mxu0
      %v2429 = vpop.f32.mrf.mxu0
      %v2430 = vadd.f32 %v2298, %v2429
      %v2431 = vpop.f32.mrf.mxu0
      %2432 = vmatprep.mubr.bf16.mxu0 0
      %2433 = vmatmul.mubr.bf16.gmra.mxu0 %v2328
      %v2434 = vpop.f32.mrf.mxu0
      %v2435 = vadd.f32 %v2298, %v2434
      %v2436 = vpop.f32.mrf.mxu0
      %v2437 = vpop.f32.mrf.mxu0
      %v2438 = vadd.f32 %v2298, %v2437
      %v2439 = vpop.f32.mrf.mxu0
      %2440 = vmatprep.mubr.bf16.mxu0 0
      %2441 = vmatmul.mubr.bf16.gmra.mxu0 %v2331
      %v2442 = vpop.f32.mrf.mxu0
      %v2443 = vadd.f32 %v2298, %v2442
      %v2444 = vpop.f32.mrf.mxu0
      %v2445 = vpop.f32.mrf.mxu0
      %v2446 = vadd.f32 %v2298, %v2445
      %v2447 = vpop.f32.mrf.mxu0
      %2448 = vmatprep.mubr.bf16.mxu0 0
      %2449 = vmatmul.mubr.bf16.gmra.mxu0 %v2334
      %v2450 = vpop.f32.mrf.mxu0
      %v2451 = vadd.f32 %v2298, %v2450
      %v2452 = vpop.f32.mrf.mxu0
      %v2453 = vpop.f32.mrf.mxu0
      %v2454 = vadd.f32 %v2298, %v2453
      %v2455 = vpop.f32.mrf.mxu0
      %2456 = vmatprep.mubr.bf16.mxu0 0
      %2457 = vmatmul.mubr.bf16.gmra.mxu0 %v2337
      %v2458 = vpop.f32.mrf.mxu0
      %v2459 = vadd.f32 %v2298, %v2458
      %v2460 = vpop.f32.mrf.mxu0
      %v2461 = vpop.f32.mrf.mxu0
      %v2462 = vadd.f32 %v2298, %v2461
      %v2463 = vpop.f32.mrf.mxu0
      %2464 = vmatprep.mubr.bf16.mxu0 0
      %2465 = vmatmul.mubr.bf16.gmra.mxu0 %v2340
      %v2466 = vpop.f32.mrf.mxu0
      %v2467 = vadd.f32 %v2298, %v2466
      %v2468 = vpop.f32.mrf.mxu0
      %v2469 = vpop.f32.mrf.mxu0
      %v2470 = vadd.f32 %v2298, %v2469
      %v2471 = vpop.f32.mrf.mxu0
      %2472 = vmatprep.mubr.bf16.mxu0 0
      %2473 = vmatmul.mubr.bf16.gmra.mxu0 %v2343
      %v2474 = vpop.f32.mrf.mxu0
      %v2475 = vadd.f32 %v2298, %v2474
      %v2476 = vpop.f32.mrf.mxu0
      %v2477 = vpop.f32.mrf.mxu0
      %v2478 = vadd.f32 %v2298, %v2477
      %v2479 = vpop.f32.mrf.mxu0
      %2480 = vmatprep.mubr.bf16.mxu0 0
      %2481 = vmatmul.mubr.bf16.gmra.mxu0 %v2346
      %v2482 = vpop.f32.mrf.mxu0
      %v2483 = vadd.f32 %v2298, %v2482
      %v2484 = vpop.f32.mrf.mxu0
      %v2485 = vpop.f32.mrf.mxu0
      %v2486 = vadd.f32 %v2298, %v2485
      %v2487 = vpop.f32.mrf.mxu0
      %2488 = vmatprep.mubr.bf16.mxu0 0
      %2489 = vmatmul.mubr.bf16.gmra.mxu0 %v2349
      %v2490 = vpop.f32.mrf.mxu0
      %v2491 = vadd.f32 %v2298, %v2490
      %v2492 = vpop.f32.mrf.mxu0
      %v2493 = vpop.f32.mrf.mxu0
      %v2494 = vadd.f32 %v2298, %v2493
      %v2495 = vpop.f32.mrf.mxu0
      %2496 = vmatprep.mubr.bf16.mxu0 0
      %2497 = vmatmul.mubr.bf16.gmra.mxu0 %v2352
      %v2498 = vpop.f32.mrf.mxu0
      %v2499 = vadd.f32 %v2298, %v2498
      %v2500 = vpop.f32.mrf.mxu0
      %v2501 = vpop.f32.mrf.mxu0
      %v2502 = vadd.f32 %v2298, %v2501
      %v2503 = vpop.f32.mrf.mxu0
      %2504 = vmatprep.mubr.bf16.mxu0 0
      %2505 = vmatmul.mubr.bf16.gmra.mxu0 %v2355
      %v2506 = vpop.f32.mrf.mxu0
      %v2507 = vadd.f32 %v2298, %v2506
      %v2508 = vpop.f32.mrf.mxu0
      %v2509 = vpop.f32.mrf.mxu0
      %v2510 = vadd.f32 %v2298, %v2509
      %v2511 = vpop.f32.mrf.mxu0
      %2512 = vmatprep.mubr.bf16.mxu0 0
      %2513 = vmatmul.mubr.bf16.gmra.mxu0 %v2358
      %v2514 = vpop.f32.mrf.mxu0
      %v2515 = vadd.f32 %v2298, %v2514
      %v2516 = vpop.f32.mrf.mxu0
      %v2517 = vpop.f32.mrf.mxu0
      %v2518 = vadd.f32 %v2298, %v2517
      %v2519 = vpop.f32.mrf.mxu0
      %2520 = vdwg.mxu0
      %vm2521 = vcmp.gt.f32.partialorder %v2395, 0.0
      %vm2522 = vcmp.gt.f32.partialorder %v2398, 0.0
      %vm2523 = vcmp.gt.f32.partialorder %v2403, 0.0
      %vm2524 = vcmp.gt.f32.partialorder %v2406, 0.0
      %vm2525 = vcmp.gt.f32.partialorder %v2411, 0.0
      %vm2526 = vcmp.gt.f32.partialorder %v2414, 0.0
      %vm2527 = vcmp.gt.f32.partialorder %v2419, 0.0
      %vm2528 = vcmp.gt.f32.partialorder %v2422, 0.0
      %vm2529 = vcmp.gt.f32.partialorder %v2427, 0.0
      %vm2530 = vcmp.gt.f32.partialorder %v2430, 0.0
      %vm2531 = vcmp.gt.f32.partialorder %v2435, 0.0
      %vm2532 = vcmp.gt.f32.partialorder %v2438, 0.0
      %vm2533 = vcmp.gt.f32.partialorder %v2443, 0.0
      %vm2534 = vcmp.gt.f32.partialorder %v2446, 0.0
      %vm2535 = vcmp.gt.f32.partialorder %v2451, 0.0
      %vm2536 = vcmp.gt.f32.partialorder %v2454, 0.0
      %vm2537 = vcmp.gt.f32.partialorder %v2459, 0.0
      %vm2538 = vcmp.gt.f32.partialorder %v2462, 0.0
      %vm2539 = vcmp.gt.f32.partialorder %v2467, 0.0
      %vm2540 = vcmp.gt.f32.partialorder %v2470, 0.0
      %vm2541 = vcmp.gt.f32.partialorder %v2475, 0.0
      %vm2542 = vcmp.gt.f32.partialorder %v2478, 0.0
      %vm2543 = vcmp.gt.f32.partialorder %v2483, 0.0
      %vm2544 = vcmp.gt.f32.partialorder %v2486, 0.0
      %vm2545 = vcmp.gt.f32.partialorder %v2491, 0.0
      %vm2546 = vcmp.gt.f32.partialorder %v2494, 0.0
      %vm2547 = vcmp.gt.f32.partialorder %v2499, 0.0
      %vm2548 = vcmp.gt.f32.partialorder %v2502, 0.0
      %vm2549 = vcmp.gt.f32.partialorder %v2507, 0.0
      %vm2550 = vcmp.gt.f32.partialorder %v2510, 0.0
      %vm2551 = vcmp.gt.f32.partialorder %v2515, 0.0
      %vm2552 = vcmp.gt.f32.partialorder %v2518, 0.0
      %v2553 = vmul.f32 %v2395, 0.01
      %v2554 = vmul.f32 %v2398, 0.01
      %v2555 = vmul.f32 %v2403, 0.01
      %v2556 = vmul.f32 %v2406, 0.01
      %v2557 = vmul.f32 %v2411, 0.01
      %v2558 = vmul.f32 %v2414, 0.01
      %v2559 = vmul.f32 %v2419, 0.01
      %v2560 = vmul.f32 %v2422, 0.01
      %v2561 = vmul.f32 %v2427, 0.01
      %v2562 = vmul.f32 %v2430, 0.01
      %v2563 = vmul.f32 %v2435, 0.01
      %v2564 = vmul.f32 %v2438, 0.01
      %v2565 = vmul.f32 %v2443, 0.01
      %v2566 = vmul.f32 %v2446, 0.01
      %v2567 = vmul.f32 %v2451, 0.01
      %v2568 = vmul.f32 %v2454, 0.01
      %v2569 = vmul.f32 %v2459, 0.01
      %v2570 = vmul.f32 %v2462, 0.01
      %v2571 = vmul.f32 %v2467, 0.01
      %v2572 = vmul.f32 %v2470, 0.01
      %v2573 = vmul.f32 %v2475, 0.01
      %v2574 = vmul.f32 %v2478, 0.01
      %v2575 = vmul.f32 %v2483, 0.01
      %v2576 = vmul.f32 %v2486, 0.01
      %v2577 = vmul.f32 %v2491, 0.01
      %v2578 = vmul.f32 %v2494, 0.01
      %v2579 = vmul.f32 %v2499, 0.01
      %v2580 = vmul.f32 %v2502, 0.01
      %v2581 = vmul.f32 %v2507, 0.01
      %v2582 = vmul.f32 %v2510, 0.01
      %v2583 = vmul.f32 %v2515, 0.01
      %v2584 = vmul.f32 %v2518, 0.01
      %v2585 = vsel %vm2521, %v2395, %v2553
      %v2586 = vsel %vm2522, %v2398, %v2554
      %v2587 = vsel %vm2523, %v2403, %v2555
      %v2588 = vsel %vm2524, %v2406, %v2556
      %v2589 = vsel %vm2525, %v2411, %v2557
      %v2590 = vsel %vm2526, %v2414, %v2558
      %v2591 = vsel %vm2527, %v2419, %v2559
      %v2592 = vsel %vm2528, %v2422, %v2560
      %v2593 = vsel %vm2529, %v2427, %v2561
      %v2594 = vsel %vm2530, %v2430, %v2562
      %v2595 = vsel %vm2531, %v2435, %v2563
      %v2596 = vsel %vm2532, %v2438, %v2564
      %v2597 = vsel %vm2533, %v2443, %v2565
      %v2598 = vsel %vm2534, %v2446, %v2566
      %v2599 = vsel %vm2535, %v2451, %v2567
      %v2600 = vsel %vm2536, %v2454, %v2568
      %v2601 = vsel %vm2537, %v2459, %v2569
      %v2602 = vsel %vm2538, %v2462, %v2570
      %v2603 = vsel %vm2539, %v2467, %v2571
      %v2604 = vsel %vm2540, %v2470, %v2572
      %v2605 = vsel %vm2541, %v2475, %v2573
      %v2606 = vsel %vm2542, %v2478, %v2574
      %v2607 = vsel %vm2543, %v2483, %v2575
      %v2608 = vsel %vm2544, %v2486, %v2576
      %v2609 = vsel %vm2545, %v2491, %v2577
      %v2610 = vsel %vm2546, %v2494, %v2578
      %v2611 = vsel %vm2547, %v2499, %v2579
      %v2612 = vsel %vm2548, %v2502, %v2580
      %v2613 = vsel %vm2549, %v2507, %v2581
      %v2614 = vsel %vm2550, %v2510, %v2582
      %v2615 = vsel %vm2551, %v2515, %v2583
      %v2616 = vsel %vm2552, %v2518, %v2584
      %v2617 = vpack.c.bf16 %v2586, %v2585
      %v2618 = vpack.c.bf16 %v2588, %v2587
      %v2619 = vpack.c.bf16 %v2590, %v2589
      %v2620 = vpack.c.bf16 %v2592, %v2591
      %v2621 = vpack.c.bf16 %v2594, %v2593
      %v2622 = vpack.c.bf16 %v2596, %v2595
      %v2623 = vpack.c.bf16 %v2598, %v2597
      %v2624 = vpack.c.bf16 %v2600, %v2599
      %v2625 = vpack.c.bf16 %v2602, %v2601
      %v2626 = vpack.c.bf16 %v2604, %v2603
      %v2627 = vpack.c.bf16 %v2606, %v2605
      %v2628 = vpack.c.bf16 %v2608, %v2607
      %v2629 = vpack.c.bf16 %v2610, %v2609
      %v2630 = vpack.c.bf16 %v2612, %v2611
      %v2631 = vpack.c.bf16 %v2614, %v2613
      %v2632 = vpack.c.bf16 %v2616, %v2615
      %v2633 = vld [vmem:[%s13] sm:$0xf]
      %v2634 = vld [vmem:[%s13 + $0x4] sm:$0xf]
      %v2636 = vlaneseq
      %v2637 = vshrl.u32 %v2636, 7
      %v2638 = vsub.s32 0, %v2637
      %v2639 = vrot.slane %v505, %v2638
      %v2643 = vunpack.c.l.b16 %v2633
      %v2644 = vunpack.c.l.b16 %v2634
      %v2645 = vpack.c.b16 %v2644, %v2643
      %vm2647 = vcmask 130048
      %v2649 = vsel %vm2647, %v2617, 0
      %v2652 = vsel %vm2647, %v2618, 0
      %v2655 = vsel %vm2647, %v2619, 0
      %v2658 = vsel %vm2647, %v2620, 0
      %v2661 = vsel %vm2647, %v2621, 0
      %v2664 = vsel %vm2647, %v2622, 0
      %v2667 = vsel %vm2647, %v2623, 0
      %v2670 = vsel %vm2647, %v2624, 0
      %v2673 = vsel %vm2647, %v2625, 0
      %v2676 = vsel %vm2647, %v2626, 0
      %v2679 = vsel %vm2647, %v2627, 0
      %v2682 = vsel %vm2647, %v2628, 0
      %v2685 = vsel %vm2647, %v2629, 0
      %v2688 = vsel %vm2647, %v2630, 0
      %v2691 = vsel %vm2647, %v2631, 0
      %v2694 = vsel %vm2647, %v2632, 0
      %2696 = vmatprep.subr.bf16.mxu0 0
      %2697 = vmatpush1.bf16.msra.mxu0 0
      %2698 = vmatprep.subr.bf16.mxu0 0
      %2699 = vmatpush1.bf16.msra.mxu0 0
      %2700 = vmatprep.subr.bf16.mxu0 0
      %2701 = vmatpush1.bf16.msra.mxu0 0
      %2702 = vmatprep.subr.bf16.mxu0 0
      %2703 = vmatpush1.bf16.msra.mxu0 0
      %2704 = vmatprep.subr.bf16.mxu0 0
      %2705 = vmatpush1.bf16.msra.mxu0 0
      %2706 = vmatprep.subr.bf16.mxu0 0
      %2707 = vmatpush1.bf16.msra.mxu0 0
      %2708 = vmatprep.subr.bf16.mxu0 0
      %2709 = vmatpush1.bf16.msra.mxu0 0
      %2710 = vmatprep.subr.bf16.mxu0 0
      %2711 = vmatpush1.bf16.msra.mxu0 %v2645
      %2712 = vmatprep.subr.bf16.mxu0 0
      %2713 = vmatpush2.bf16.msra.mxu0 0
      %2714 = vmatprep.subr.bf16.mxu0 0
      %2715 = vmatpush2.bf16.msra.mxu0 0
      %2716 = vmatprep.subr.bf16.mxu0 0
      %2717 = vmatpush2.bf16.msra.mxu0 0
      %2718 = vmatprep.subr.bf16.mxu0 0
      %2719 = vmatpush2.bf16.msra.mxu0 0
      %2720 = vmatprep.subr.bf16.mxu0 0
      %2721 = vmatpush2.bf16.msra.mxu0 0
      %2722 = vmatprep.subr.bf16.mxu0 0
      %2723 = vmatpush2.bf16.msra.mxu0 0
      %2724 = vmatprep.subr.bf16.mxu0 0
      %2725 = vmatpush2.bf16.msra.mxu0 0
      %2726 = vmatprep.subr.bf16.mxu0 0
      %2727 = vmatpush2.bf16.msra.mxu0 0
      %2728 = vmatprep.mubr.bf16.mxu0 0
      %2729 = vmatmul.mubr.bf16.gmra.mxu0 %v2649
      %v2730 = vpop.f32.mrf.mxu0
      %v2731 = vadd.f32 %v2639, %v2730
      %v2732 = vpop.f32.mrf.mxu0
      %v2733 = vpop.f32.mrf.mxu0
      %v2734 = vadd.f32 %v2639, %v2733
      %v2735 = vpop.f32.mrf.mxu0
      %2736 = vmatprep.mubr.bf16.mxu0 0
      %2737 = vmatmul.mubr.bf16.gmra.mxu0 %v2652
      %v2738 = vpop.f32.mrf.mxu0
      %v2739 = vadd.f32 %v2639, %v2738
      %v2740 = vpop.f32.mrf.mxu0
      %v2741 = vpop.f32.mrf.mxu0
      %v2742 = vadd.f32 %v2639, %v2741
      %v2743 = vpop.f32.mrf.mxu0
      %2744 = vmatprep.mubr.bf16.mxu0 0
      %2745 = vmatmul.mubr.bf16.gmra.mxu0 %v2655
      %v2746 = vpop.f32.mrf.mxu0
      %v2747 = vadd.f32 %v2639, %v2746
      %v2748 = vpop.f32.mrf.mxu0
      %v2749 = vpop.f32.mrf.mxu0
      %v2750 = vadd.f32 %v2639, %v2749
      %v2751 = vpop.f32.mrf.mxu0
      %2752 = vmatprep.mubr.bf16.mxu0 0
      %2753 = vmatmul.mubr.bf16.gmra.mxu0 %v2658
      %v2754 = vpop.f32.mrf.mxu0
      %v2755 = vadd.f32 %v2639, %v2754
      %v2756 = vpop.f32.mrf.mxu0
      %v2757 = vpop.f32.mrf.mxu0
      %v2758 = vadd.f32 %v2639, %v2757
      %v2759 = vpop.f32.mrf.mxu0
      %2760 = vmatprep.mubr.bf16.mxu0 0
      %2761 = vmatmul.mubr.bf16.gmra.mxu0 %v2661
      %v2762 = vpop.f32.mrf.mxu0
      %v2763 = vadd.f32 %v2639, %v2762
      %v2764 = vpop.f32.mrf.mxu0
      %v2765 = vpop.f32.mrf.mxu0
      %v2766 = vadd.f32 %v2639, %v2765
      %v2767 = vpop.f32.mrf.mxu0
      %2768 = vmatprep.mubr.bf16.mxu0 0
      %2769 = vmatmul.mubr.bf16.gmra.mxu0 %v2664
      %v2770 = vpop.f32.mrf.mxu0
      %v2771 = vadd.f32 %v2639, %v2770
      %v2772 = vpop.f32.mrf.mxu0
      %v2773 = vpop.f32.mrf.mxu0
      %v2774 = vadd.f32 %v2639, %v2773
      %v2775 = vpop.f32.mrf.mxu0
      %2776 = vmatprep.mubr.bf16.mxu0 0
      %2777 = vmatmul.mubr.bf16.gmra.mxu0 %v2667
      %v2778 = vpop.f32.mrf.mxu0
      %v2779 = vadd.f32 %v2639, %v2778
      %v2780 = vpop.f32.mrf.mxu0
      %v2781 = vpop.f32.mrf.mxu0
      %v2782 = vadd.f32 %v2639, %v2781
      %v2783 = vpop.f32.mrf.mxu0
      %2784 = vmatprep.mubr.bf16.mxu0 0
      %2785 = vmatmul.mubr.bf16.gmra.mxu0 %v2670
      %v2786 = vpop.f32.mrf.mxu0
      %v2787 = vadd.f32 %v2639, %v2786
      %v2788 = vpop.f32.mrf.mxu0
      %v2789 = vpop.f32.mrf.mxu0
      %v2790 = vadd.f32 %v2639, %v2789
      %v2791 = vpop.f32.mrf.mxu0
      %2792 = vmatprep.mubr.bf16.mxu0 0
      %2793 = vmatmul.mubr.bf16.gmra.mxu0 %v2673
      %v2794 = vpop.f32.mrf.mxu0
      %v2795 = vadd.f32 %v2639, %v2794
      %v2796 = vpop.f32.mrf.mxu0
      %v2797 = vpop.f32.mrf.mxu0
      %v2798 = vadd.f32 %v2639, %v2797
      %v2799 = vpop.f32.mrf.mxu0
      %2800 = vmatprep.mubr.bf16.mxu0 0
      %2801 = vmatmul.mubr.bf16.gmra.mxu0 %v2676
      %v2802 = vpop.f32.mrf.mxu0
      %v2803 = vadd.f32 %v2639, %v2802
      %v2804 = vpop.f32.mrf.mxu0
      %v2805 = vpop.f32.mrf.mxu0
      %v2806 = vadd.f32 %v2639, %v2805
      %v2807 = vpop.f32.mrf.mxu0
      %2808 = vmatprep.mubr.bf16.mxu0 0
      %2809 = vmatmul.mubr.bf16.gmra.mxu0 %v2679
      %v2810 = vpop.f32.mrf.mxu0
      %v2811 = vadd.f32 %v2639, %v2810
      %v2812 = vpop.f32.mrf.mxu0
      %v2813 = vpop.f32.mrf.mxu0
      %v2814 = vadd.f32 %v2639, %v2813
      %v2815 = vpop.f32.mrf.mxu0
      %2816 = vmatprep.mubr.bf16.mxu0 0
      %2817 = vmatmul.mubr.bf16.gmra.mxu0 %v2682
      %v2818 = vpop.f32.mrf.mxu0
      %v2819 = vadd.f32 %v2639, %v2818
      %v2820 = vpop.f32.mrf.mxu0
      %v2821 = vpop.f32.mrf.mxu0
      %v2822 = vadd.f32 %v2639, %v2821
      %v2823 = vpop.f32.mrf.mxu0
      %2824 = vmatprep.mubr.bf16.mxu0 0
      %2825 = vmatmul.mubr.bf16.gmra.mxu0 %v2685
      %v2826 = vpop.f32.mrf.mxu0
      %v2827 = vadd.f32 %v2639, %v2826
      %v2828 = vpop.f32.mrf.mxu0
      %v2829 = vpop.f32.mrf.mxu0
      %v2830 = vadd.f32 %v2639, %v2829
      %v2831 = vpop.f32.mrf.mxu0
      %2832 = vmatprep.mubr.bf16.mxu0 0
      %2833 = vmatmul.mubr.bf16.gmra.mxu0 %v2688
      %v2834 = vpop.f32.mrf.mxu0
      %v2835 = vadd.f32 %v2639, %v2834
      %v2836 = vpop.f32.mrf.mxu0
      %v2837 = vpop.f32.mrf.mxu0
      %v2838 = vadd.f32 %v2639, %v2837
      %v2839 = vpop.f32.mrf.mxu0
      %2840 = vmatprep.mubr.bf16.mxu0 0
      %2841 = vmatmul.mubr.bf16.gmra.mxu0 %v2691
      %v2842 = vpop.f32.mrf.mxu0
      %v2843 = vadd.f32 %v2639, %v2842
      %v2844 = vpop.f32.mrf.mxu0
      %v2845 = vpop.f32.mrf.mxu0
      %v2846 = vadd.f32 %v2639, %v2845
      %v2847 = vpop.f32.mrf.mxu0
      %2848 = vmatprep.mubr.bf16.mxu0 0
      %2849 = vmatmul.mubr.bf16.gmra.mxu0 %v2694
      %v2850 = vpop.f32.mrf.mxu0
      %v2851 = vadd.f32 %v2639, %v2850
      %v2852 = vpop.f32.mrf.mxu0
      %v2853 = vpop.f32.mrf.mxu0
      %v2854 = vadd.f32 %v2639, %v2853
      %v2855 = vpop.f32.mrf.mxu0
      %2856 = vdwg.mxu0
      %v2857 = vxor.u32 %v2731, 2147483648
      %v2858 = vxor.u32 %v2734, 2147483648
      %v2859 = vxor.u32 %v2739, 2147483648
      %v2860 = vxor.u32 %v2742, 2147483648
      %v2861 = vxor.u32 %v2747, 2147483648
      %v2862 = vxor.u32 %v2750, 2147483648
      %v2863 = vxor.u32 %v2755, 2147483648
      %v2864 = vxor.u32 %v2758, 2147483648
      %v2865 = vxor.u32 %v2763, 2147483648
      %v2866 = vxor.u32 %v2766, 2147483648
      %v2867 = vxor.u32 %v2771, 2147483648
      %v2868 = vxor.u32 %v2774, 2147483648
      %v2869 = vxor.u32 %v2779, 2147483648
      %v2870 = vxor.u32 %v2782, 2147483648
      %v2871 = vxor.u32 %v2787, 2147483648
      %v2872 = vxor.u32 %v2790, 2147483648
      %v2873 = vxor.u32 %v2795, 2147483648
      %v2874 = vxor.u32 %v2798, 2147483648
      %v2875 = vxor.u32 %v2803, 2147483648
      %v2876 = vxor.u32 %v2806, 2147483648
      %v2877 = vxor.u32 %v2811, 2147483648
      %v2878 = vxor.u32 %v2814, 2147483648
      %v2879 = vxor.u32 %v2819, 2147483648
      %v2880 = vxor.u32 %v2822, 2147483648
      %v2881 = vxor.u32 %v2827, 2147483648
      %v2882 = vxor.u32 %v2830, 2147483648
      %v2883 = vxor.u32 %v2835, 2147483648
      %v2884 = vxor.u32 %v2838, 2147483648
      %v2885 = vxor.u32 %v2843, 2147483648
      %v2886 = vxor.u32 %v2846, 2147483648
      %v2887 = vxor.u32 %v2851, 2147483648
      %v2888 = vxor.u32 %v2854, 2147483648
      %v2889 = vmul.f32 %v2857, 1.442695
      %v2890 = vpow.pop %v2889
      %v2891 = vmul.f32 %v2858, 1.442695
      %v2892 = vpow.pop %v2891
      %v2893 = vmul.f32 %v2859, 1.442695
      %v2894 = vpow.pop %v2893
      %v2895 = vmul.f32 %v2860, 1.442695
      %v2896 = vpow.pop %v2895
      %v2897 = vmul.f32 %v2861, 1.442695
      %v2898 = vpow.pop %v2897
      %v2899 = vmul.f32 %v2862, 1.442695
      %v2900 = vpow.pop %v2899
      %v2901 = vmul.f32 %v2863, 1.442695
      %v2902 = vpow.pop %v2901
      %v2903 = vmul.f32 %v2864, 1.442695
      %v2904 = vpow.pop %v2903
      %v2905 = vmul.f32 %v2865, 1.442695
      %v2906 = vpow.pop %v2905
      %v2907 = vmul.f32 %v2866, 1.442695
      %v2908 = vpow.pop %v2907
      %v2909 = vmul.f32 %v2867, 1.442695
      %v2910 = vpow.pop %v2909
      %v2911 = vmul.f32 %v2868, 1.442695
      %v2912 = vpow.pop %v2911
      %v2913 = vmul.f32 %v2869, 1.442695
      %v2914 = vpow.pop %v2913
      %v2915 = vmul.f32 %v2870, 1.442695
      %v2916 = vpow.pop %v2915
      %v2917 = vmul.f32 %v2871, 1.442695
      %v2918 = vpow.pop %v2917
      %v2919 = vmul.f32 %v2872, 1.442695
      %v2920 = vpow.pop %v2919
      %v2921 = vmul.f32 %v2873, 1.442695
      %v2922 = vpow.pop %v2921
      %v2923 = vmul.f32 %v2874, 1.442695
      %v2924 = vpow.pop %v2923
      %v2925 = vmul.f32 %v2875, 1.442695
      %v2926 = vpow.pop %v2925
      %v2927 = vmul.f32 %v2876, 1.442695
      %v2928 = vpow.pop %v2927
      %v2929 = vmul.f32 %v2877, 1.442695
      %v2930 = vpow.pop %v2929
      %v2931 = vmul.f32 %v2878, 1.442695
      %v2932 = vpow.pop %v2931
      %v2933 = vmul.f32 %v2879, 1.442695
      %v2934 = vpow.pop %v2933
      %v2935 = vmul.f32 %v2880, 1.442695
      %v2936 = vpow.pop %v2935
      %v2937 = vmul.f32 %v2881, 1.442695
      %v2938 = vpow.pop %v2937
      %v2939 = vmul.f32 %v2882, 1.442695
      %v2940 = vpow.pop %v2939
      %v2941 = vmul.f32 %v2883, 1.442695
      %v2942 = vpow.pop %v2941
      %v2943 = vmul.f32 %v2884, 1.442695
      %v2944 = vpow.pop %v2943
      %v2945 = vmul.f32 %v2885, 1.442695
      %v2946 = vpow.pop %v2945
      %v2947 = vmul.f32 %v2886, 1.442695
      %v2948 = vpow.pop %v2947
      %v2949 = vmul.f32 %v2887, 1.442695
      %v2950 = vpow.pop %v2949
      %v2951 = vmul.f32 %v2888, 1.442695
      %v2952 = vpow.pop %v2951
      %v2953 = vadd.f32 %v2890, 1.0
      %v2954 = vadd.f32 %v2892, 1.0
      %v2955 = vadd.f32 %v2894, 1.0
      %v2956 = vadd.f32 %v2896, 1.0
      %v2957 = vadd.f32 %v2898, 1.0
      %v2958 = vadd.f32 %v2900, 1.0
      %v2959 = vadd.f32 %v2902, 1.0
      %v2960 = vadd.f32 %v2904, 1.0
      %v2961 = vadd.f32 %v2906, 1.0
      %v2962 = vadd.f32 %v2908, 1.0
      %v2963 = vadd.f32 %v2910, 1.0
      %v2964 = vadd.f32 %v2912, 1.0
      %v2965 = vadd.f32 %v2914, 1.0
      %v2966 = vadd.f32 %v2916, 1.0
      %v2967 = vadd.f32 %v2918, 1.0
      %v2968 = vadd.f32 %v2920, 1.0
      %v2969 = vadd.f32 %v2922, 1.0
      %v2970 = vadd.f32 %v2924, 1.0
      %v2971 = vadd.f32 %v2926, 1.0
      %v2972 = vadd.f32 %v2928, 1.0
      %v2973 = vadd.f32 %v2930, 1.0
      %v2974 = vadd.f32 %v2932, 1.0
      %v2975 = vadd.f32 %v2934, 1.0
      %v2976 = vadd.f32 %v2936, 1.0
      %v2977 = vadd.f32 %v2938, 1.0
      %v2978 = vadd.f32 %v2940, 1.0
      %v2979 = vadd.f32 %v2942, 1.0
      %v2980 = vadd.f32 %v2944, 1.0
      %v2981 = vadd.f32 %v2946, 1.0
      %v2982 = vadd.f32 %v2948, 1.0
      %v2983 = vadd.f32 %v2950, 1.0
      %v2984 = vadd.f32 %v2952, 1.0
      %v2985 = vrcp.pop %v2953
      %v2986 = vmul.f32 1.0, %v2985
      %v2987 = vrcp.pop %v2954
      %v2988 = vmul.f32 1.0, %v2987
      %v2989 = vrcp.pop %v2955
      %v2990 = vmul.f32 1.0, %v2989
      %v2991 = vrcp.pop %v2956
      %v2992 = vmul.f32 1.0, %v2991
      %v2993 = vrcp.pop %v2957
      %v2994 = vmul.f32 1.0, %v2993
      %v2995 = vrcp.pop %v2958
      %v2996 = vmul.f32 1.0, %v2995
      %v2997 = vrcp.pop %v2959
      %v2998 = vmul.f32 1.0, %v2997
      %v2999 = vrcp.pop %v2960
      %v3000 = vmul.f32 1.0, %v2999
      %v3001 = vrcp.pop %v2961
      %v3002 = vmul.f32 1.0, %v3001
      %v3003 = vrcp.pop %v2962
      %v3004 = vmul.f32 1.0, %v3003
      %v3005 = vrcp.pop %v2963
      %v3006 = vmul.f32 1.0, %v3005
      %v3007 = vrcp.pop %v2964
      %v3008 = vmul.f32 1.0, %v3007
      %v3009 = vrcp.pop %v2965
      %v3010 = vmul.f32 1.0, %v3009
      %v3011 = vrcp.pop %v2966
      %v3012 = vmul.f32 1.0, %v3011
      %v3013 = vrcp.pop %v2967
      %v3014 = vmul.f32 1.0, %v3013
      %v3015 = vrcp.pop %v2968
      %v3016 = vmul.f32 1.0, %v3015
      %v3017 = vrcp.pop %v2969
      %v3018 = vmul.f32 1.0, %v3017
      %v3019 = vrcp.pop %v2970
      %v3020 = vmul.f32 1.0, %v3019
      %v3021 = vrcp.pop %v2971
      %v3022 = vmul.f32 1.0, %v3021
      %v3023 = vrcp.pop %v2972
      %v3024 = vmul.f32 1.0, %v3023
      %v3025 = vrcp.pop %v2973
      %v3026 = vmul.f32 1.0, %v3025
      %v3027 = vrcp.pop %v2974
      %v3028 = vmul.f32 1.0, %v3027
      %v3029 = vrcp.pop %v2975
      %v3030 = vmul.f32 1.0, %v3029
      %v3031 = vrcp.pop %v2976
      %v3032 = vmul.f32 1.0, %v3031
      %v3033 = vrcp.pop %v2977
      %v3034 = vmul.f32 1.0, %v3033
      %v3035 = vrcp.pop %v2978
      %v3036 = vmul.f32 1.0, %v3035
      %v3037 = vrcp.pop %v2979
      %v3038 = vmul.f32 1.0, %v3037
      %v3039 = vrcp.pop %v2980
      %v3040 = vmul.f32 1.0, %v3039
      %v3041 = vrcp.pop %v2981
      %v3042 = vmul.f32 1.0, %v3041
      %v3043 = vrcp.pop %v2982
      %v3044 = vmul.f32 1.0, %v3043
      %v3045 = vrcp.pop %v2983
      %v3046 = vmul.f32 1.0, %v3045
      %v3047 = vrcp.pop %v2984
      %v3048 = vmul.f32 1.0, %v3047
      %v3049 = vsel %vm508, 1, 0
      %vm3050 = vcmp.eq.s32.totalorder %v3049, 1
      %v3051 = vsel %vm3050, %v2986, %v2731
      %v3052 = vsel %vm3050, %v2988, %v2734
      %v3053 = vsel %vm3050, %v2990, %v2739
      %v3054 = vsel %vm3050, %v2992, %v2742
      %v3055 = vsel %vm3050, %v2994, %v2747
      %v3056 = vsel %vm3050, %v2996, %v2750
      %v3057 = vsel %vm3050, %v2998, %v2755
      %v3058 = vsel %vm3050, %v3000, %v2758
      %v3059 = vsel %vm3050, %v3002, %v2763
      %v3060 = vsel %vm3050, %v3004, %v2766
      %v3061 = vsel %vm3050, %v3006, %v2771
      %v3062 = vsel %vm3050, %v3008, %v2774
      %v3063 = vsel %vm3050, %v3010, %v2779
      %v3064 = vsel %vm3050, %v3012, %v2782
      %v3065 = vsel %vm3050, %v3014, %v2787
      %v3066 = vsel %vm3050, %v3016, %v2790
      %v3067 = vsel %vm3050, %v3018, %v2795
      %v3068 = vsel %vm3050, %v3020, %v2798
      %v3069 = vsel %vm3050, %v3022, %v2803
      %v3070 = vsel %vm3050, %v3024, %v2806
      %v3071 = vsel %vm3050, %v3026, %v2811
      %v3072 = vsel %vm3050, %v3028, %v2814
      %v3073 = vsel %vm3050, %v3030, %v2819
      %v3074 = vsel %vm3050, %v3032, %v2822
      %v3075 = vsel %vm3050, %v3034, %v2827
      %v3076 = vsel %vm3050, %v3036, %v2830
      %v3077 = vsel %vm3050, %v3038, %v2835
      %v3078 = vsel %vm3050, %v3040, %v2838
      %v3079 = vsel %vm3050, %v3042, %v2843
      %v3080 = vsel %vm3050, %v3044, %v2846
      %v3081 = vsel %vm3050, %v3046, %v2851
      %v3082 = vsel %vm3050, %v3048, %v2854
      %vm3083 = vcmask 31744
      %3084 = vst.msk [vmem:[%s496] sm:$0xff] %vm3083, %v3051
      %3085 = vst.msk [vmem:[%s496 + $0x8] sm:$0xff] %vm3083, %v3052
      %3086 = vst.msk [vmem:[%s496 + $0x10] sm:$0xff] %vm3083, %v3053
      %3087 = vst.msk [vmem:[%s496 + $0x18] sm:$0xff] %vm3083, %v3054
      %3088 = vst.msk [vmem:[%s496 + $0x20] sm:$0xff] %vm3083, %v3055
      %3089 = vst.msk [vmem:[%s496 + $0x28] sm:$0xff] %vm3083, %v3056
      %3090 = vst.msk [vmem:[%s496 + $0x30] sm:$0xff] %vm3083, %v3057
      %3091 = vst.msk [vmem:[%s496 + $0x38] sm:$0xff] %vm3083, %v3058
      %3092 = vst.msk [vmem:[%s496 + $0x40] sm:$0xff] %vm3083, %v3059
      %3093 = vst.msk [vmem:[%s496 + $0x48] sm:$0xff] %vm3083, %v3060
      %3094 = vst.msk [vmem:[%s496 + $0x50] sm:$0xff] %vm3083, %v3061
      %3095 = vst.msk [vmem:[%s496 + $0x58] sm:$0xff] %vm3083, %v3062
      %3096 = vst.msk [vmem:[%s496 + $0x60] sm:$0xff] %vm3083, %v3063
      %3097 = vst.msk [vmem:[%s496 + $0x68] sm:$0xff] %vm3083, %v3064
      %3098 = vst.msk [vmem:[%s496 + $0x70] sm:$0xff] %vm3083, %v3065
      %3099 = vst.msk [vmem:[%s496 + $0x78] sm:$0xff] %vm3083, %v3066
      %3100 = vst.msk [vmem:[%s496 + $0x80] sm:$0xff] %vm3083, %v3067
      %3101 = vst.msk [vmem:[%s496 + $0x88] sm:$0xff] %vm3083, %v3068
      %3102 = vst.msk [vmem:[%s496 + $0x90] sm:$0xff] %vm3083, %v3069
      %3103 = vst.msk [vmem:[%s496 + $0x98] sm:$0xff] %vm3083, %v3070
      %3104 = vst.msk [vmem:[%s496 + $0xa0] sm:$0xff] %vm3083, %v3071
      %3105 = vst.msk [vmem:[%s496 + $0xa8] sm:$0xff] %vm3083, %v3072
      %3106 = vst.msk [vmem:[%s496 + $0xb0] sm:$0xff] %vm3083, %v3073
      %3107 = vst.msk [vmem:[%s496 + $0xb8] sm:$0xff] %vm3083, %v3074
      %3108 = vst.msk [vmem:[%s496 + $0xc0] sm:$0xff] %vm3083, %v3075
      %3109 = vst.msk [vmem:[%s496 + $0xc8] sm:$0xff] %vm3083, %v3076
      %3110 = vst.msk [vmem:[%s496 + $0xd0] sm:$0xff] %vm3083, %v3077
      %3111 = vst.msk [vmem:[%s496 + $0xd8] sm:$0xff] %vm3083, %v3078
      %3112 = vst.msk [vmem:[%s496 + $0xe0] sm:$0xff] %vm3083, %v3079
      %3113 = vst.msk [vmem:[%s496 + $0xe8] sm:$0xff] %vm3083, %v3080
      %3114 = vst.msk [vmem:[%s496 + $0xf0] sm:$0xff] %vm3083, %v3081
      %3115 = vst.msk [vmem:[%s496 + $0xf8] sm:$0xff] %vm3083, %v3082
      %v3116 = vld [vmem:[%s490 + $0x100] sm:$0xff]
      %v3117 = vld [vmem:[%s490 + $0x108] sm:$0xff]
      %v3118 = vld [vmem:[%s490 + $0x110] sm:$0xff]
      %v3119 = vld [vmem:[%s490 + $0x118] sm:$0xff]
      %v3120 = vld [vmem:[%s490 + $0x120] sm:$0xff]
      %v3121 = vld [vmem:[%s490 + $0x128] sm:$0xff]
      %v3122 = vld [vmem:[%s490 + $0x130] sm:$0xff]
      %v3123 = vld [vmem:[%s490 + $0x138] sm:$0xff]
      %v3124 = vld [vmem:[%s490 + $0x140] sm:$0xff]
      %v3125 = vld [vmem:[%s490 + $0x148] sm:$0xff]
      %v3126 = vld [vmem:[%s490 + $0x150] sm:$0xff]
      %v3127 = vld [vmem:[%s490 + $0x158] sm:$0xff]
      %v3128 = vld [vmem:[%s490 + $0x160] sm:$0xff]
      %v3129 = vld [vmem:[%s490 + $0x168] sm:$0xff]
      %v3130 = vld [vmem:[%s490 + $0x170] sm:$0xff]
      %v3131 = vld [vmem:[%s490 + $0x178] sm:$0xff]
      %v3132 = vld [vmem:[%s490 + $0x180] sm:$0xff]
      %v3133 = vld [vmem:[%s490 + $0x188] sm:$0xff]
      %v3134 = vld [vmem:[%s490 + $0x190] sm:$0xff]
      %v3135 = vld [vmem:[%s490 + $0x198] sm:$0xff]
      %v3136 = vld [vmem:[%s490 + $0x1a0] sm:$0xff]
      %v3137 = vld [vmem:[%s490 + $0x1a8] sm:$0xff]
      %v3138 = vld [vmem:[%s490 + $0x1b0] sm:$0xff]
      %v3139 = vld [vmem:[%s490 + $0x1b8] sm:$0xff]
      %v3140 = vld [vmem:[%s490 + $0x1c0] sm:$0xff]
      %v3141 = vld [vmem:[%s490 + $0x1c8] sm:$0xff]
      %v3142 = vld [vmem:[%s490 + $0x1d0] sm:$0xff]
      %v3143 = vld [vmem:[%s490 + $0x1d8] sm:$0xff]
      %v3144 = vld [vmem:[%s490 + $0x1e0] sm:$0xff]
      %v3145 = vld [vmem:[%s490 + $0x1e8] sm:$0xff]
      %v3146 = vld [vmem:[%s490 + $0x1f0] sm:$0xff]
      %v3147 = vpack.c.bf16 %v3117, %v3116
      %v3148 = vpack.c.bf16 %v3119, %v3118
      %v3149 = vpack.c.bf16 %v3121, %v3120
      %v3150 = vpack.c.bf16 %v3123, %v3122
      %v3151 = vpack.c.bf16 %v3125, %v3124
      %v3152 = vpack.c.bf16 %v3127, %v3126
      %v3153 = vpack.c.bf16 %v3129, %v3128
      %v3154 = vpack.c.bf16 %v3131, %v3130
      %v3155 = vpack.c.bf16 %v3133, %v3132
      %v3156 = vpack.c.bf16 %v3135, %v3134
      %v3157 = vpack.c.bf16 %v3137, %v3136
      %v3158 = vpack.c.bf16 %v3139, %v3138
      %v3159 = vpack.c.bf16 %v3141, %v3140
      %v3160 = vpack.c.bf16 %v3143, %v3142
      %v3161 = vpack.c.bf16 %v3145, %v3144
      %v3162 = vpack.c.bf16 %v3146, %v3146
      %v3163 = vld [vmem:[%s1] sm:$0xf]
      %v3164 = vld [vmem:[%s1 + $0x4] sm:$0xf]
      %v3165 = vld [vmem:[%s1 + $0x8] sm:$0xf]
      %v3166 = vld [vmem:[%s1 + $0xc] sm:$0xf]
      %v3171 = vunpack.c.l.b16 %v3163
      %v3172 = vunpack.c.l.b16 %v3164
      %v3173 = vunpack.c.l.b16 %v3165
      %v3174 = vunpack.c.l.b16 %v3166
      %v3175 = vpack.c.b16 %v3172, %v3171
      %v3176 = vpack.c.b16 %v3174, %v3173
      %v3180 = vsel %vm579, %v3147, 0
      %v3183 = vsel %vm579, %v3148, 0
      %v3186 = vsel %vm579, %v3149, 0
      %v3189 = vsel %vm579, %v3150, 0
      %v3192 = vsel %vm579, %v3151, 0
      %v3195 = vsel %vm579, %v3152, 0
      %v3198 = vsel %vm579, %v3153, 0
      %v3201 = vsel %vm579, %v3154, 0
      %v3204 = vsel %vm579, %v3155, 0
      %v3207 = vsel %vm579, %v3156, 0
      %v3210 = vsel %vm579, %v3157, 0
      %v3213 = vsel %vm579, %v3158, 0
      %v3216 = vsel %vm579, %v3159, 0
      %v3219 = vsel %vm579, %v3160, 0
      %v3222 = vsel %vm579, %v3161, 0
      %v3225 = vsel %vm579, %v3162, 0
      %3227 = vmatprep.subr.bf16.mxu0 0
      %3228 = vmatpush1.bf16.msra.mxu0 0
      %3229 = vmatprep.subr.bf16.mxu0 0
      %3230 = vmatpush1.bf16.msra.mxu0 0
      %3231 = vmatprep.subr.bf16.mxu0 0
      %3232 = vmatpush1.bf16.msra.mxu0 0
      %3233 = vmatprep.subr.bf16.mxu0 0
      %3234 = vmatpush1.bf16.msra.mxu0 0
      %3235 = vmatprep.subr.bf16.mxu0 0
      %3236 = vmatpush1.bf16.msra.mxu0 0
      %3237 = vmatprep.subr.bf16.mxu0 0
      %3238 = vmatpush1.bf16.msra.mxu0 0
      %3239 = vmatprep.subr.bf16.mxu0 0
      %3240 = vmatpush1.bf16.msra.mxu0 %v3176
      %3241 = vmatprep.subr.bf16.mxu0 0
      %3242 = vmatpush1.bf16.msra.mxu0 %v3175
      %3243 = vmatprep.subr.bf16.mxu0 0
      %3244 = vmatpush2.bf16.msra.mxu0 0
      %3245 = vmatprep.subr.bf16.mxu0 0
      %3246 = vmatpush2.bf16.msra.mxu0 0
      %3247 = vmatprep.subr.bf16.mxu0 0
      %3248 = vmatpush2.bf16.msra.mxu0 0
      %3249 = vmatprep.subr.bf16.mxu0 0
      %3250 = vmatpush2.bf16.msra.mxu0 0
      %3251 = vmatprep.subr.bf16.mxu0 0
      %3252 = vmatpush2.bf16.msra.mxu0 0
      %3253 = vmatprep.subr.bf16.mxu0 0
      %3254 = vmatpush2.bf16.msra.mxu0 0
      %3255 = vmatprep.subr.bf16.mxu0 0
      %3256 = vmatpush2.bf16.msra.mxu0 0
      %3257 = vmatprep.subr.bf16.mxu0 0
      %3258 = vmatpush2.bf16.msra.mxu0 0
      %3259 = vmatprep.mubr.bf16.mxu0 0
      %3260 = vmatmul.mubr.bf16.gmra.mxu0 %v3180
      %v3261 = vpop.f32.mrf.mxu0
      %v3262 = vadd.f32 %v565, %v3261
      %v3263 = vpop.f32.mrf.mxu0
      %v3264 = vpop.f32.mrf.mxu0
      %v3265 = vadd.f32 %v565, %v3264
      %v3266 = vpop.f32.mrf.mxu0
      %3267 = vmatprep.mubr.bf16.mxu0 0
      %3268 = vmatmul.mubr.bf16.gmra.mxu0 %v3183
      %v3269 = vpop.f32.mrf.mxu0
      %v3270 = vadd.f32 %v565, %v3269
      %v3271 = vpop.f32.mrf.mxu0
      %v3272 = vpop.f32.mrf.mxu0
      %v3273 = vadd.f32 %v565, %v3272
      %v3274 = vpop.f32.mrf.mxu0
      %3275 = vmatprep.mubr.bf16.mxu0 0
      %3276 = vmatmul.mubr.bf16.gmra.mxu0 %v3186
      %v3277 = vpop.f32.mrf.mxu0
      %v3278 = vadd.f32 %v565, %v3277
      %v3279 = vpop.f32.mrf.mxu0
      %v3280 = vpop.f32.mrf.mxu0
      %v3281 = vadd.f32 %v565, %v3280
      %v3282 = vpop.f32.mrf.mxu0
      %3283 = vmatprep.mubr.bf16.mxu0 0
      %3284 = vmatmul.mubr.bf16.gmra.mxu0 %v3189
      %v3285 = vpop.f32.mrf.mxu0
      %v3286 = vadd.f32 %v565, %v3285
      %v3287 = vpop.f32.mrf.mxu0
      %v3288 = vpop.f32.mrf.mxu0
      %v3289 = vadd.f32 %v565, %v3288
      %v3290 = vpop.f32.mrf.mxu0
      %3291 = vmatprep.mubr.bf16.mxu0 0
      %3292 = vmatmul.mubr.bf16.gmra.mxu0 %v3192
      %v3293 = vpop.f32.mrf.mxu0
      %v3294 = vadd.f32 %v565, %v3293
      %v3295 = vpop.f32.mrf.mxu0
      %v3296 = vpop.f32.mrf.mxu0
      %v3297 = vadd.f32 %v565, %v3296
      %v3298 = vpop.f32.mrf.mxu0
      %3299 = vmatprep.mubr.bf16.mxu0 0
      %3300 = vmatmul.mubr.bf16.gmra.mxu0 %v3195
      %v3301 = vpop.f32.mrf.mxu0
      %v3302 = vadd.f32 %v565, %v3301
      %v3303 = vpop.f32.mrf.mxu0
      %v3304 = vpop.f32.mrf.mxu0
      %v3305 = vadd.f32 %v565, %v3304
      %v3306 = vpop.f32.mrf.mxu0
      %3307 = vmatprep.mubr.bf16.mxu0 0
      %3308 = vmatmul.mubr.bf16.gmra.mxu0 %v3198
      %v3309 = vpop.f32.mrf.mxu0
      %v3310 = vadd.f32 %v565, %v3309
      %v3311 = vpop.f32.mrf.mxu0
      %v3312 = vpop.f32.mrf.mxu0
      %v3313 = vadd.f32 %v565, %v3312
      %v3314 = vpop.f32.mrf.mxu0
      %3315 = vmatprep.mubr.bf16.mxu0 0
      %3316 = vmatmul.mubr.bf16.gmra.mxu0 %v3201
      %v3317 = vpop.f32.mrf.mxu0
      %v3318 = vadd.f32 %v565, %v3317
      %v3319 = vpop.f32.mrf.mxu0
      %v3320 = vpop.f32.mrf.mxu0
      %v3321 = vadd.f32 %v565, %v3320
      %v3322 = vpop.f32.mrf.mxu0
      %3323 = vmatprep.mubr.bf16.mxu0 0
      %3324 = vmatmul.mubr.bf16.gmra.mxu0 %v3204
      %v3325 = vpop.f32.mrf.mxu0
      %v3326 = vadd.f32 %v565, %v3325
      %v3327 = vpop.f32.mrf.mxu0
      %v3328 = vpop.f32.mrf.mxu0
      %v3329 = vadd.f32 %v565, %v3328
      %v3330 = vpop.f32.mrf.mxu0
      %3331 = vmatprep.mubr.bf16.mxu0 0
      %3332 = vmatmul.mubr.bf16.gmra.mxu0 %v3207
      %v3333 = vpop.f32.mrf.mxu0
      %v3334 = vadd.f32 %v565, %v3333
      %v3335 = vpop.f32.mrf.mxu0
      %v3336 = vpop.f32.mrf.mxu0
      %v3337 = vadd.f32 %v565, %v3336
      %v3338 = vpop.f32.mrf.mxu0
      %3339 = vmatprep.mubr.bf16.mxu0 0
      %3340 = vmatmul.mubr.bf16.gmra.mxu0 %v3210
      %v3341 = vpop.f32.mrf.mxu0
      %v3342 = vadd.f32 %v565, %v3341
      %v3343 = vpop.f32.mrf.mxu0
      %v3344 = vpop.f32.mrf.mxu0
      %v3345 = vadd.f32 %v565, %v3344
      %v3346 = vpop.f32.mrf.mxu0
      %3347 = vmatprep.mubr.bf16.mxu0 0
      %3348 = vmatmul.mubr.bf16.gmra.mxu0 %v3213
      %v3349 = vpop.f32.mrf.mxu0
      %v3350 = vadd.f32 %v565, %v3349
      %v3351 = vpop.f32.mrf.mxu0
      %v3352 = vpop.f32.mrf.mxu0
      %v3353 = vadd.f32 %v565, %v3352
      %v3354 = vpop.f32.mrf.mxu0
      %3355 = vmatprep.mubr.bf16.mxu0 0
      %3356 = vmatmul.mubr.bf16.gmra.mxu0 %v3216
      %v3357 = vpop.f32.mrf.mxu0
      %v3358 = vadd.f32 %v565, %v3357
      %v3359 = vpop.f32.mrf.mxu0
      %v3360 = vpop.f32.mrf.mxu0
      %v3361 = vadd.f32 %v565, %v3360
      %v3362 = vpop.f32.mrf.mxu0
      %3363 = vmatprep.mubr.bf16.mxu0 0
      %3364 = vmatmul.mubr.bf16.gmra.mxu0 %v3219
      %v3365 = vpop.f32.mrf.mxu0
      %v3366 = vadd.f32 %v565, %v3365
      %v3367 = vpop.f32.mrf.mxu0
      %v3368 = vpop.f32.mrf.mxu0
      %v3369 = vadd.f32 %v565, %v3368
      %v3370 = vpop.f32.mrf.mxu0
      %3371 = vmatprep.mubr.bf16.mxu0 0
      %3372 = vmatmul.mubr.bf16.gmra.mxu0 %v3222
      %v3373 = vpop.f32.mrf.mxu0
      %v3374 = vadd.f32 %v565, %v3373
      %v3375 = vpop.f32.mrf.mxu0
      %v3376 = vpop.f32.mrf.mxu0
      %v3377 = vadd.f32 %v565, %v3376
      %v3378 = vpop.f32.mrf.mxu0
      %3379 = vmatprep.mubr.bf16.mxu0 0
      %3380 = vmatmul.mubr.bf16.gmra.mxu0 %v3225
      %v3381 = vpop.f32.mrf.mxu0
      %v3382 = vadd.f32 %v565, %v3381
      %v3383 = vpop.f32.mrf.mxu0
      %v3384 = vpop.f32.mrf.mxu0
      %v3385 = vpop.f32.mrf.mxu0
      %3386 = vdwg.mxu0
      %vm3387 = vcmp.gt.f32.partialorder %v3262, 0.0
      %vm3388 = vcmp.gt.f32.partialorder %v3265, 0.0
      %vm3389 = vcmp.gt.f32.partialorder %v3270, 0.0
      %vm3390 = vcmp.gt.f32.partialorder %v3273, 0.0
      %vm3391 = vcmp.gt.f32.partialorder %v3278, 0.0
      %vm3392 = vcmp.gt.f32.partialorder %v3281, 0.0
      %vm3393 = vcmp.gt.f32.partialorder %v3286, 0.0
      %vm3394 = vcmp.gt.f32.partialorder %v3289, 0.0
      %vm3395 = vcmp.gt.f32.partialorder %v3294, 0.0
      %vm3396 = vcmp.gt.f32.partialorder %v3297, 0.0
      %vm3397 = vcmp.gt.f32.partialorder %v3302, 0.0
      %vm3398 = vcmp.gt.f32.partialorder %v3305, 0.0
      %vm3399 = vcmp.gt.f32.partialorder %v3310, 0.0
      %vm3400 = vcmp.gt.f32.partialorder %v3313, 0.0
      %vm3401 = vcmp.gt.f32.partialorder %v3318, 0.0
      %vm3402 = vcmp.gt.f32.partialorder %v3321, 0.0
      %vm3403 = vcmp.gt.f32.partialorder %v3326, 0.0
      %vm3404 = vcmp.gt.f32.partialorder %v3329, 0.0
      %vm3405 = vcmp.gt.f32.partialorder %v3334, 0.0
      %vm3406 = vcmp.gt.f32.partialorder %v3337, 0.0
      %vm3407 = vcmp.gt.f32.partialorder %v3342, 0.0
      %vm3408 = vcmp.gt.f32.partialorder %v3345, 0.0
      %vm3409 = vcmp.gt.f32.partialorder %v3350, 0.0
      %vm3410 = vcmp.gt.f32.partialorder %v3353, 0.0
      %vm3411 = vcmp.gt.f32.partialorder %v3358, 0.0
      %vm3412 = vcmp.gt.f32.partialorder %v3361, 0.0
      %vm3413 = vcmp.gt.f32.partialorder %v3366, 0.0
      %vm3414 = vcmp.gt.f32.partialorder %v3369, 0.0
      %vm3415 = vcmp.gt.f32.partialorder %v3374, 0.0
      %vm3416 = vcmp.gt.f32.partialorder %v3377, 0.0
      %vm3417 = vcmp.gt.f32.partialorder %v3382, 0.0
      %v3418 = vmul.f32 %v3262, 0.01
      %v3419 = vmul.f32 %v3265, 0.01
      %v3420 = vmul.f32 %v3270, 0.01
      %v3421 = vmul.f32 %v3273, 0.01
      %v3422 = vmul.f32 %v3278, 0.01
      %v3423 = vmul.f32 %v3281, 0.01
      %v3424 = vmul.f32 %v3286, 0.01
      %v3425 = vmul.f32 %v3289, 0.01
      %v3426 = vmul.f32 %v3294, 0.01
      %v3427 = vmul.f32 %v3297, 0.01
      %v3428 = vmul.f32 %v3302, 0.01
      %v3429 = vmul.f32 %v3305, 0.01
      %v3430 = vmul.f32 %v3310, 0.01
      %v3431 = vmul.f32 %v3313, 0.01
      %v3432 = vmul.f32 %v3318, 0.01
      %v3433 = vmul.f32 %v3321, 0.01
      %v3434 = vmul.f32 %v3326, 0.01
      %v3435 = vmul.f32 %v3329, 0.01
      %v3436 = vmul.f32 %v3334, 0.01
      %v3437 = vmul.f32 %v3337, 0.01
      %v3438 = vmul.f32 %v3342, 0.01
      %v3439 = vmul.f32 %v3345, 0.01
      %v3440 = vmul.f32 %v3350, 0.01
      %v3441 = vmul.f32 %v3353, 0.01
      %v3442 = vmul.f32 %v3358, 0.01
      %v3443 = vmul.f32 %v3361, 0.01
      %v3444 = vmul.f32 %v3366, 0.01
      %v3445 = vmul.f32 %v3369, 0.01
      %v3446 = vmul.f32 %v3374, 0.01
      %v3447 = vmul.f32 %v3377, 0.01
      %v3448 = vmul.f32 %v3382, 0.01
      %v3449 = vsel %vm3387, %v3262, %v3418
      %v3450 = vsel %vm3388, %v3265, %v3419
      %v3451 = vsel %vm3389, %v3270, %v3420
      %v3452 = vsel %vm3390, %v3273, %v3421
      %v3453 = vsel %vm3391, %v3278, %v3422
      %v3454 = vsel %vm3392, %v3281, %v3423
      %v3455 = vsel %vm3393, %v3286, %v3424
      %v3456 = vsel %vm3394, %v3289, %v3425
      %v3457 = vsel %vm3395, %v3294, %v3426
      %v3458 = vsel %vm3396, %v3297, %v3427
      %v3459 = vsel %vm3397, %v3302, %v3428
      %v3460 = vsel %vm3398, %v3305, %v3429
      %v3461 = vsel %vm3399, %v3310, %v3430
      %v3462 = vsel %vm3400, %v3313, %v3431
      %v3463 = vsel %vm3401, %v3318, %v3432
      %v3464 = vsel %vm3402, %v3321, %v3433
      %v3465 = vsel %vm3403, %v3326, %v3434
      %v3466 = vsel %vm3404, %v3329, %v3435
      %v3467 = vsel %vm3405, %v3334, %v3436
      %v3468 = vsel %vm3406, %v3337, %v3437
      %v3469 = vsel %vm3407, %v3342, %v3438
      %v3470 = vsel %vm3408, %v3345, %v3439
      %v3471 = vsel %vm3409, %v3350, %v3440
      %v3472 = vsel %vm3410, %v3353, %v3441
      %v3473 = vsel %vm3411, %v3358, %v3442
      %v3474 = vsel %vm3412, %v3361, %v3443
      %v3475 = vsel %vm3413, %v3366, %v3444
      %v3476 = vsel %vm3414, %v3369, %v3445
      %v3477 = vsel %vm3415, %v3374, %v3446
      %v3478 = vsel %vm3416, %v3377, %v3447
      %v3479 = vsel %vm3417, %v3382, %v3448
      %v3480 = vpack.c.bf16 %v3450, %v3449
      %v3481 = vpack.c.bf16 %v3452, %v3451
      %v3482 = vpack.c.bf16 %v3454, %v3453
      %v3483 = vpack.c.bf16 %v3456, %v3455
      %v3484 = vpack.c.bf16 %v3458, %v3457
      %v3485 = vpack.c.bf16 %v3460, %v3459
      %v3486 = vpack.c.bf16 %v3462, %v3461
      %v3487 = vpack.c.bf16 %v3464, %v3463
      %v3488 = vpack.c.bf16 %v3466, %v3465
      %v3489 = vpack.c.bf16 %v3468, %v3467
      %v3490 = vpack.c.bf16 %v3470, %v3469
      %v3491 = vpack.c.bf16 %v3472, %v3471
      %v3492 = vpack.c.bf16 %v3474, %v3473
      %v3493 = vpack.c.bf16 %v3476, %v3475
      %v3494 = vpack.c.bf16 %v3478, %v3477
      %v3495 = vpack.c.bf16 %v3479, %v3479
      %v3496 = vld [vmem:[%s3] sm:$0xf]
      %v3497 = vld [vmem:[%s3 + $0x4] sm:$0xf]
      %v3498 = vld [vmem:[%s3 + $0x8] sm:$0xf]
      %v3499 = vld [vmem:[%s3 + $0xc] sm:$0xf]
      %v3500 = vld [vmem:[%s3 + $0x10] sm:$0xf]
      %v3501 = vld [vmem:[%s3 + $0x14] sm:$0xf]
      %v3502 = vld [vmem:[%s3 + $0x18] sm:$0xf]
      %v3503 = vld [vmem:[%s3 + $0x1c] sm:$0xf]
      %v3504 = vld [vmem:[%s3 + $0x20] sm:$0xf]
      %v3505 = vld [vmem:[%s3 + $0x24] sm:$0xf]
      %v3506 = vld [vmem:[%s3 + $0x28] sm:$0xf]
      %v3507 = vld [vmem:[%s3 + $0x2c] sm:$0xf]
      %v3508 = vld [vmem:[%s3 + $0x30] sm:$0xf]
      %v3509 = vld [vmem:[%s3 + $0x34] sm:$0xf]
      %v3510 = vld [vmem:[%s3 + $0x38] sm:$0xf]
      %v3511 = vld [vmem:[%s3 + $0x3c] sm:$0xf]
      %v3528 = vunpack.c.l.b16 %v3496
      %v3529 = vunpack.c.l.b16 %v3497
      %v3530 = vunpack.c.l.b16 %v3498
      %v3531 = vunpack.c.l.b16 %v3499
      %v3532 = vunpack.c.l.b16 %v3500
      %v3533 = vunpack.c.l.b16 %v3501
      %v3534 = vunpack.c.l.b16 %v3502
      %v3535 = vunpack.c.l.b16 %v3503
      %v3536 = vunpack.c.l.b16 %v3504
      %v3537 = vunpack.c.l.b16 %v3505
      %v3538 = vunpack.c.l.b16 %v3506
      %v3539 = vunpack.c.l.b16 %v3507
      %v3540 = vunpack.c.l.b16 %v3508
      %v3541 = vunpack.c.l.b16 %v3509
      %v3542 = vunpack.c.l.b16 %v3510
      %v3543 = vunpack.c.l.b16 %v3511
      %v3544 = vpack.c.b16 %v3529, %v3528
      %v3545 = vpack.c.b16 %v3531, %v3530
      %v3546 = vpack.c.b16 %v3533, %v3532
      %v3547 = vpack.c.b16 %v3535, %v3534
      %v3548 = vpack.c.b16 %v3537, %v3536
      %v3549 = vpack.c.b16 %v3539, %v3538
      %v3550 = vpack.c.b16 %v3541, %v3540
      %v3551 = vpack.c.b16 %v3543, %v3542
      %3560 = vmatprep.subr.bf16.mxu0 0
      %3561 = vmatpush1.bf16.msra.mxu0 %v3551
      %3562 = vmatprep.subr.bf16.mxu0 0
      %3563 = vmatpush1.bf16.msra.mxu0 %v3550
      %3564 = vmatprep.subr.bf16.mxu0 0
      %3565 = vmatpush1.bf16.msra.mxu0 %v3549
      %3566 = vmatprep.subr.bf16.mxu0 0
      %3567 = vmatpush1.bf16.msra.mxu0 %v3548
      %3568 = vmatprep.subr.bf16.mxu0 0
      %3569 = vmatpush1.bf16.msra.mxu0 %v3547
      %3570 = vmatprep.subr.bf16.mxu0 0
      %3571 = vmatpush1.bf16.msra.mxu0 %v3546
      %3572 = vmatprep.subr.bf16.mxu0 0
      %3573 = vmatpush1.bf16.msra.mxu0 %v3545
      %3574 = vmatprep.subr.bf16.mxu0 0
      %3575 = vmatpush1.bf16.msra.mxu0 %v3544
      %3576 = vmatprep.subr.bf16.mxu0 0
      %3577 = vmatpush2.bf16.msra.mxu0 0
      %3578 = vmatprep.subr.bf16.mxu0 0
      %3579 = vmatpush2.bf16.msra.mxu0 0
      %3580 = vmatprep.subr.bf16.mxu0 0
      %3581 = vmatpush2.bf16.msra.mxu0 0
      %3582 = vmatprep.subr.bf16.mxu0 0
      %3583 = vmatpush2.bf16.msra.mxu0 0
      %3584 = vmatprep.subr.bf16.mxu0 0
      %3585 = vmatpush2.bf16.msra.mxu0 0
      %3586 = vmatprep.subr.bf16.mxu0 0
      %3587 = vmatpush2.bf16.msra.mxu0 0
      %3588 = vmatprep.subr.bf16.mxu0 0
      %3589 = vmatpush2.bf16.msra.mxu0 0
      %3590 = vmatprep.subr.bf16.mxu0 0
      %3591 = vmatpush2.bf16.msra.mxu0 0
      %3592 = vmatprep.mubr.bf16.mxu0 0
      %3593 = vmatmul.mubr.bf16.gmra.mxu0 %v3480
      %v3594 = vpop.f32.mrf.mxu0
      %v3595 = vadd.f32 %v921, %v3594
      %v3596 = vpop.f32.mrf.mxu0
      %v3597 = vpop.f32.mrf.mxu0
      %v3598 = vadd.f32 %v921, %v3597
      %v3599 = vpop.f32.mrf.mxu0
      %3600 = vmatprep.mubr.bf16.mxu0 0
      %3601 = vmatmul.mubr.bf16.gmra.mxu0 %v3481
      %v3602 = vpop.f32.mrf.mxu0
      %v3603 = vadd.f32 %v921, %v3602
      %v3604 = vpop.f32.mrf.mxu0
      %v3605 = vpop.f32.mrf.mxu0
      %v3606 = vadd.f32 %v921, %v3605
      %v3607 = vpop.f32.mrf.mxu0
      %3608 = vmatprep.mubr.bf16.mxu0 0
      %3609 = vmatmul.mubr.bf16.gmra.mxu0 %v3482
      %v3610 = vpop.f32.mrf.mxu0
      %v3611 = vadd.f32 %v921, %v3610
      %v3612 = vpop.f32.mrf.mxu0
      %v3613 = vpop.f32.mrf.mxu0
      %v3614 = vadd.f32 %v921, %v3613
      %v3615 = vpop.f32.mrf.mxu0
      %3616 = vmatprep.mubr.bf16.mxu0 0
      %3617 = vmatmul.mubr.bf16.gmra.mxu0 %v3483
      %v3618 = vpop.f32.mrf.mxu0
      %v3619 = vadd.f32 %v921, %v3618
      %v3620 = vpop.f32.mrf.mxu0
      %v3621 = vpop.f32.mrf.mxu0
      %v3622 = vadd.f32 %v921, %v3621
      %v3623 = vpop.f32.mrf.mxu0
      %3624 = vmatprep.mubr.bf16.mxu0 0
      %3625 = vmatmul.mubr.bf16.gmra.mxu0 %v3484
      %v3626 = vpop.f32.mrf.mxu0
      %v3627 = vadd.f32 %v921, %v3626
      %v3628 = vpop.f32.mrf.mxu0
      %v3629 = vpop.f32.mrf.mxu0
      %v3630 = vadd.f32 %v921, %v3629
      %v3631 = vpop.f32.mrf.mxu0
      %3632 = vmatprep.mubr.bf16.mxu0 0
      %3633 = vmatmul.mubr.bf16.gmra.mxu0 %v3485
      %v3634 = vpop.f32.mrf.mxu0
      %v3635 = vadd.f32 %v921, %v3634
      %v3636 = vpop.f32.mrf.mxu0
      %v3637 = vpop.f32.mrf.mxu0
      %v3638 = vadd.f32 %v921, %v3637
      %v3639 = vpop.f32.mrf.mxu0
      %3640 = vmatprep.mubr.bf16.mxu0 0
      %3641 = vmatmul.mubr.bf16.gmra.mxu0 %v3486
      %v3642 = vpop.f32.mrf.mxu0
      %v3643 = vadd.f32 %v921, %v3642
      %v3644 = vpop.f32.mrf.mxu0
      %v3645 = vpop.f32.mrf.mxu0
      %v3646 = vadd.f32 %v921, %v3645
      %v3647 = vpop.f32.mrf.mxu0
      %3648 = vmatprep.mubr.bf16.mxu0 0
      %3649 = vmatmul.mubr.bf16.gmra.mxu0 %v3487
      %v3650 = vpop.f32.mrf.mxu0
      %v3651 = vadd.f32 %v921, %v3650
      %v3652 = vpop.f32.mrf.mxu0
      %v3653 = vpop.f32.mrf.mxu0
      %v3654 = vadd.f32 %v921, %v3653
      %v3655 = vpop.f32.mrf.mxu0
      %3656 = vmatprep.mubr.bf16.mxu0 0
      %3657 = vmatmul.mubr.bf16.gmra.mxu0 %v3488
      %v3658 = vpop.f32.mrf.mxu0
      %v3659 = vadd.f32 %v921, %v3658
      %v3660 = vpop.f32.mrf.mxu0
      %v3661 = vpop.f32.mrf.mxu0
      %v3662 = vadd.f32 %v921, %v3661
      %v3663 = vpop.f32.mrf.mxu0
      %3664 = vmatprep.mubr.bf16.mxu0 0
      %3665 = vmatmul.mubr.bf16.gmra.mxu0 %v3489
      %v3666 = vpop.f32.mrf.mxu0
      %v3667 = vadd.f32 %v921, %v3666
      %v3668 = vpop.f32.mrf.mxu0
      %v3669 = vpop.f32.mrf.mxu0
      %v3670 = vadd.f32 %v921, %v3669
      %v3671 = vpop.f32.mrf.mxu0
      %3672 = vmatprep.mubr.bf16.mxu0 0
      %3673 = vmatmul.mubr.bf16.gmra.mxu0 %v3490
      %v3674 = vpop.f32.mrf.mxu0
      %v3675 = vadd.f32 %v921, %v3674
      %v3676 = vpop.f32.mrf.mxu0
      %v3677 = vpop.f32.mrf.mxu0
      %v3678 = vadd.f32 %v921, %v3677
      %v3679 = vpop.f32.mrf.mxu0
      %3680 = vmatprep.mubr.bf16.mxu0 0
      %3681 = vmatmul.mubr.bf16.gmra.mxu0 %v3491
      %v3682 = vpop.f32.mrf.mxu0
      %v3683 = vadd.f32 %v921, %v3682
      %v3684 = vpop.f32.mrf.mxu0
      %v3685 = vpop.f32.mrf.mxu0
      %v3686 = vadd.f32 %v921, %v3685
      %v3687 = vpop.f32.mrf.mxu0
      %3688 = vmatprep.mubr.bf16.mxu0 0
      %3689 = vmatmul.mubr.bf16.gmra.mxu0 %v3492
      %v3690 = vpop.f32.mrf.mxu0
      %v3691 = vadd.f32 %v921, %v3690
      %v3692 = vpop.f32.mrf.mxu0
      %v3693 = vpop.f32.mrf.mxu0
      %v3694 = vadd.f32 %v921, %v3693
      %v3695 = vpop.f32.mrf.mxu0
      %3696 = vmatprep.mubr.bf16.mxu0 0
      %3697 = vmatmul.mubr.bf16.gmra.mxu0 %v3493
      %v3698 = vpop.f32.mrf.mxu0
      %v3699 = vadd.f32 %v921, %v3698
      %v3700 = vpop.f32.mrf.mxu0
      %v3701 = vpop.f32.mrf.mxu0
      %v3702 = vadd.f32 %v921, %v3701
      %v3703 = vpop.f32.mrf.mxu0
      %3704 = vmatprep.mubr.bf16.mxu0 0
      %3705 = vmatmul.mubr.bf16.gmra.mxu0 %v3494
      %v3706 = vpop.f32.mrf.mxu0
      %v3707 = vadd.f32 %v921, %v3706
      %v3708 = vpop.f32.mrf.mxu0
      %v3709 = vpop.f32.mrf.mxu0
      %v3710 = vadd.f32 %v921, %v3709
      %v3711 = vpop.f32.mrf.mxu0
      %3712 = vmatprep.mubr.bf16.mxu0 0
      %3713 = vmatmul.mubr.bf16.gmra.mxu0 %v3495
      %v3714 = vpop.f32.mrf.mxu0
      %v3715 = vadd.f32 %v921, %v3714
      %v3716 = vpop.f32.mrf.mxu0
      %v3717 = vpop.f32.mrf.mxu0
      %v3718 = vpop.f32.mrf.mxu0
      %3719 = vdwg.mxu0
      %vm3720 = vcmp.gt.f32.partialorder %v3595, 0.0
      %vm3721 = vcmp.gt.f32.partialorder %v3598, 0.0
      %vm3722 = vcmp.gt.f32.partialorder %v3603, 0.0
      %vm3723 = vcmp.gt.f32.partialorder %v3606, 0.0
      %vm3724 = vcmp.gt.f32.partialorder %v3611, 0.0
      %vm3725 = vcmp.gt.f32.partialorder %v3614, 0.0
      %vm3726 = vcmp.gt.f32.partialorder %v3619, 0.0
      %vm3727 = vcmp.gt.f32.partialorder %v3622, 0.0
      %vm3728 = vcmp.gt.f32.partialorder %v3627, 0.0
      %vm3729 = vcmp.gt.f32.partialorder %v3630, 0.0
      %vm3730 = vcmp.gt.f32.partialorder %v3635, 0.0
      %vm3731 = vcmp.gt.f32.partialorder %v3638, 0.0
      %vm3732 = vcmp.gt.f32.partialorder %v3643, 0.0
      %vm3733 = vcmp.gt.f32.partialorder %v3646, 0.0
      %vm3734 = vcmp.gt.f32.partialorder %v3651, 0.0
      %vm3735 = vcmp.gt.f32.partialorder %v3654, 0.0
      %vm3736 = vcmp.gt.f32.partialorder %v3659, 0.0
      %vm3737 = vcmp.gt.f32.partialorder %v3662, 0.0
      %vm3738 = vcmp.gt.f32.partialorder %v3667, 0.0
      %vm3739 = vcmp.gt.f32.partialorder %v3670, 0.0
      %vm3740 = vcmp.gt.f32.partialorder %v3675, 0.0
      %vm3741 = vcmp.gt.f32.partialorder %v3678, 0.0
      %vm3742 = vcmp.gt.f32.partialorder %v3683, 0.0
      %vm3743 = vcmp.gt.f32.partialorder %v3686, 0.0
      %vm3744 = vcmp.gt.f32.partialorder %v3691, 0.0
      %vm3745 = vcmp.gt.f32.partialorder %v3694, 0.0
      %vm3746 = vcmp.gt.f32.partialorder %v3699, 0.0
      %vm3747 = vcmp.gt.f32.partialorder %v3702, 0.0
      %vm3748 = vcmp.gt.f32.partialorder %v3707, 0.0
      %vm3749 = vcmp.gt.f32.partialorder %v3710, 0.0
      %vm3750 = vcmp.gt.f32.partialorder %v3715, 0.0
      %v3751 = vmul.f32 %v3595, 0.01
      %v3752 = vmul.f32 %v3598, 0.01
      %v3753 = vmul.f32 %v3603, 0.01
      %v3754 = vmul.f32 %v3606, 0.01
      %v3755 = vmul.f32 %v3611, 0.01
      %v3756 = vmul.f32 %v3614, 0.01
      %v3757 = vmul.f32 %v3619, 0.01
      %v3758 = vmul.f32 %v3622, 0.01
      %v3759 = vmul.f32 %v3627, 0.01
      %v3760 = vmul.f32 %v3630, 0.01
      %v3761 = vmul.f32 %v3635, 0.01
      %v3762 = vmul.f32 %v3638, 0.01
      %v3763 = vmul.f32 %v3643, 0.01
      %v3764 = vmul.f32 %v3646, 0.01
      %v3765 = vmul.f32 %v3651, 0.01
      %v3766 = vmul.f32 %v3654, 0.01
      %v3767 = vmul.f32 %v3659, 0.01
      %v3768 = vmul.f32 %v3662, 0.01
      %v3769 = vmul.f32 %v3667, 0.01
      %v3770 = vmul.f32 %v3670, 0.01
      %v3771 = vmul.f32 %v3675, 0.01
      %v3772 = vmul.f32 %v3678, 0.01
      %v3773 = vmul.f32 %v3683, 0.01
      %v3774 = vmul.f32 %v3686, 0.01
      %v3775 = vmul.f32 %v3691, 0.01
      %v3776 = vmul.f32 %v3694, 0.01
      %v3777 = vmul.f32 %v3699, 0.01
      %v3778 = vmul.f32 %v3702, 0.01
      %v3779 = vmul.f32 %v3707, 0.01
      %v3780 = vmul.f32 %v3710, 0.01
      %v3781 = vmul.f32 %v3715, 0.01
      %v3782 = vsel %vm3720, %v3595, %v3751
      %v3783 = vsel %vm3721, %v3598, %v3752
      %v3784 = vsel %vm3722, %v3603, %v3753
      %v3785 = vsel %vm3723, %v3606, %v3754
      %v3786 = vsel %vm3724, %v3611, %v3755
      %v3787 = vsel %vm3725, %v3614, %v3756
      %v3788 = vsel %vm3726, %v3619, %v3757
      %v3789 = vsel %vm3727, %v3622, %v3758
      %v3790 = vsel %vm3728, %v3627, %v3759
      %v3791 = vsel %vm3729, %v3630, %v3760
      %v3792 = vsel %vm3730, %v3635, %v3761
      %v3793 = vsel %vm3731, %v3638, %v3762
      %v3794 = vsel %vm3732, %v3643, %v3763
      %v3795 = vsel %vm3733, %v3646, %v3764
      %v3796 = vsel %vm3734, %v3651, %v3765
      %v3797 = vsel %vm3735, %v3654, %v3766
      %v3798 = vsel %vm3736, %v3659, %v3767
      %v3799 = vsel %vm3737, %v3662, %v3768
      %v3800 = vsel %vm3738, %v3667, %v3769
      %v3801 = vsel %vm3739, %v3670, %v3770
      %v3802 = vsel %vm3740, %v3675, %v3771
      %v3803 = vsel %vm3741, %v3678, %v3772
      %v3804 = vsel %vm3742, %v3683, %v3773
      %v3805 = vsel %vm3743, %v3686, %v3774
      %v3806 = vsel %vm3744, %v3691, %v3775
      %v3807 = vsel %vm3745, %v3694, %v3776
      %v3808 = vsel %vm3746, %v3699, %v3777
      %v3809 = vsel %vm3747, %v3702, %v3778
      %v3810 = vsel %vm3748, %v3707, %v3779
      %v3811 = vsel %vm3749, %v3710, %v3780
      %v3812 = vsel %vm3750, %v3715, %v3781
      %v3813 = vpack.c.bf16 %v3783, %v3782
      %v3814 = vpack.c.bf16 %v3785, %v3784
      %v3815 = vpack.c.bf16 %v3787, %v3786
      %v3816 = vpack.c.bf16 %v3789, %v3788
      %v3817 = vpack.c.bf16 %v3791, %v3790
      %v3818 = vpack.c.bf16 %v3793, %v3792
      %v3819 = vpack.c.bf16 %v3795, %v3794
      %v3820 = vpack.c.bf16 %v3797, %v3796
      %v3821 = vpack.c.bf16 %v3799, %v3798
      %v3822 = vpack.c.bf16 %v3801, %v3800
      %v3823 = vpack.c.bf16 %v3803, %v3802
      %v3824 = vpack.c.bf16 %v3805, %v3804
      %v3825 = vpack.c.bf16 %v3807, %v3806
      %v3826 = vpack.c.bf16 %v3809, %v3808
      %v3827 = vpack.c.bf16 %v3811, %v3810
      %v3828 = vpack.c.bf16 %v3812, %v3812
      %v3829 = vld [vmem:[%s5] sm:$0xf]
      %v3830 = vld [vmem:[%s5 + $0x4] sm:$0xf]
      %v3831 = vld [vmem:[%s5 + $0x8] sm:$0xf]
      %v3832 = vld [vmem:[%s5 + $0xc] sm:$0xf]
      %v3833 = vld [vmem:[%s5 + $0x10] sm:$0xf]
      %v3834 = vld [vmem:[%s5 + $0x14] sm:$0xf]
      %v3835 = vld [vmem:[%s5 + $0x18] sm:$0xf]
      %v3836 = vld [vmem:[%s5 + $0x1c] sm:$0xf]
      %v3837 = vld [vmem:[%s5 + $0x20] sm:$0xf]
      %v3838 = vld [vmem:[%s5 + $0x24] sm:$0xf]
      %v3839 = vld [vmem:[%s5 + $0x28] sm:$0xf]
      %v3840 = vld [vmem:[%s5 + $0x2c] sm:$0xf]
      %v3841 = vld [vmem:[%s5 + $0x30] sm:$0xf]
      %v3842 = vld [vmem:[%s5 + $0x34] sm:$0xf]
      %v3843 = vld [vmem:[%s5 + $0x38] sm:$0xf]
      %v3844 = vld [vmem:[%s5 + $0x3c] sm:$0xf]
      %v3861 = vunpack.c.l.b16 %v3829
      %v3862 = vunpack.c.l.b16 %v3830
      %v3863 = vunpack.c.l.b16 %v3831
      %v3864 = vunpack.c.l.b16 %v3832
      %v3865 = vunpack.c.l.b16 %v3833
      %v3866 = vunpack.c.l.b16 %v3834
      %v3867 = vunpack.c.l.b16 %v3835
      %v3868 = vunpack.c.l.b16 %v3836
      %v3869 = vunpack.c.l.b16 %v3837
      %v3870 = vunpack.c.l.b16 %v3838
      %v3871 = vunpack.c.l.b16 %v3839
      %v3872 = vunpack.c.l.b16 %v3840
      %v3873 = vunpack.c.l.b16 %v3841
      %v3874 = vunpack.c.l.b16 %v3842
      %v3875 = vunpack.c.l.b16 %v3843
      %v3876 = vunpack.c.l.b16 %v3844
      %v3877 = vpack.c.b16 %v3862, %v3861
      %v3878 = vpack.c.b16 %v3864, %v3863
      %v3879 = vpack.c.b16 %v3866, %v3865
      %v3880 = vpack.c.b16 %v3868, %v3867
      %v3881 = vpack.c.b16 %v3870, %v3869
      %v3882 = vpack.c.b16 %v3872, %v3871
      %v3883 = vpack.c.b16 %v3874, %v3873
      %v3884 = vpack.c.b16 %v3876, %v3875
      %3893 = vmatprep.subr.bf16.mxu0 0
      %3894 = vmatpush1.bf16.msra.mxu0 %v3884
      %3895 = vmatprep.subr.bf16.mxu0 0
      %3896 = vmatpush1.bf16.msra.mxu0 %v3883
      %3897 = vmatprep.subr.bf16.mxu0 0
      %3898 = vmatpush1.bf16.msra.mxu0 %v3882
      %3899 = vmatprep.subr.bf16.mxu0 0
      %3900 = vmatpush1.bf16.msra.mxu0 %v3881
      %3901 = vmatprep.subr.bf16.mxu0 0
      %3902 = vmatpush1.bf16.msra.mxu0 %v3880
      %3903 = vmatprep.subr.bf16.mxu0 0
      %3904 = vmatpush1.bf16.msra.mxu0 %v3879
      %3905 = vmatprep.subr.bf16.mxu0 0
      %3906 = vmatpush1.bf16.msra.mxu0 %v3878
      %3907 = vmatprep.subr.bf16.mxu0 0
      %3908 = vmatpush1.bf16.msra.mxu0 %v3877
      %3909 = vmatprep.subr.bf16.mxu0 0
      %3910 = vmatpush2.bf16.msra.mxu0 0
      %3911 = vmatprep.subr.bf16.mxu0 0
      %3912 = vmatpush2.bf16.msra.mxu0 0
      %3913 = vmatprep.subr.bf16.mxu0 0
      %3914 = vmatpush2.bf16.msra.mxu0 0
      %3915 = vmatprep.subr.bf16.mxu0 0
      %3916 = vmatpush2.bf16.msra.mxu0 0
      %3917 = vmatprep.subr.bf16.mxu0 0
      %3918 = vmatpush2.bf16.msra.mxu0 0
      %3919 = vmatprep.subr.bf16.mxu0 0
      %3920 = vmatpush2.bf16.msra.mxu0 0
      %3921 = vmatprep.subr.bf16.mxu0 0
      %3922 = vmatpush2.bf16.msra.mxu0 0
      %3923 = vmatprep.subr.bf16.mxu0 0
      %3924 = vmatpush2.bf16.msra.mxu0 0
      %3925 = vmatprep.mubr.bf16.mxu0 0
      %3926 = vmatmul.mubr.bf16.gmra.mxu0 %v3813
      %v3927 = vpop.f32.mrf.mxu0
      %v3928 = vadd.f32 %v1264, %v3927
      %v3929 = vpop.f32.mrf.mxu0
      %v3930 = vpop.f32.mrf.mxu0
      %v3931 = vadd.f32 %v1264, %v3930
      %v3932 = vpop.f32.mrf.mxu0
      %3933 = vmatprep.mubr.bf16.mxu0 0
      %3934 = vmatmul.mubr.bf16.gmra.mxu0 %v3814
      %v3935 = vpop.f32.mrf.mxu0
      %v3936 = vadd.f32 %v1264, %v3935
      %v3937 = vpop.f32.mrf.mxu0
      %v3938 = vpop.f32.mrf.mxu0
      %v3939 = vadd.f32 %v1264, %v3938
      %v3940 = vpop.f32.mrf.mxu0
      %3941 = vmatprep.mubr.bf16.mxu0 0
      %3942 = vmatmul.mubr.bf16.gmra.mxu0 %v3815
      %v3943 = vpop.f32.mrf.mxu0
      %v3944 = vadd.f32 %v1264, %v3943
      %v3945 = vpop.f32.mrf.mxu0
      %v3946 = vpop.f32.mrf.mxu0
      %v3947 = vadd.f32 %v1264, %v3946
      %v3948 = vpop.f32.mrf.mxu0
      %3949 = vmatprep.mubr.bf16.mxu0 0
      %3950 = vmatmul.mubr.bf16.gmra.mxu0 %v3816
      %v3951 = vpop.f32.mrf.mxu0
      %v3952 = vadd.f32 %v1264, %v3951
      %v3953 = vpop.f32.mrf.mxu0
      %v3954 = vpop.f32.mrf.mxu0
      %v3955 = vadd.f32 %v1264, %v3954
      %v3956 = vpop.f32.mrf.mxu0
      %3957 = vmatprep.mubr.bf16.mxu0 0
      %3958 = vmatmul.mubr.bf16.gmra.mxu0 %v3817
      %v3959 = vpop.f32.mrf.mxu0
      %v3960 = vadd.f32 %v1264, %v3959
      %v3961 = vpop.f32.mrf.mxu0
      %v3962 = vpop.f32.mrf.mxu0
      %v3963 = vadd.f32 %v1264, %v3962
      %v3964 = vpop.f32.mrf.mxu0
      %3965 = vmatprep.mubr.bf16.mxu0 0
      %3966 = vmatmul.mubr.bf16.gmra.mxu0 %v3818
      %v3967 = vpop.f32.mrf.mxu0
      %v3968 = vadd.f32 %v1264, %v3967
      %v3969 = vpop.f32.mrf.mxu0
      %v3970 = vpop.f32.mrf.mxu0
      %v3971 = vadd.f32 %v1264, %v3970
      %v3972 = vpop.f32.mrf.mxu0
      %3973 = vmatprep.mubr.bf16.mxu0 0
      %3974 = vmatmul.mubr.bf16.gmra.mxu0 %v3819
      %v3975 = vpop.f32.mrf.mxu0
      %v3976 = vadd.f32 %v1264, %v3975
      %v3977 = vpop.f32.mrf.mxu0
      %v3978 = vpop.f32.mrf.mxu0
      %v3979 = vadd.f32 %v1264, %v3978
      %v3980 = vpop.f32.mrf.mxu0
      %3981 = vmatprep.mubr.bf16.mxu0 0
      %3982 = vmatmul.mubr.bf16.gmra.mxu0 %v3820
      %v3983 = vpop.f32.mrf.mxu0
      %v3984 = vadd.f32 %v1264, %v3983
      %v3985 = vpop.f32.mrf.mxu0
      %v3986 = vpop.f32.mrf.mxu0
      %v3987 = vadd.f32 %v1264, %v3986
      %v3988 = vpop.f32.mrf.mxu0
      %3989 = vmatprep.mubr.bf16.mxu0 0
      %3990 = vmatmul.mubr.bf16.gmra.mxu0 %v3821
      %v3991 = vpop.f32.mrf.mxu0
      %v3992 = vadd.f32 %v1264, %v3991
      %v3993 = vpop.f32.mrf.mxu0
      %v3994 = vpop.f32.mrf.mxu0
      %v3995 = vadd.f32 %v1264, %v3994
      %v3996 = vpop.f32.mrf.mxu0
      %3997 = vmatprep.mubr.bf16.mxu0 0
      %3998 = vmatmul.mubr.bf16.gmra.mxu0 %v3822
      %v3999 = vpop.f32.mrf.mxu0
      %v4000 = vadd.f32 %v1264, %v3999
      %v4001 = vpop.f32.mrf.mxu0
      %v4002 = vpop.f32.mrf.mxu0
      %v4003 = vadd.f32 %v1264, %v4002
      %v4004 = vpop.f32.mrf.mxu0
      %4005 = vmatprep.mubr.bf16.mxu0 0
      %4006 = vmatmul.mubr.bf16.gmra.mxu0 %v3823
      %v4007 = vpop.f32.mrf.mxu0
      %v4008 = vadd.f32 %v1264, %v4007
      %v4009 = vpop.f32.mrf.mxu0
      %v4010 = vpop.f32.mrf.mxu0
      %v4011 = vadd.f32 %v1264, %v4010
      %v4012 = vpop.f32.mrf.mxu0
      %4013 = vmatprep.mubr.bf16.mxu0 0
      %4014 = vmatmul.mubr.bf16.gmra.mxu0 %v3824
      %v4015 = vpop.f32.mrf.mxu0
      %v4016 = vadd.f32 %v1264, %v4015
      %v4017 = vpop.f32.mrf.mxu0
      %v4018 = vpop.f32.mrf.mxu0
      %v4019 = vadd.f32 %v1264, %v4018
      %v4020 = vpop.f32.mrf.mxu0
      %4021 = vmatprep.mubr.bf16.mxu0 0
      %4022 = vmatmul.mubr.bf16.gmra.mxu0 %v3825
      %v4023 = vpop.f32.mrf.mxu0
      %v4024 = vadd.f32 %v1264, %v4023
      %v4025 = vpop.f32.mrf.mxu0
      %v4026 = vpop.f32.mrf.mxu0
      %v4027 = vadd.f32 %v1264, %v4026
      %v4028 = vpop.f32.mrf.mxu0
      %4029 = vmatprep.mubr.bf16.mxu0 0
      %4030 = vmatmul.mubr.bf16.gmra.mxu0 %v3826
      %v4031 = vpop.f32.mrf.mxu0
      %v4032 = vadd.f32 %v1264, %v4031
      %v4033 = vpop.f32.mrf.mxu0
      %v4034 = vpop.f32.mrf.mxu0
      %v4035 = vadd.f32 %v1264, %v4034
      %v4036 = vpop.f32.mrf.mxu0
      %4037 = vmatprep.mubr.bf16.mxu0 0
      %4038 = vmatmul.mubr.bf16.gmra.mxu0 %v3827
      %v4039 = vpop.f32.mrf.mxu0
      %v4040 = vadd.f32 %v1264, %v4039
      %v4041 = vpop.f32.mrf.mxu0
      %v4042 = vpop.f32.mrf.mxu0
      %v4043 = vadd.f32 %v1264, %v4042
      %v4044 = vpop.f32.mrf.mxu0
      %4045 = vmatprep.mubr.bf16.mxu0 0
      %4046 = vmatmul.mubr.bf16.gmra.mxu0 %v3828
      %v4047 = vpop.f32.mrf.mxu0
      %v4048 = vadd.f32 %v1264, %v4047
      %v4049 = vpop.f32.mrf.mxu0
      %v4050 = vpop.f32.mrf.mxu0
      %v4051 = vpop.f32.mrf.mxu0
      %4052 = vdwg.mxu0
      %vm4053 = vcmp.gt.f32.partialorder %v3928, 0.0
      %vm4054 = vcmp.gt.f32.partialorder %v3931, 0.0
      %vm4055 = vcmp.gt.f32.partialorder %v3936, 0.0
      %vm4056 = vcmp.gt.f32.partialorder %v3939, 0.0
      %vm4057 = vcmp.gt.f32.partialorder %v3944, 0.0
      %vm4058 = vcmp.gt.f32.partialorder %v3947, 0.0
      %vm4059 = vcmp.gt.f32.partialorder %v3952, 0.0
      %vm4060 = vcmp.gt.f32.partialorder %v3955, 0.0
      %vm4061 = vcmp.gt.f32.partialorder %v3960, 0.0
      %vm4062 = vcmp.gt.f32.partialorder %v3963, 0.0
      %vm4063 = vcmp.gt.f32.partialorder %v3968, 0.0
      %vm4064 = vcmp.gt.f32.partialorder %v3971, 0.0
      %vm4065 = vcmp.gt.f32.partialorder %v3976, 0.0
      %vm4066 = vcmp.gt.f32.partialorder %v3979, 0.0
      %vm4067 = vcmp.gt.f32.partialorder %v3984, 0.0
      %vm4068 = vcmp.gt.f32.partialorder %v3987, 0.0
      %vm4069 = vcmp.gt.f32.partialorder %v3992, 0.0
      %vm4070 = vcmp.gt.f32.partialorder %v3995, 0.0
      %vm4071 = vcmp.gt.f32.partialorder %v4000, 0.0
      %vm4072 = vcmp.gt.f32.partialorder %v4003, 0.0
      %vm4073 = vcmp.gt.f32.partialorder %v4008, 0.0
      %vm4074 = vcmp.gt.f32.partialorder %v4011, 0.0
      %vm4075 = vcmp.gt.f32.partialorder %v4016, 0.0
      %vm4076 = vcmp.gt.f32.partialorder %v4019, 0.0
      %vm4077 = vcmp.gt.f32.partialorder %v4024, 0.0
      %vm4078 = vcmp.gt.f32.partialorder %v4027, 0.0
      %vm4079 = vcmp.gt.f32.partialorder %v4032, 0.0
      %vm4080 = vcmp.gt.f32.partialorder %v4035, 0.0
      %vm4081 = vcmp.gt.f32.partialorder %v4040, 0.0
      %vm4082 = vcmp.gt.f32.partialorder %v4043, 0.0
      %vm4083 = vcmp.gt.f32.partialorder %v4048, 0.0
      %v4084 = vmul.f32 %v3928, 0.01
      %v4085 = vmul.f32 %v3931, 0.01
      %v4086 = vmul.f32 %v3936, 0.01
      %v4087 = vmul.f32 %v3939, 0.01
      %v4088 = vmul.f32 %v3944, 0.01
      %v4089 = vmul.f32 %v3947, 0.01
      %v4090 = vmul.f32 %v3952, 0.01
      %v4091 = vmul.f32 %v3955, 0.01
      %v4092 = vmul.f32 %v3960, 0.01
      %v4093 = vmul.f32 %v3963, 0.01
      %v4094 = vmul.f32 %v3968, 0.01
      %v4095 = vmul.f32 %v3971, 0.01
      %v4096 = vmul.f32 %v3976, 0.01
      %v4097 = vmul.f32 %v3979, 0.01
      %v4098 = vmul.f32 %v3984, 0.01
      %v4099 = vmul.f32 %v3987, 0.01
      %v4100 = vmul.f32 %v3992, 0.01
      %v4101 = vmul.f32 %v3995, 0.01
      %v4102 = vmul.f32 %v4000, 0.01
      %v4103 = vmul.f32 %v4003, 0.01
      %v4104 = vmul.f32 %v4008, 0.01
      %v4105 = vmul.f32 %v4011, 0.01
      %v4106 = vmul.f32 %v4016, 0.01
      %v4107 = vmul.f32 %v4019, 0.01
      %v4108 = vmul.f32 %v4024, 0.01
      %v4109 = vmul.f32 %v4027, 0.01
      %v4110 = vmul.f32 %v4032, 0.01
      %v4111 = vmul.f32 %v4035, 0.01
      %v4112 = vmul.f32 %v4040, 0.01
      %v4113 = vmul.f32 %v4043, 0.01
      %v4114 = vmul.f32 %v4048, 0.01
      %v4115 = vsel %vm4053, %v3928, %v4084
      %v4116 = vsel %vm4054, %v3931, %v4085
      %v4117 = vsel %vm4055, %v3936, %v4086
      %v4118 = vsel %vm4056, %v3939, %v4087
      %v4119 = vsel %vm4057, %v3944, %v4088
      %v4120 = vsel %vm4058, %v3947, %v4089
      %v4121 = vsel %vm4059, %v3952, %v4090
      %v4122 = vsel %vm4060, %v3955, %v4091
      %v4123 = vsel %vm4061, %v3960, %v4092
      %v4124 = vsel %vm4062, %v3963, %v4093
      %v4125 = vsel %vm4063, %v3968, %v4094
      %v4126 = vsel %vm4064, %v3971, %v4095
      %v4127 = vsel %vm4065, %v3976, %v4096
      %v4128 = vsel %vm4066, %v3979, %v4097
      %v4129 = vsel %vm4067, %v3984, %v4098
      %v4130 = vsel %vm4068, %v3987, %v4099
      %v4131 = vsel %vm4069, %v3992, %v4100
      %v4132 = vsel %vm4070, %v3995, %v4101
      %v4133 = vsel %vm4071, %v4000, %v4102
      %v4134 = vsel %vm4072, %v4003, %v4103
      %v4135 = vsel %vm4073, %v4008, %v4104
      %v4136 = vsel %vm4074, %v4011, %v4105
      %v4137 = vsel %vm4075, %v4016, %v4106
      %v4138 = vsel %vm4076, %v4019, %v4107
      %v4139 = vsel %vm4077, %v4024, %v4108
      %v4140 = vsel %vm4078, %v4027, %v4109
      %v4141 = vsel %vm4079, %v4032, %v4110
      %v4142 = vsel %vm4080, %v4035, %v4111
      %v4143 = vsel %vm4081, %v4040, %v4112
      %v4144 = vsel %vm4082, %v4043, %v4113
      %v4145 = vsel %vm4083, %v4048, %v4114
      %v4146 = vpack.c.bf16 %v4116, %v4115
      %v4147 = vpack.c.bf16 %v4118, %v4117
      %v4148 = vpack.c.bf16 %v4120, %v4119
      %v4149 = vpack.c.bf16 %v4122, %v4121
      %v4150 = vpack.c.bf16 %v4124, %v4123
      %v4151 = vpack.c.bf16 %v4126, %v4125
      %v4152 = vpack.c.bf16 %v4128, %v4127
      %v4153 = vpack.c.bf16 %v4130, %v4129
      %v4154 = vpack.c.bf16 %v4132, %v4131
      %v4155 = vpack.c.bf16 %v4134, %v4133
      %v4156 = vpack.c.bf16 %v4136, %v4135
      %v4157 = vpack.c.bf16 %v4138, %v4137
      %v4158 = vpack.c.bf16 %v4140, %v4139
      %v4159 = vpack.c.bf16 %v4142, %v4141
      %v4160 = vpack.c.bf16 %v4144, %v4143
      %v4161 = vpack.c.bf16 %v4145, %v4145
      %v4162 = vld [vmem:[%s7] sm:$0xf]
      %v4163 = vld [vmem:[%s7 + $0x4] sm:$0xf]
      %v4164 = vld [vmem:[%s7 + $0x8] sm:$0xf]
      %v4165 = vld [vmem:[%s7 + $0xc] sm:$0xf]
      %v4166 = vld [vmem:[%s7 + $0x10] sm:$0xf]
      %v4167 = vld [vmem:[%s7 + $0x14] sm:$0xf]
      %v4168 = vld [vmem:[%s7 + $0x18] sm:$0xf]
      %v4169 = vld [vmem:[%s7 + $0x1c] sm:$0xf]
      %v4170 = vld [vmem:[%s7 + $0x20] sm:$0xf]
      %v4171 = vld [vmem:[%s7 + $0x24] sm:$0xf]
      %v4172 = vld [vmem:[%s7 + $0x28] sm:$0xf]
      %v4173 = vld [vmem:[%s7 + $0x2c] sm:$0xf]
      %v4174 = vld [vmem:[%s7 + $0x30] sm:$0xf]
      %v4175 = vld [vmem:[%s7 + $0x34] sm:$0xf]
      %v4176 = vld [vmem:[%s7 + $0x38] sm:$0xf]
      %v4177 = vld [vmem:[%s7 + $0x3c] sm:$0xf]
      %v4194 = vunpack.c.l.b16 %v4162
      %v4195 = vunpack.c.l.b16 %v4163
      %v4196 = vunpack.c.l.b16 %v4164
      %v4197 = vunpack.c.l.b16 %v4165
      %v4198 = vunpack.c.l.b16 %v4166
      %v4199 = vunpack.c.l.b16 %v4167
      %v4200 = vunpack.c.l.b16 %v4168
      %v4201 = vunpack.c.l.b16 %v4169
      %v4202 = vunpack.c.l.b16 %v4170
      %v4203 = vunpack.c.l.b16 %v4171
      %v4204 = vunpack.c.l.b16 %v4172
      %v4205 = vunpack.c.l.b16 %v4173
      %v4206 = vunpack.c.l.b16 %v4174
      %v4207 = vunpack.c.l.b16 %v4175
      %v4208 = vunpack.c.l.b16 %v4176
      %v4209 = vunpack.c.l.b16 %v4177
      %v4210 = vpack.c.b16 %v4195, %v4194
      %v4211 = vpack.c.b16 %v4197, %v4196
      %v4212 = vpack.c.b16 %v4199, %v4198
      %v4213 = vpack.c.b16 %v4201, %v4200
      %v4214 = vpack.c.b16 %v4203, %v4202
      %v4215 = vpack.c.b16 %v4205, %v4204
      %v4216 = vpack.c.b16 %v4207, %v4206
      %v4217 = vpack.c.b16 %v4209, %v4208
      %4226 = vmatprep.subr.bf16.mxu0 0
      %4227 = vmatpush1.bf16.msra.mxu0 %v4217
      %4228 = vmatprep.subr.bf16.mxu0 0
      %4229 = vmatpush1.bf16.msra.mxu0 %v4216
      %4230 = vmatprep.subr.bf16.mxu0 0
      %4231 = vmatpush1.bf16.msra.mxu0 %v4215
      %4232 = vmatprep.subr.bf16.mxu0 0
      %4233 = vmatpush1.bf16.msra.mxu0 %v4214
      %4234 = vmatprep.subr.bf16.mxu0 0
      %4235 = vmatpush1.bf16.msra.mxu0 %v4213
      %4236 = vmatprep.subr.bf16.mxu0 0
      %4237 = vmatpush1.bf16.msra.mxu0 %v4212
      %4238 = vmatprep.subr.bf16.mxu0 0
      %4239 = vmatpush1.bf16.msra.mxu0 %v4211
      %4240 = vmatprep.subr.bf16.mxu0 0
      %4241 = vmatpush1.bf16.msra.mxu0 %v4210
      %4242 = vmatprep.subr.bf16.mxu0 0
      %4243 = vmatpush2.bf16.msra.mxu0 0
      %4244 = vmatprep.subr.bf16.mxu0 0
      %4245 = vmatpush2.bf16.msra.mxu0 0
      %4246 = vmatprep.subr.bf16.mxu0 0
      %4247 = vmatpush2.bf16.msra.mxu0 0
      %4248 = vmatprep.subr.bf16.mxu0 0
      %4249 = vmatpush2.bf16.msra.mxu0 0
      %4250 = vmatprep.subr.bf16.mxu0 0
      %4251 = vmatpush2.bf16.msra.mxu0 0
      %4252 = vmatprep.subr.bf16.mxu0 0
      %4253 = vmatpush2.bf16.msra.mxu0 0
      %4254 = vmatprep.subr.bf16.mxu0 0
      %4255 = vmatpush2.bf16.msra.mxu0 0
      %4256 = vmatprep.subr.bf16.mxu0 0
      %4257 = vmatpush2.bf16.msra.mxu0 0
      %4258 = vmatprep.mubr.bf16.mxu0 0
      %4259 = vmatmul.mubr.bf16.gmra.mxu0 %v4146
      %v4260 = vpop.f32.mrf.mxu0
      %v4261 = vadd.f32 %v1607, %v4260
      %v4262 = vpop.f32.mrf.mxu0
      %v4263 = vpop.f32.mrf.mxu0
      %v4264 = vadd.f32 %v1607, %v4263
      %v4265 = vpop.f32.mrf.mxu0
      %4266 = vmatprep.mubr.bf16.mxu0 0
      %4267 = vmatmul.mubr.bf16.gmra.mxu0 %v4147
      %v4268 = vpop.f32.mrf.mxu0
      %v4269 = vadd.f32 %v1607, %v4268
      %v4270 = vpop.f32.mrf.mxu0
      %v4271 = vpop.f32.mrf.mxu0
      %v4272 = vadd.f32 %v1607, %v4271
      %v4273 = vpop.f32.mrf.mxu0
      %4274 = vmatprep.mubr.bf16.mxu0 0
      %4275 = vmatmul.mubr.bf16.gmra.mxu0 %v4148
      %v4276 = vpop.f32.mrf.mxu0
      %v4277 = vadd.f32 %v1607, %v4276
      %v4278 = vpop.f32.mrf.mxu0
      %v4279 = vpop.f32.mrf.mxu0
      %v4280 = vadd.f32 %v1607, %v4279
      %v4281 = vpop.f32.mrf.mxu0
      %4282 = vmatprep.mubr.bf16.mxu0 0
      %4283 = vmatmul.mubr.bf16.gmra.mxu0 %v4149
      %v4284 = vpop.f32.mrf.mxu0
      %v4285 = vadd.f32 %v1607, %v4284
      %v4286 = vpop.f32.mrf.mxu0
      %v4287 = vpop.f32.mrf.mxu0
      %v4288 = vadd.f32 %v1607, %v4287
      %v4289 = vpop.f32.mrf.mxu0
      %4290 = vmatprep.mubr.bf16.mxu0 0
      %4291 = vmatmul.mubr.bf16.gmra.mxu0 %v4150
      %v4292 = vpop.f32.mrf.mxu0
      %v4293 = vadd.f32 %v1607, %v4292
      %v4294 = vpop.f32.mrf.mxu0
      %v4295 = vpop.f32.mrf.mxu0
      %v4296 = vadd.f32 %v1607, %v4295
      %v4297 = vpop.f32.mrf.mxu0
      %4298 = vmatprep.mubr.bf16.mxu0 0
      %4299 = vmatmul.mubr.bf16.gmra.mxu0 %v4151
      %v4300 = vpop.f32.mrf.mxu0
      %v4301 = vadd.f32 %v1607, %v4300
      %v4302 = vpop.f32.mrf.mxu0
      %v4303 = vpop.f32.mrf.mxu0
      %v4304 = vadd.f32 %v1607, %v4303
      %v4305 = vpop.f32.mrf.mxu0
      %4306 = vmatprep.mubr.bf16.mxu0 0
      %4307 = vmatmul.mubr.bf16.gmra.mxu0 %v4152
      %v4308 = vpop.f32.mrf.mxu0
      %v4309 = vadd.f32 %v1607, %v4308
      %v4310 = vpop.f32.mrf.mxu0
      %v4311 = vpop.f32.mrf.mxu0
      %v4312 = vadd.f32 %v1607, %v4311
      %v4313 = vpop.f32.mrf.mxu0
      %4314 = vmatprep.mubr.bf16.mxu0 0
      %4315 = vmatmul.mubr.bf16.gmra.mxu0 %v4153
      %v4316 = vpop.f32.mrf.mxu0
      %v4317 = vadd.f32 %v1607, %v4316
      %v4318 = vpop.f32.mrf.mxu0
      %v4319 = vpop.f32.mrf.mxu0
      %v4320 = vadd.f32 %v1607, %v4319
      %v4321 = vpop.f32.mrf.mxu0
      %4322 = vmatprep.mubr.bf16.mxu0 0
      %4323 = vmatmul.mubr.bf16.gmra.mxu0 %v4154
      %v4324 = vpop.f32.mrf.mxu0
      %v4325 = vadd.f32 %v1607, %v4324
      %v4326 = vpop.f32.mrf.mxu0
      %v4327 = vpop.f32.mrf.mxu0
      %v4328 = vadd.f32 %v1607, %v4327
      %v4329 = vpop.f32.mrf.mxu0
      %4330 = vmatprep.mubr.bf16.mxu0 0
      %4331 = vmatmul.mubr.bf16.gmra.mxu0 %v4155
      %v4332 = vpop.f32.mrf.mxu0
      %v4333 = vadd.f32 %v1607, %v4332
      %v4334 = vpop.f32.mrf.mxu0
      %v4335 = vpop.f32.mrf.mxu0
      %v4336 = vadd.f32 %v1607, %v4335
      %v4337 = vpop.f32.mrf.mxu0
      %4338 = vmatprep.mubr.bf16.mxu0 0
      %4339 = vmatmul.mubr.bf16.gmra.mxu0 %v4156
      %v4340 = vpop.f32.mrf.mxu0
      %v4341 = vadd.f32 %v1607, %v4340
      %v4342 = vpop.f32.mrf.mxu0
      %v4343 = vpop.f32.mrf.mxu0
      %v4344 = vadd.f32 %v1607, %v4343
      %v4345 = vpop.f32.mrf.mxu0
      %4346 = vmatprep.mubr.bf16.mxu0 0
      %4347 = vmatmul.mubr.bf16.gmra.mxu0 %v4157
      %v4348 = vpop.f32.mrf.mxu0
      %v4349 = vadd.f32 %v1607, %v4348
      %v4350 = vpop.f32.mrf.mxu0
      %v4351 = vpop.f32.mrf.mxu0
      %v4352 = vadd.f32 %v1607, %v4351
      %v4353 = vpop.f32.mrf.mxu0
      %4354 = vmatprep.mubr.bf16.mxu0 0
      %4355 = vmatmul.mubr.bf16.gmra.mxu0 %v4158
      %v4356 = vpop.f32.mrf.mxu0
      %v4357 = vadd.f32 %v1607, %v4356
      %v4358 = vpop.f32.mrf.mxu0
      %v4359 = vpop.f32.mrf.mxu0
      %v4360 = vadd.f32 %v1607, %v4359
      %v4361 = vpop.f32.mrf.mxu0
      %4362 = vmatprep.mubr.bf16.mxu0 0
      %4363 = vmatmul.mubr.bf16.gmra.mxu0 %v4159
      %v4364 = vpop.f32.mrf.mxu0
      %v4365 = vadd.f32 %v1607, %v4364
      %v4366 = vpop.f32.mrf.mxu0
      %v4367 = vpop.f32.mrf.mxu0
      %v4368 = vadd.f32 %v1607, %v4367
      %v4369 = vpop.f32.mrf.mxu0
      %4370 = vmatprep.mubr.bf16.mxu0 0
      %4371 = vmatmul.mubr.bf16.gmra.mxu0 %v4160
      %v4372 = vpop.f32.mrf.mxu0
      %v4373 = vadd.f32 %v1607, %v4372
      %v4374 = vpop.f32.mrf.mxu0
      %v4375 = vpop.f32.mrf.mxu0
      %v4376 = vadd.f32 %v1607, %v4375
      %v4377 = vpop.f32.mrf.mxu0
      %4378 = vmatprep.mubr.bf16.mxu0 0
      %4379 = vmatmul.mubr.bf16.gmra.mxu0 %v4161
      %v4380 = vpop.f32.mrf.mxu0
      %v4381 = vadd.f32 %v1607, %v4380
      %v4382 = vpop.f32.mrf.mxu0
      %v4383 = vpop.f32.mrf.mxu0
      %v4384 = vpop.f32.mrf.mxu0
      %4385 = vdwg.mxu0
      %vm4386 = vcmp.gt.f32.partialorder %v4261, 0.0
      %vm4387 = vcmp.gt.f32.partialorder %v4264, 0.0
      %vm4388 = vcmp.gt.f32.partialorder %v4269, 0.0
      %vm4389 = vcmp.gt.f32.partialorder %v4272, 0.0
      %vm4390 = vcmp.gt.f32.partialorder %v4277, 0.0
      %vm4391 = vcmp.gt.f32.partialorder %v4280, 0.0
      %vm4392 = vcmp.gt.f32.partialorder %v4285, 0.0
      %vm4393 = vcmp.gt.f32.partialorder %v4288, 0.0
      %vm4394 = vcmp.gt.f32.partialorder %v4293, 0.0
      %vm4395 = vcmp.gt.f32.partialorder %v4296, 0.0
      %vm4396 = vcmp.gt.f32.partialorder %v4301, 0.0
      %vm4397 = vcmp.gt.f32.partialorder %v4304, 0.0
      %vm4398 = vcmp.gt.f32.partialorder %v4309, 0.0
      %vm4399 = vcmp.gt.f32.partialorder %v4312, 0.0
      %vm4400 = vcmp.gt.f32.partialorder %v4317, 0.0
      %vm4401 = vcmp.gt.f32.partialorder %v4320, 0.0
      %vm4402 = vcmp.gt.f32.partialorder %v4325, 0.0
      %vm4403 = vcmp.gt.f32.partialorder %v4328, 0.0
      %vm4404 = vcmp.gt.f32.partialorder %v4333, 0.0
      %vm4405 = vcmp.gt.f32.partialorder %v4336, 0.0
      %vm4406 = vcmp.gt.f32.partialorder %v4341, 0.0
      %vm4407 = vcmp.gt.f32.partialorder %v4344, 0.0
      %vm4408 = vcmp.gt.f32.partialorder %v4349, 0.0
      %vm4409 = vcmp.gt.f32.partialorder %v4352, 0.0
      %vm4410 = vcmp.gt.f32.partialorder %v4357, 0.0
      %vm4411 = vcmp.gt.f32.partialorder %v4360, 0.0
      %vm4412 = vcmp.gt.f32.partialorder %v4365, 0.0
      %vm4413 = vcmp.gt.f32.partialorder %v4368, 0.0
      %vm4414 = vcmp.gt.f32.partialorder %v4373, 0.0
      %vm4415 = vcmp.gt.f32.partialorder %v4376, 0.0
      %vm4416 = vcmp.gt.f32.partialorder %v4381, 0.0
      %v4417 = vmul.f32 %v4261, 0.01
      %v4418 = vmul.f32 %v4264, 0.01
      %v4419 = vmul.f32 %v4269, 0.01
      %v4420 = vmul.f32 %v4272, 0.01
      %v4421 = vmul.f32 %v4277, 0.01
      %v4422 = vmul.f32 %v4280, 0.01
      %v4423 = vmul.f32 %v4285, 0.01
      %v4424 = vmul.f32 %v4288, 0.01
      %v4425 = vmul.f32 %v4293, 0.01
      %v4426 = vmul.f32 %v4296, 0.01
      %v4427 = vmul.f32 %v4301, 0.01
      %v4428 = vmul.f32 %v4304, 0.01
      %v4429 = vmul.f32 %v4309, 0.01
      %v4430 = vmul.f32 %v4312, 0.01
      %v4431 = vmul.f32 %v4317, 0.01
      %v4432 = vmul.f32 %v4320, 0.01
      %v4433 = vmul.f32 %v4325, 0.01
      %v4434 = vmul.f32 %v4328, 0.01
      %v4435 = vmul.f32 %v4333, 0.01
      %v4436 = vmul.f32 %v4336, 0.01
      %v4437 = vmul.f32 %v4341, 0.01
      %v4438 = vmul.f32 %v4344, 0.01
      %v4439 = vmul.f32 %v4349, 0.01
      %v4440 = vmul.f32 %v4352, 0.01
      %v4441 = vmul.f32 %v4357, 0.01
      %v4442 = vmul.f32 %v4360, 0.01
      %v4443 = vmul.f32 %v4365, 0.01
      %v4444 = vmul.f32 %v4368, 0.01
      %v4445 = vmul.f32 %v4373, 0.01
      %v4446 = vmul.f32 %v4376, 0.01
      %v4447 = vmul.f32 %v4381, 0.01
      %v4448 = vsel %vm4386, %v4261, %v4417
      %v4449 = vsel %vm4387, %v4264, %v4418
      %v4450 = vsel %vm4388, %v4269, %v4419
      %v4451 = vsel %vm4389, %v4272, %v4420
      %v4452 = vsel %vm4390, %v4277, %v4421
      %v4453 = vsel %vm4391, %v4280, %v4422
      %v4454 = vsel %vm4392, %v4285, %v4423
      %v4455 = vsel %vm4393, %v4288, %v4424
      %v4456 = vsel %vm4394, %v4293, %v4425
      %v4457 = vsel %vm4395, %v4296, %v4426
      %v4458 = vsel %vm4396, %v4301, %v4427
      %v4459 = vsel %vm4397, %v4304, %v4428
      %v4460 = vsel %vm4398, %v4309, %v4429
      %v4461 = vsel %vm4399, %v4312, %v4430
      %v4462 = vsel %vm4400, %v4317, %v4431
      %v4463 = vsel %vm4401, %v4320, %v4432
      %v4464 = vsel %vm4402, %v4325, %v4433
      %v4465 = vsel %vm4403, %v4328, %v4434
      %v4466 = vsel %vm4404, %v4333, %v4435
      %v4467 = vsel %vm4405, %v4336, %v4436
      %v4468 = vsel %vm4406, %v4341, %v4437
      %v4469 = vsel %vm4407, %v4344, %v4438
      %v4470 = vsel %vm4408, %v4349, %v4439
      %v4471 = vsel %vm4409, %v4352, %v4440
      %v4472 = vsel %vm4410, %v4357, %v4441
      %v4473 = vsel %vm4411, %v4360, %v4442
      %v4474 = vsel %vm4412, %v4365, %v4443
      %v4475 = vsel %vm4413, %v4368, %v4444
      %v4476 = vsel %vm4414, %v4373, %v4445
      %v4477 = vsel %vm4415, %v4376, %v4446
      %v4478 = vsel %vm4416, %v4381, %v4447
      %v4479 = vpack.c.bf16 %v4449, %v4448
      %v4480 = vpack.c.bf16 %v4451, %v4450
      %v4481 = vpack.c.bf16 %v4453, %v4452
      %v4482 = vpack.c.bf16 %v4455, %v4454
      %v4483 = vpack.c.bf16 %v4457, %v4456
      %v4484 = vpack.c.bf16 %v4459, %v4458
      %v4485 = vpack.c.bf16 %v4461, %v4460
      %v4486 = vpack.c.bf16 %v4463, %v4462
      %v4487 = vpack.c.bf16 %v4465, %v4464
      %v4488 = vpack.c.bf16 %v4467, %v4466
      %v4489 = vpack.c.bf16 %v4469, %v4468
      %v4490 = vpack.c.bf16 %v4471, %v4470
      %v4491 = vpack.c.bf16 %v4473, %v4472
      %v4492 = vpack.c.bf16 %v4475, %v4474
      %v4493 = vpack.c.bf16 %v4477, %v4476
      %v4494 = vpack.c.bf16 %v4478, %v4478
      %v4495 = vld [vmem:[%s9] sm:$0xf]
      %v4496 = vld [vmem:[%s9 + $0x4] sm:$0xf]
      %v4497 = vld [vmem:[%s9 + $0x8] sm:$0xf]
      %v4498 = vld [vmem:[%s9 + $0xc] sm:$0xf]
      %v4499 = vld [vmem:[%s9 + $0x10] sm:$0xf]
      %v4500 = vld [vmem:[%s9 + $0x14] sm:$0xf]
      %v4501 = vld [vmem:[%s9 + $0x18] sm:$0xf]
      %v4502 = vld [vmem:[%s9 + $0x1c] sm:$0xf]
      %v4511 = vunpack.c.l.b16 %v4495
      %v4512 = vunpack.c.l.b16 %v4496
      %v4513 = vunpack.c.l.b16 %v4497
      %v4514 = vunpack.c.l.b16 %v4498
      %v4515 = vunpack.c.l.b16 %v4499
      %v4516 = vunpack.c.l.b16 %v4500
      %v4517 = vunpack.c.l.b16 %v4501
      %v4518 = vunpack.c.l.b16 %v4502
      %v4519 = vpack.c.b16 %v4512, %v4511
      %v4520 = vpack.c.b16 %v4514, %v4513
      %v4521 = vpack.c.b16 %v4516, %v4515
      %v4522 = vpack.c.b16 %v4518, %v4517
      %v4528 = vsel %vm1968, %v4479, 0
      %v4531 = vsel %vm1968, %v4480, 0
      %v4534 = vsel %vm1968, %v4481, 0
      %v4537 = vsel %vm1968, %v4482, 0
      %v4540 = vsel %vm1968, %v4483, 0
      %v4543 = vsel %vm1968, %v4484, 0
      %v4546 = vsel %vm1968, %v4485, 0
      %v4549 = vsel %vm1968, %v4486, 0
      %v4552 = vsel %vm1968, %v4487, 0
      %v4555 = vsel %vm1968, %v4488, 0
      %v4558 = vsel %vm1968, %v4489, 0
      %v4561 = vsel %vm1968, %v4490, 0
      %v4564 = vsel %vm1968, %v4491, 0
      %v4567 = vsel %vm1968, %v4492, 0
      %v4570 = vsel %vm1968, %v4493, 0
      %v4573 = vsel %vm1968, %v4494, 0
      %4575 = vmatprep.subr.bf16.mxu0 0
      %4576 = vmatpush1.bf16.msra.mxu0 0
      %4577 = vmatprep.subr.bf16.mxu0 0
      %4578 = vmatpush1.bf16.msra.mxu0 0
      %4579 = vmatprep.subr.bf16.mxu0 0
      %4580 = vmatpush1.bf16.msra.mxu0 0
      %4581 = vmatprep.subr.bf16.mxu0 0
      %4582 = vmatpush1.bf16.msra.mxu0 0
      %4583 = vmatprep.subr.bf16.mxu0 0
      %4584 = vmatpush1.bf16.msra.mxu0 %v4522
      %4585 = vmatprep.subr.bf16.mxu0 0
      %4586 = vmatpush1.bf16.msra.mxu0 %v4521
      %4587 = vmatprep.subr.bf16.mxu0 0
      %4588 = vmatpush1.bf16.msra.mxu0 %v4520
      %4589 = vmatprep.subr.bf16.mxu0 0
      %4590 = vmatpush1.bf16.msra.mxu0 %v4519
      %4591 = vmatprep.subr.bf16.mxu0 0
      %4592 = vmatpush2.bf16.msra.mxu0 0
      %4593 = vmatprep.subr.bf16.mxu0 0
      %4594 = vmatpush2.bf16.msra.mxu0 0
      %4595 = vmatprep.subr.bf16.mxu0 0
      %4596 = vmatpush2.bf16.msra.mxu0 0
      %4597 = vmatprep.subr.bf16.mxu0 0
      %4598 = vmatpush2.bf16.msra.mxu0 0
      %4599 = vmatprep.subr.bf16.mxu0 0
      %4600 = vmatpush2.bf16.msra.mxu0 0
      %4601 = vmatprep.subr.bf16.mxu0 0
      %4602 = vmatpush2.bf16.msra.mxu0 0
      %4603 = vmatprep.subr.bf16.mxu0 0
      %4604 = vmatpush2.bf16.msra.mxu0 0
      %4605 = vmatprep.subr.bf16.mxu0 0
      %4606 = vmatpush2.bf16.msra.mxu0 0
      %4607 = vmatprep.mubr.bf16.mxu0 0
      %4608 = vmatmul.mubr.bf16.gmra.mxu0 %v4528
      %v4609 = vpop.f32.mrf.mxu0
      %v4610 = vadd.f32 %v1942, %v4609
      %v4611 = vpop.f32.mrf.mxu0
      %v4612 = vpop.f32.mrf.mxu0
      %v4613 = vadd.f32 %v1942, %v4612
      %v4614 = vpop.f32.mrf.mxu0
      %4615 = vmatprep.mubr.bf16.mxu0 0
      %4616 = vmatmul.mubr.bf16.gmra.mxu0 %v4531
      %v4617 = vpop.f32.mrf.mxu0
      %v4618 = vadd.f32 %v1942, %v4617
      %v4619 = vpop.f32.mrf.mxu0
      %v4620 = vpop.f32.mrf.mxu0
      %v4621 = vadd.f32 %v1942, %v4620
      %v4622 = vpop.f32.mrf.mxu0
      %4623 = vmatprep.mubr.bf16.mxu0 0
      %4624 = vmatmul.mubr.bf16.gmra.mxu0 %v4534
      %v4625 = vpop.f32.mrf.mxu0
      %v4626 = vadd.f32 %v1942, %v4625
      %v4627 = vpop.f32.mrf.mxu0
      %v4628 = vpop.f32.mrf.mxu0
      %v4629 = vadd.f32 %v1942, %v4628
      %v4630 = vpop.f32.mrf.mxu0
      %4631 = vmatprep.mubr.bf16.mxu0 0
      %4632 = vmatmul.mubr.bf16.gmra.mxu0 %v4537
      %v4633 = vpop.f32.mrf.mxu0
      %v4634 = vadd.f32 %v1942, %v4633
      %v4635 = vpop.f32.mrf.mxu0
      %v4636 = vpop.f32.mrf.mxu0
      %v4637 = vadd.f32 %v1942, %v4636
      %v4638 = vpop.f32.mrf.mxu0
      %4639 = vmatprep.mubr.bf16.mxu0 0
      %4640 = vmatmul.mubr.bf16.gmra.mxu0 %v4540
      %v4641 = vpop.f32.mrf.mxu0
      %v4642 = vadd.f32 %v1942, %v4641
      %v4643 = vpop.f32.mrf.mxu0
      %v4644 = vpop.f32.mrf.mxu0
      %v4645 = vadd.f32 %v1942, %v4644
      %v4646 = vpop.f32.mrf.mxu0
      %4647 = vmatprep.mubr.bf16.mxu0 0
      %4648 = vmatmul.mubr.bf16.gmra.mxu0 %v4543
      %v4649 = vpop.f32.mrf.mxu0
      %v4650 = vadd.f32 %v1942, %v4649
      %v4651 = vpop.f32.mrf.mxu0
      %v4652 = vpop.f32.mrf.mxu0
      %v4653 = vadd.f32 %v1942, %v4652
      %v4654 = vpop.f32.mrf.mxu0
      %4655 = vmatprep.mubr.bf16.mxu0 0
      %4656 = vmatmul.mubr.bf16.gmra.mxu0 %v4546
      %v4657 = vpop.f32.mrf.mxu0
      %v4658 = vadd.f32 %v1942, %v4657
      %v4659 = vpop.f32.mrf.mxu0
      %v4660 = vpop.f32.mrf.mxu0
      %v4661 = vadd.f32 %v1942, %v4660
      %v4662 = vpop.f32.mrf.mxu0
      %4663 = vmatprep.mubr.bf16.mxu0 0
      %4664 = vmatmul.mubr.bf16.gmra.mxu0 %v4549
      %v4665 = vpop.f32.mrf.mxu0
      %v4666 = vadd.f32 %v1942, %v4665
      %v4667 = vpop.f32.mrf.mxu0
      %v4668 = vpop.f32.mrf.mxu0
      %v4669 = vadd.f32 %v1942, %v4668
      %v4670 = vpop.f32.mrf.mxu0
      %4671 = vmatprep.mubr.bf16.mxu0 0
      %4672 = vmatmul.mubr.bf16.gmra.mxu0 %v4552
      %v4673 = vpop.f32.mrf.mxu0
      %v4674 = vadd.f32 %v1942, %v4673
      %v4675 = vpop.f32.mrf.mxu0
      %v4676 = vpop.f32.mrf.mxu0
      %v4677 = vadd.f32 %v1942, %v4676
      %v4678 = vpop.f32.mrf.mxu0
      %4679 = vmatprep.mubr.bf16.mxu0 0
      %4680 = vmatmul.mubr.bf16.gmra.mxu0 %v4555
      %v4681 = vpop.f32.mrf.mxu0
      %v4682 = vadd.f32 %v1942, %v4681
      %v4683 = vpop.f32.mrf.mxu0
      %v4684 = vpop.f32.mrf.mxu0
      %v4685 = vadd.f32 %v1942, %v4684
      %v4686 = vpop.f32.mrf.mxu0
      %4687 = vmatprep.mubr.bf16.mxu0 0
      %4688 = vmatmul.mubr.bf16.gmra.mxu0 %v4558
      %v4689 = vpop.f32.mrf.mxu0
      %v4690 = vadd.f32 %v1942, %v4689
      %v4691 = vpop.f32.mrf.mxu0
      %v4692 = vpop.f32.mrf.mxu0
      %v4693 = vadd.f32 %v1942, %v4692
      %v4694 = vpop.f32.mrf.mxu0
      %4695 = vmatprep.mubr.bf16.mxu0 0
      %4696 = vmatmul.mubr.bf16.gmra.mxu0 %v4561
      %v4697 = vpop.f32.mrf.mxu0
      %v4698 = vadd.f32 %v1942, %v4697
      %v4699 = vpop.f32.mrf.mxu0
      %v4700 = vpop.f32.mrf.mxu0
      %v4701 = vadd.f32 %v1942, %v4700
      %v4702 = vpop.f32.mrf.mxu0
      %4703 = vmatprep.mubr.bf16.mxu0 0
      %4704 = vmatmul.mubr.bf16.gmra.mxu0 %v4564
      %v4705 = vpop.f32.mrf.mxu0
      %v4706 = vadd.f32 %v1942, %v4705
      %v4707 = vpop.f32.mrf.mxu0
      %v4708 = vpop.f32.mrf.mxu0
      %v4709 = vadd.f32 %v1942, %v4708
      %v4710 = vpop.f32.mrf.mxu0
      %4711 = vmatprep.mubr.bf16.mxu0 0
      %4712 = vmatmul.mubr.bf16.gmra.mxu0 %v4567
      %v4713 = vpop.f32.mrf.mxu0
      %v4714 = vadd.f32 %v1942, %v4713
      %v4715 = vpop.f32.mrf.mxu0
      %v4716 = vpop.f32.mrf.mxu0
      %v4717 = vadd.f32 %v1942, %v4716
      %v4718 = vpop.f32.mrf.mxu0
      %4719 = vmatprep.mubr.bf16.mxu0 0
      %4720 = vmatmul.mubr.bf16.gmra.mxu0 %v4570
      %v4721 = vpop.f32.mrf.mxu0
      %v4722 = vadd.f32 %v1942, %v4721
      %v4723 = vpop.f32.mrf.mxu0
      %v4724 = vpop.f32.mrf.mxu0
      %v4725 = vadd.f32 %v1942, %v4724
      %v4726 = vpop.f32.mrf.mxu0
      %4727 = vmatprep.mubr.bf16.mxu0 0
      %4728 = vmatmul.mubr.bf16.gmra.mxu0 %v4573
      %v4729 = vpop.f32.mrf.mxu0
      %v4730 = vadd.f32 %v1942, %v4729
      %v4731 = vpop.f32.mrf.mxu0
      %v4732 = vpop.f32.mrf.mxu0
      %v4733 = vpop.f32.mrf.mxu0
      %4734 = vdwg.mxu0
      %vm4735 = vcmp.gt.f32.partialorder %v4610, 0.0
      %vm4736 = vcmp.gt.f32.partialorder %v4613, 0.0
      %vm4737 = vcmp.gt.f32.partialorder %v4618, 0.0
      %vm4738 = vcmp.gt.f32.partialorder %v4621, 0.0
      %vm4739 = vcmp.gt.f32.partialorder %v4626, 0.0
      %vm4740 = vcmp.gt.f32.partialorder %v4629, 0.0
      %vm4741 = vcmp.gt.f32.partialorder %v4634, 0.0
      %vm4742 = vcmp.gt.f32.partialorder %v4637, 0.0
      %vm4743 = vcmp.gt.f32.partialorder %v4642, 0.0
      %vm4744 = vcmp.gt.f32.partialorder %v4645, 0.0
      %vm4745 = vcmp.gt.f32.partialorder %v4650, 0.0
      %vm4746 = vcmp.gt.f32.partialorder %v4653, 0.0
      %vm4747 = vcmp.gt.f32.partialorder %v4658, 0.0
      %vm4748 = vcmp.gt.f32.partialorder %v4661, 0.0
      %vm4749 = vcmp.gt.f32.partialorder %v4666, 0.0
      %vm4750 = vcmp.gt.f32.partialorder %v4669, 0.0
      %vm4751 = vcmp.gt.f32.partialorder %v4674, 0.0
      %vm4752 = vcmp.gt.f32.partialorder %v4677, 0.0
      %vm4753 = vcmp.gt.f32.partialorder %v4682, 0.0
      %vm4754 = vcmp.gt.f32.partialorder %v4685, 0.0
      %vm4755 = vcmp.gt.f32.partialorder %v4690, 0.0
      %vm4756 = vcmp.gt.f32.partialorder %v4693, 0.0
      %vm4757 = vcmp.gt.f32.partialorder %v4698, 0.0
      %vm4758 = vcmp.gt.f32.partialorder %v4701, 0.0
      %vm4759 = vcmp.gt.f32.partialorder %v4706, 0.0
      %vm4760 = vcmp.gt.f32.partialorder %v4709, 0.0
      %vm4761 = vcmp.gt.f32.partialorder %v4714, 0.0
      %vm4762 = vcmp.gt.f32.partialorder %v4717, 0.0
      %vm4763 = vcmp.gt.f32.partialorder %v4722, 0.0
      %vm4764 = vcmp.gt.f32.partialorder %v4725, 0.0
      %vm4765 = vcmp.gt.f32.partialorder %v4730, 0.0
      %v4766 = vmul.f32 %v4610, 0.01
      %v4767 = vmul.f32 %v4613, 0.01
      %v4768 = vmul.f32 %v4618, 0.01
      %v4769 = vmul.f32 %v4621, 0.01
      %v4770 = vmul.f32 %v4626, 0.01
      %v4771 = vmul.f32 %v4629, 0.01
      %v4772 = vmul.f32 %v4634, 0.01
      %v4773 = vmul.f32 %v4637, 0.01
      %v4774 = vmul.f32 %v4642, 0.01
      %v4775 = vmul.f32 %v4645, 0.01
      %v4776 = vmul.f32 %v4650, 0.01
      %v4777 = vmul.f32 %v4653, 0.01
      %v4778 = vmul.f32 %v4658, 0.01
      %v4779 = vmul.f32 %v4661, 0.01
      %v4780 = vmul.f32 %v4666, 0.01
      %v4781 = vmul.f32 %v4669, 0.01
      %v4782 = vmul.f32 %v4674, 0.01
      %v4783 = vmul.f32 %v4677, 0.01
      %v4784 = vmul.f32 %v4682, 0.01
      %v4785 = vmul.f32 %v4685, 0.01
      %v4786 = vmul.f32 %v4690, 0.01
      %v4787 = vmul.f32 %v4693, 0.01
      %v4788 = vmul.f32 %v4698, 0.01
      %v4789 = vmul.f32 %v4701, 0.01
      %v4790 = vmul.f32 %v4706, 0.01
      %v4791 = vmul.f32 %v4709, 0.01
      %v4792 = vmul.f32 %v4714, 0.01
      %v4793 = vmul.f32 %v4717, 0.01
      %v4794 = vmul.f32 %v4722, 0.01
      %v4795 = vmul.f32 %v4725, 0.01
      %v4796 = vmul.f32 %v4730, 0.01
      %v4797 = vsel %vm4735, %v4610, %v4766
      %v4798 = vsel %vm4736, %v4613, %v4767
      %v4799 = vsel %vm4737, %v4618, %v4768
      %v4800 = vsel %vm4738, %v4621, %v4769
      %v4801 = vsel %vm4739, %v4626, %v4770
      %v4802 = vsel %vm4740, %v4629, %v4771
      %v4803 = vsel %vm4741, %v4634, %v4772
      %v4804 = vsel %vm4742, %v4637, %v4773
      %v4805 = vsel %vm4743, %v4642, %v4774
      %v4806 = vsel %vm4744, %v4645, %v4775
      %v4807 = vsel %vm4745, %v4650, %v4776
      %v4808 = vsel %vm4746, %v4653, %v4777
      %v4809 = vsel %vm4747, %v4658, %v4778
      %v4810 = vsel %vm4748, %v4661, %v4779
      %v4811 = vsel %vm4749, %v4666, %v4780
      %v4812 = vsel %vm4750, %v4669, %v4781
      %v4813 = vsel %vm4751, %v4674, %v4782
      %v4814 = vsel %vm4752, %v4677, %v4783
      %v4815 = vsel %vm4753, %v4682, %v4784
      %v4816 = vsel %vm4754, %v4685, %v4785
      %v4817 = vsel %vm4755, %v4690, %v4786
      %v4818 = vsel %vm4756, %v4693, %v4787
      %v4819 = vsel %vm4757, %v4698, %v4788
      %v4820 = vsel %vm4758, %v4701, %v4789
      %v4821 = vsel %vm4759, %v4706, %v4790
      %v4822 = vsel %vm4760, %v4709, %v4791
      %v4823 = vsel %vm4761, %v4714, %v4792
      %v4824 = vsel %vm4762, %v4717, %v4793
      %v4825 = vsel %vm4763, %v4722, %v4794
      %v4826 = vsel %vm4764, %v4725, %v4795
      %v4827 = vsel %vm4765, %v4730, %v4796
      %v4828 = vpack.c.bf16 %v4798, %v4797
      %v4829 = vpack.c.bf16 %v4800, %v4799
      %v4830 = vpack.c.bf16 %v4802, %v4801
      %v4831 = vpack.c.bf16 %v4804, %v4803
      %v4832 = vpack.c.bf16 %v4806, %v4805
      %v4833 = vpack.c.bf16 %v4808, %v4807
      %v4834 = vpack.c.bf16 %v4810, %v4809
      %v4835 = vpack.c.bf16 %v4812, %v4811
      %v4836 = vpack.c.bf16 %v4814, %v4813
      %v4837 = vpack.c.bf16 %v4816, %v4815
      %v4838 = vpack.c.bf16 %v4818, %v4817
      %v4839 = vpack.c.bf16 %v4820, %v4819
      %v4840 = vpack.c.bf16 %v4822, %v4821
      %v4841 = vpack.c.bf16 %v4824, %v4823
      %v4842 = vpack.c.bf16 %v4826, %v4825
      %v4843 = vpack.c.bf16 %v4827, %v4827
      %v4844 = vld [vmem:[%s11] sm:$0xf]
      %v4845 = vld [vmem:[%s11 + $0x4] sm:$0xf]
      %v4846 = vld [vmem:[%s11 + $0x8] sm:$0xf]
      %v4847 = vld [vmem:[%s11 + $0xc] sm:$0xf]
      %v4852 = vunpack.c.l.b16 %v4844
      %v4853 = vunpack.c.l.b16 %v4845
      %v4854 = vunpack.c.l.b16 %v4846
      %v4855 = vunpack.c.l.b16 %v4847
      %v4856 = vpack.c.b16 %v4853, %v4852
      %v4857 = vpack.c.b16 %v4855, %v4854
      %v4861 = vsel %vm579, %v4828, 0
      %v4864 = vsel %vm579, %v4829, 0
      %v4867 = vsel %vm579, %v4830, 0
      %v4870 = vsel %vm579, %v4831, 0
      %v4873 = vsel %vm579, %v4832, 0
      %v4876 = vsel %vm579, %v4833, 0
      %v4879 = vsel %vm579, %v4834, 0
      %v4882 = vsel %vm579, %v4835, 0
      %v4885 = vsel %vm579, %v4836, 0
      %v4888 = vsel %vm579, %v4837, 0
      %v4891 = vsel %vm579, %v4838, 0
      %v4894 = vsel %vm579, %v4839, 0
      %v4897 = vsel %vm579, %v4840, 0
      %v4900 = vsel %vm579, %v4841, 0
      %v4903 = vsel %vm579, %v4842, 0
      %v4906 = vsel %vm579, %v4843, 0
      %4908 = vmatprep.subr.bf16.mxu0 0
      %4909 = vmatpush1.bf16.msra.mxu0 0
      %4910 = vmatprep.subr.bf16.mxu0 0
      %4911 = vmatpush1.bf16.msra.mxu0 0
      %4912 = vmatprep.subr.bf16.mxu0 0
      %4913 = vmatpush1.bf16.msra.mxu0 0
      %4914 = vmatprep.subr.bf16.mxu0 0
      %4915 = vmatpush1.bf16.msra.mxu0 0
      %4916 = vmatprep.subr.bf16.mxu0 0
      %4917 = vmatpush1.bf16.msra.mxu0 0
      %4918 = vmatprep.subr.bf16.mxu0 0
      %4919 = vmatpush1.bf16.msra.mxu0 0
      %4920 = vmatprep.subr.bf16.mxu0 0
      %4921 = vmatpush1.bf16.msra.mxu0 %v4857
      %4922 = vmatprep.subr.bf16.mxu0 0
      %4923 = vmatpush1.bf16.msra.mxu0 %v4856
      %4924 = vmatprep.subr.bf16.mxu0 0
      %4925 = vmatpush2.bf16.msra.mxu0 0
      %4926 = vmatprep.subr.bf16.mxu0 0
      %4927 = vmatpush2.bf16.msra.mxu0 0
      %4928 = vmatprep.subr.bf16.mxu0 0
      %4929 = vmatpush2.bf16.msra.mxu0 0
      %4930 = vmatprep.subr.bf16.mxu0 0
      %4931 = vmatpush2.bf16.msra.mxu0 0
      %4932 = vmatprep.subr.bf16.mxu0 0
      %4933 = vmatpush2.bf16.msra.mxu0 0
      %4934 = vmatprep.subr.bf16.mxu0 0
      %4935 = vmatpush2.bf16.msra.mxu0 0
      %4936 = vmatprep.subr.bf16.mxu0 0
      %4937 = vmatpush2.bf16.msra.mxu0 0
      %4938 = vmatprep.subr.bf16.mxu0 0
      %4939 = vmatpush2.bf16.msra.mxu0 0
      %4940 = vmatprep.mubr.bf16.mxu0 0
      %4941 = vmatmul.mubr.bf16.gmra.mxu0 %v4861
      %v4942 = vpop.f32.mrf.mxu0
      %v4943 = vadd.f32 %v2298, %v4942
      %v4944 = vpop.f32.mrf.mxu0
      %v4945 = vpop.f32.mrf.mxu0
      %v4946 = vadd.f32 %v2298, %v4945
      %v4947 = vpop.f32.mrf.mxu0
      %4948 = vmatprep.mubr.bf16.mxu0 0
      %4949 = vmatmul.mubr.bf16.gmra.mxu0 %v4864
      %v4950 = vpop.f32.mrf.mxu0
      %v4951 = vadd.f32 %v2298, %v4950
      %v4952 = vpop.f32.mrf.mxu0
      %v4953 = vpop.f32.mrf.mxu0
      %v4954 = vadd.f32 %v2298, %v4953
      %v4955 = vpop.f32.mrf.mxu0
      %4956 = vmatprep.mubr.bf16.mxu0 0
      %4957 = vmatmul.mubr.bf16.gmra.mxu0 %v4867
      %v4958 = vpop.f32.mrf.mxu0
      %v4959 = vadd.f32 %v2298, %v4958
      %v4960 = vpop.f32.mrf.mxu0
      %v4961 = vpop.f32.mrf.mxu0
      %v4962 = vadd.f32 %v2298, %v4961
      %v4963 = vpop.f32.mrf.mxu0
      %4964 = vmatprep.mubr.bf16.mxu0 0
      %4965 = vmatmul.mubr.bf16.gmra.mxu0 %v4870
      %v4966 = vpop.f32.mrf.mxu0
      %v4967 = vadd.f32 %v2298, %v4966
      %v4968 = vpop.f32.mrf.mxu0
      %v4969 = vpop.f32.mrf.mxu0
      %v4970 = vadd.f32 %v2298, %v4969
      %v4971 = vpop.f32.mrf.mxu0
      %4972 = vmatprep.mubr.bf16.mxu0 0
      %4973 = vmatmul.mubr.bf16.gmra.mxu0 %v4873
      %v4974 = vpop.f32.mrf.mxu0
      %v4975 = vadd.f32 %v2298, %v4974
      %v4976 = vpop.f32.mrf.mxu0
      %v4977 = vpop.f32.mrf.mxu0
      %v4978 = vadd.f32 %v2298, %v4977
      %v4979 = vpop.f32.mrf.mxu0
      %4980 = vmatprep.mubr.bf16.mxu0 0
      %4981 = vmatmul.mubr.bf16.gmra.mxu0 %v4876
      %v4982 = vpop.f32.mrf.mxu0
      %v4983 = vadd.f32 %v2298, %v4982
      %v4984 = vpop.f32.mrf.mxu0
      %v4985 = vpop.f32.mrf.mxu0
      %v4986 = vadd.f32 %v2298, %v4985
      %v4987 = vpop.f32.mrf.mxu0
      %4988 = vmatprep.mubr.bf16.mxu0 0
      %4989 = vmatmul.mubr.bf16.gmra.mxu0 %v4879
      %v4990 = vpop.f32.mrf.mxu0
      %v4991 = vadd.f32 %v2298, %v4990
      %v4992 = vpop.f32.mrf.mxu0
      %v4993 = vpop.f32.mrf.mxu0
      %v4994 = vadd.f32 %v2298, %v4993
      %v4995 = vpop.f32.mrf.mxu0
      %4996 = vmatprep.mubr.bf16.mxu0 0
      %4997 = vmatmul.mubr.bf16.gmra.mxu0 %v4882
      %v4998 = vpop.f32.mrf.mxu0
      %v4999 = vadd.f32 %v2298, %v4998
      %v5000 = vpop.f32.mrf.mxu0
      %v5001 = vpop.f32.mrf.mxu0
      %v5002 = vadd.f32 %v2298, %v5001
      %v5003 = vpop.f32.mrf.mxu0
      %5004 = vmatprep.mubr.bf16.mxu0 0
      %5005 = vmatmul.mubr.bf16.gmra.mxu0 %v4885
      %v5006 = vpop.f32.mrf.mxu0
      %v5007 = vadd.f32 %v2298, %v5006
      %v5008 = vpop.f32.mrf.mxu0
      %v5009 = vpop.f32.mrf.mxu0
      %v5010 = vadd.f32 %v2298, %v5009
      %v5011 = vpop.f32.mrf.mxu0
      %5012 = vmatprep.mubr.bf16.mxu0 0
      %5013 = vmatmul.mubr.bf16.gmra.mxu0 %v4888
      %v5014 = vpop.f32.mrf.mxu0
      %v5015 = vadd.f32 %v2298, %v5014
      %v5016 = vpop.f32.mrf.mxu0
      %v5017 = vpop.f32.mrf.mxu0
      %v5018 = vadd.f32 %v2298, %v5017
      %v5019 = vpop.f32.mrf.mxu0
      %5020 = vmatprep.mubr.bf16.mxu0 0
      %5021 = vmatmul.mubr.bf16.gmra.mxu0 %v4891
      %v5022 = vpop.f32.mrf.mxu0
      %v5023 = vadd.f32 %v2298, %v5022
      %v5024 = vpop.f32.mrf.mxu0
      %v5025 = vpop.f32.mrf.mxu0
      %v5026 = vadd.f32 %v2298, %v5025
      %v5027 = vpop.f32.mrf.mxu0
      %5028 = vmatprep.mubr.bf16.mxu0 0
      %5029 = vmatmul.mubr.bf16.gmra.mxu0 %v4894
      %v5030 = vpop.f32.mrf.mxu0
      %v5031 = vadd.f32 %v2298, %v5030
      %v5032 = vpop.f32.mrf.mxu0
      %v5033 = vpop.f32.mrf.mxu0
      %v5034 = vadd.f32 %v2298, %v5033
      %v5035 = vpop.f32.mrf.mxu0
      %5036 = vmatprep.mubr.bf16.mxu0 0
      %5037 = vmatmul.mubr.bf16.gmra.mxu0 %v4897
      %v5038 = vpop.f32.mrf.mxu0
      %v5039 = vadd.f32 %v2298, %v5038
      %v5040 = vpop.f32.mrf.mxu0
      %v5041 = vpop.f32.mrf.mxu0
      %v5042 = vadd.f32 %v2298, %v5041
      %v5043 = vpop.f32.mrf.mxu0
      %5044 = vmatprep.mubr.bf16.mxu0 0
      %5045 = vmatmul.mubr.bf16.gmra.mxu0 %v4900
      %v5046 = vpop.f32.mrf.mxu0
      %v5047 = vadd.f32 %v2298, %v5046
      %v5048 = vpop.f32.mrf.mxu0
      %v5049 = vpop.f32.mrf.mxu0
      %v5050 = vadd.f32 %v2298, %v5049
      %v5051 = vpop.f32.mrf.mxu0
      %5052 = vmatprep.mubr.bf16.mxu0 0
      %5053 = vmatmul.mubr.bf16.gmra.mxu0 %v4903
      %v5054 = vpop.f32.mrf.mxu0
      %v5055 = vadd.f32 %v2298, %v5054
      %v5056 = vpop.f32.mrf.mxu0
      %v5057 = vpop.f32.mrf.mxu0
      %v5058 = vadd.f32 %v2298, %v5057
      %v5059 = vpop.f32.mrf.mxu0
      %5060 = vmatprep.mubr.bf16.mxu0 0
      %5061 = vmatmul.mubr.bf16.gmra.mxu0 %v4906
      %v5062 = vpop.f32.mrf.mxu0
      %v5063 = vadd.f32 %v2298, %v5062
      %v5064 = vpop.f32.mrf.mxu0
      %v5065 = vpop.f32.mrf.mxu0
      %v5066 = vpop.f32.mrf.mxu0
      %5067 = vdwg.mxu0
      %vm5068 = vcmp.gt.f32.partialorder %v4943, 0.0
      %vm5069 = vcmp.gt.f32.partialorder %v4946, 0.0
      %vm5070 = vcmp.gt.f32.partialorder %v4951, 0.0
      %vm5071 = vcmp.gt.f32.partialorder %v4954, 0.0
      %vm5072 = vcmp.gt.f32.partialorder %v4959, 0.0
      %vm5073 = vcmp.gt.f32.partialorder %v4962, 0.0
      %vm5074 = vcmp.gt.f32.partialorder %v4967, 0.0
      %vm5075 = vcmp.gt.f32.partialorder %v4970, 0.0
      %vm5076 = vcmp.gt.f32.partialorder %v4975, 0.0
      %vm5077 = vcmp.gt.f32.partialorder %v4978, 0.0
      %vm5078 = vcmp.gt.f32.partialorder %v4983, 0.0
      %vm5079 = vcmp.gt.f32.partialorder %v4986, 0.0
      %vm5080 = vcmp.gt.f32.partialorder %v4991, 0.0
      %vm5081 = vcmp.gt.f32.partialorder %v4994, 0.0
      %vm5082 = vcmp.gt.f32.partialorder %v4999, 0.0
      %vm5083 = vcmp.gt.f32.partialorder %v5002, 0.0
      %vm5084 = vcmp.gt.f32.partialorder %v5007, 0.0
      %vm5085 = vcmp.gt.f32.partialorder %v5010, 0.0
      %vm5086 = vcmp.gt.f32.partialorder %v5015, 0.0
      %vm5087 = vcmp.gt.f32.partialorder %v5018, 0.0
      %vm5088 = vcmp.gt.f32.partialorder %v5023, 0.0
      %vm5089 = vcmp.gt.f32.partialorder %v5026, 0.0
      %vm5090 = vcmp.gt.f32.partialorder %v5031, 0.0
      %vm5091 = vcmp.gt.f32.partialorder %v5034, 0.0
      %vm5092 = vcmp.gt.f32.partialorder %v5039, 0.0
      %vm5093 = vcmp.gt.f32.partialorder %v5042, 0.0
      %vm5094 = vcmp.gt.f32.partialorder %v5047, 0.0
      %vm5095 = vcmp.gt.f32.partialorder %v5050, 0.0
      %vm5096 = vcmp.gt.f32.partialorder %v5055, 0.0
      %vm5097 = vcmp.gt.f32.partialorder %v5058, 0.0
      %vm5098 = vcmp.gt.f32.partialorder %v5063, 0.0
      %v5099 = vmul.f32 %v4943, 0.01
      %v5100 = vmul.f32 %v4946, 0.01
      %v5101 = vmul.f32 %v4951, 0.01
      %v5102 = vmul.f32 %v4954, 0.01
      %v5103 = vmul.f32 %v4959, 0.01
      %v5104 = vmul.f32 %v4962, 0.01
      %v5105 = vmul.f32 %v4967, 0.01
      %v5106 = vmul.f32 %v4970, 0.01
      %v5107 = vmul.f32 %v4975, 0.01
      %v5108 = vmul.f32 %v4978, 0.01
      %v5109 = vmul.f32 %v4983, 0.01
      %v5110 = vmul.f32 %v4986, 0.01
      %v5111 = vmul.f32 %v4991, 0.01
      %v5112 = vmul.f32 %v4994, 0.01
      %v5113 = vmul.f32 %v4999, 0.01
      %v5114 = vmul.f32 %v5002, 0.01
      %v5115 = vmul.f32 %v5007, 0.01
      %v5116 = vmul.f32 %v5010, 0.01
      %v5117 = vmul.f32 %v5015, 0.01
      %v5118 = vmul.f32 %v5018, 0.01
      %v5119 = vmul.f32 %v5023, 0.01
      %v5120 = vmul.f32 %v5026, 0.01
      %v5121 = vmul.f32 %v5031, 0.01
      %v5122 = vmul.f32 %v5034, 0.01
      %v5123 = vmul.f32 %v5039, 0.01
      %v5124 = vmul.f32 %v5042, 0.01
      %v5125 = vmul.f32 %v5047, 0.01
      %v5126 = vmul.f32 %v5050, 0.01
      %v5127 = vmul.f32 %v5055, 0.01
      %v5128 = vmul.f32 %v5058, 0.01
      %v5129 = vmul.f32 %v5063, 0.01
      %v5130 = vsel %vm5068, %v4943, %v5099
      %v5131 = vsel %vm5069, %v4946, %v5100
      %v5132 = vsel %vm5070, %v4951, %v5101
      %v5133 = vsel %vm5071, %v4954, %v5102
      %v5134 = vsel %vm5072, %v4959, %v5103
      %v5135 = vsel %vm5073, %v4962, %v5104
      %v5136 = vsel %vm5074, %v4967, %v5105
      %v5137 = vsel %vm5075, %v4970, %v5106
      %v5138 = vsel %vm5076, %v4975, %v5107
      %v5139 = vsel %vm5077, %v4978, %v5108
      %v5140 = vsel %vm5078, %v4983, %v5109
      %v5141 = vsel %vm5079, %v4986, %v5110
      %v5142 = vsel %vm5080, %v4991, %v5111
      %v5143 = vsel %vm5081, %v4994, %v5112
      %v5144 = vsel %vm5082, %v4999, %v5113
      %v5145 = vsel %vm5083, %v5002, %v5114
      %v5146 = vsel %vm5084, %v5007, %v5115
      %v5147 = vsel %vm5085, %v5010, %v5116
      %v5148 = vsel %vm5086, %v5015, %v5117
      %v5149 = vsel %vm5087, %v5018, %v5118
      %v5150 = vsel %vm5088, %v5023, %v5119
      %v5151 = vsel %vm5089, %v5026, %v5120
      %v5152 = vsel %vm5090, %v5031, %v5121
      %v5153 = vsel %vm5091, %v5034, %v5122
      %v5154 = vsel %vm5092, %v5039, %v5123
      %v5155 = vsel %vm5093, %v5042, %v5124
      %v5156 = vsel %vm5094, %v5047, %v5125
      %v5157 = vsel %vm5095, %v5050, %v5126
      %v5158 = vsel %vm5096, %v5055, %v5127
      %v5159 = vsel %vm5097, %v5058, %v5128
      %v5160 = vsel %vm5098, %v5063, %v5129
      %v5161 = vpack.c.bf16 %v5131, %v5130
      %v5162 = vpack.c.bf16 %v5133, %v5132
      %v5163 = vpack.c.bf16 %v5135, %v5134
      %v5164 = vpack.c.bf16 %v5137, %v5136
      %v5165 = vpack.c.bf16 %v5139, %v5138
      %v5166 = vpack.c.bf16 %v5141, %v5140
      %v5167 = vpack.c.bf16 %v5143, %v5142
      %v5168 = vpack.c.bf16 %v5145, %v5144
      %v5169 = vpack.c.bf16 %v5147, %v5146
      %v5170 = vpack.c.bf16 %v5149, %v5148
      %v5171 = vpack.c.bf16 %v5151, %v5150
      %v5172 = vpack.c.bf16 %v5153, %v5152
      %v5173 = vpack.c.bf16 %v5155, %v5154
      %v5174 = vpack.c.bf16 %v5157, %v5156
      %v5175 = vpack.c.bf16 %v5159, %v5158
      %v5176 = vpack.c.bf16 %v5160, %v5160
      %v5177 = vld [vmem:[%s13] sm:$0xf]
      %v5178 = vld [vmem:[%s13 + $0x4] sm:$0xf]
      %v5181 = vunpack.c.l.b16 %v5177
      %v5182 = vunpack.c.l.b16 %v5178
      %v5183 = vpack.c.b16 %v5182, %v5181
      %v5186 = vsel %vm2647, %v5161, 0
      %v5189 = vsel %vm2647, %v5162, 0
      %v5192 = vsel %vm2647, %v5163, 0
      %v5195 = vsel %vm2647, %v5164, 0
      %v5198 = vsel %vm2647, %v5165, 0
      %v5201 = vsel %vm2647, %v5166, 0
      %v5204 = vsel %vm2647, %v5167, 0
      %v5207 = vsel %vm2647, %v5168, 0
      %v5210 = vsel %vm2647, %v5169, 0
      %v5213 = vsel %vm2647, %v5170, 0
      %v5216 = vsel %vm2647, %v5171, 0
      %v5219 = vsel %vm2647, %v5172, 0
      %v5222 = vsel %vm2647, %v5173, 0
      %v5225 = vsel %vm2647, %v5174, 0
      %v5228 = vsel %vm2647, %v5175, 0
      %v5231 = vsel %vm2647, %v5176, 0
      %5233 = vmatprep.subr.bf16.mxu0 0
      %5234 = vmatpush1.bf16.msra.mxu0 0
      %5235 = vmatprep.subr.bf16.mxu0 0
      %5236 = vmatpush1.bf16.msra.mxu0 0
      %5237 = vmatprep.subr.bf16.mxu0 0
      %5238 = vmatpush1.bf16.msra.mxu0 0
      %5239 = vmatprep.subr.bf16.mxu0 0
      %5240 = vmatpush1.bf16.msra.mxu0 0
      %5241 = vmatprep.subr.bf16.mxu0 0
      %5242 = vmatpush1.bf16.msra.mxu0 0
      %5243 = vmatprep.subr.bf16.mxu0 0
      %5244 = vmatpush1.bf16.msra.mxu0 0
      %5245 = vmatprep.subr.bf16.mxu0 0
      %5246 = vmatpush1.bf16.msra.mxu0 0
      %5247 = vmatprep.subr.bf16.mxu0 0
      %5248 = vmatpush1.bf16.msra.mxu0 %v5183
      %5249 = vmatprep.subr.bf16.mxu0 0
      %5250 = vmatpush2.bf16.msra.mxu0 0
      %5251 = vmatprep.subr.bf16.mxu0 0
      %5252 = vmatpush2.bf16.msra.mxu0 0
      %5253 = vmatprep.subr.bf16.mxu0 0
      %5254 = vmatpush2.bf16.msra.mxu0 0
      %5255 = vmatprep.subr.bf16.mxu0 0
      %5256 = vmatpush2.bf16.msra.mxu0 0
      %5257 = vmatprep.subr.bf16.mxu0 0
      %5258 = vmatpush2.bf16.msra.mxu0 0
      %5259 = vmatprep.subr.bf16.mxu0 0
      %5260 = vmatpush2.bf16.msra.mxu0 0
      %5261 = vmatprep.subr.bf16.mxu0 0
      %5262 = vmatpush2.bf16.msra.mxu0 0
      %5263 = vmatprep.subr.bf16.mxu0 0
      %5264 = vmatpush2.bf16.msra.mxu0 0
      %5265 = vmatprep.mubr.bf16.mxu0 0
      %5266 = vmatmul.mubr.bf16.gmra.mxu0 %v5186
      %v5267 = vpop.f32.mrf.mxu0
      %v5268 = vadd.f32 %v2639, %v5267
      %v5269 = vpop.f32.mrf.mxu0
      %v5270 = vpop.f32.mrf.mxu0
      %v5271 = vadd.f32 %v2639, %v5270
      %v5272 = vpop.f32.mrf.mxu0
      %5273 = vmatprep.mubr.bf16.mxu0 0
      %5274 = vmatmul.mubr.bf16.gmra.mxu0 %v5189
      %v5275 = vpop.f32.mrf.mxu0
      %v5276 = vadd.f32 %v2639, %v5275
      %v5277 = vpop.f32.mrf.mxu0
      %v5278 = vpop.f32.mrf.mxu0
      %v5279 = vadd.f32 %v2639, %v5278
      %v5280 = vpop.f32.mrf.mxu0
      %5281 = vmatprep.mubr.bf16.mxu0 0
      %5282 = vmatmul.mubr.bf16.gmra.mxu0 %v5192
      %v5283 = vpop.f32.mrf.mxu0
      %v5284 = vadd.f32 %v2639, %v5283
      %v5285 = vpop.f32.mrf.mxu0
      %v5286 = vpop.f32.mrf.mxu0
      %v5287 = vadd.f32 %v2639, %v5286
      %v5288 = vpop.f32.mrf.mxu0
      %5289 = vmatprep.mubr.bf16.mxu0 0
      %5290 = vmatmul.mubr.bf16.gmra.mxu0 %v5195
      %v5291 = vpop.f32.mrf.mxu0
      %v5292 = vadd.f32 %v2639, %v5291
      %v5293 = vpop.f32.mrf.mxu0
      %v5294 = vpop.f32.mrf.mxu0
      %v5295 = vadd.f32 %v2639, %v5294
      %v5296 = vpop.f32.mrf.mxu0
      %5297 = vmatprep.mubr.bf16.mxu0 0
      %5298 = vmatmul.mubr.bf16.gmra.mxu0 %v5198
      %v5299 = vpop.f32.mrf.mxu0
      %v5300 = vadd.f32 %v2639, %v5299
      %v5301 = vpop.f32.mrf.mxu0
      %v5302 = vpop.f32.mrf.mxu0
      %v5303 = vadd.f32 %v2639, %v5302
      %v5304 = vpop.f32.mrf.mxu0
      %5305 = vmatprep.mubr.bf16.mxu0 0
      %5306 = vmatmul.mubr.bf16.gmra.mxu0 %v5201
      %v5307 = vpop.f32.mrf.mxu0
      %v5308 = vadd.f32 %v2639, %v5307
      %v5309 = vpop.f32.mrf.mxu0
      %v5310 = vpop.f32.mrf.mxu0
      %v5311 = vadd.f32 %v2639, %v5310
      %v5312 = vpop.f32.mrf.mxu0
      %5313 = vmatprep.mubr.bf16.mxu0 0
      %5314 = vmatmul.mubr.bf16.gmra.mxu0 %v5204
      %v5315 = vpop.f32.mrf.mxu0
      %v5316 = vadd.f32 %v2639, %v5315
      %v5317 = vpop.f32.mrf.mxu0
      %v5318 = vpop.f32.mrf.mxu0
      %v5319 = vadd.f32 %v2639, %v5318
      %v5320 = vpop.f32.mrf.mxu0
      %5321 = vmatprep.mubr.bf16.mxu0 0
      %5322 = vmatmul.mubr.bf16.gmra.mxu0 %v5207
      %v5323 = vpop.f32.mrf.mxu0
      %v5324 = vadd.f32 %v2639, %v5323
      %v5325 = vpop.f32.mrf.mxu0
      %v5326 = vpop.f32.mrf.mxu0
      %v5327 = vadd.f32 %v2639, %v5326
      %v5328 = vpop.f32.mrf.mxu0
      %5329 = vmatprep.mubr.bf16.mxu0 0
      %5330 = vmatmul.mubr.bf16.gmra.mxu0 %v5210
      %v5331 = vpop.f32.mrf.mxu0
      %v5332 = vadd.f32 %v2639, %v5331
      %v5333 = vpop.f32.mrf.mxu0
      %v5334 = vpop.f32.mrf.mxu0
      %v5335 = vadd.f32 %v2639, %v5334
      %v5336 = vpop.f32.mrf.mxu0
      %5337 = vmatprep.mubr.bf16.mxu0 0
      %5338 = vmatmul.mubr.bf16.gmra.mxu0 %v5213
      %v5339 = vpop.f32.mrf.mxu0
      %v5340 = vadd.f32 %v2639, %v5339
      %v5341 = vpop.f32.mrf.mxu0
      %v5342 = vpop.f32.mrf.mxu0
      %v5343 = vadd.f32 %v2639, %v5342
      %v5344 = vpop.f32.mrf.mxu0
      %5345 = vmatprep.mubr.bf16.mxu0 0
      %5346 = vmatmul.mubr.bf16.gmra.mxu0 %v5216
      %v5347 = vpop.f32.mrf.mxu0
      %v5348 = vadd.f32 %v2639, %v5347
      %v5349 = vpop.f32.mrf.mxu0
      %v5350 = vpop.f32.mrf.mxu0
      %v5351 = vadd.f32 %v2639, %v5350
      %v5352 = vpop.f32.mrf.mxu0
      %5353 = vmatprep.mubr.bf16.mxu0 0
      %5354 = vmatmul.mubr.bf16.gmra.mxu0 %v5219
      %v5355 = vpop.f32.mrf.mxu0
      %v5356 = vadd.f32 %v2639, %v5355
      %v5357 = vpop.f32.mrf.mxu0
      %v5358 = vpop.f32.mrf.mxu0
      %v5359 = vadd.f32 %v2639, %v5358
      %v5360 = vpop.f32.mrf.mxu0
      %5361 = vmatprep.mubr.bf16.mxu0 0
      %5362 = vmatmul.mubr.bf16.gmra.mxu0 %v5222
      %v5363 = vpop.f32.mrf.mxu0
      %v5364 = vadd.f32 %v2639, %v5363
      %v5365 = vpop.f32.mrf.mxu0
      %v5366 = vpop.f32.mrf.mxu0
      %v5367 = vadd.f32 %v2639, %v5366
      %v5368 = vpop.f32.mrf.mxu0
      %5369 = vmatprep.mubr.bf16.mxu0 0
      %5370 = vmatmul.mubr.bf16.gmra.mxu0 %v5225
      %v5371 = vpop.f32.mrf.mxu0
      %v5372 = vadd.f32 %v2639, %v5371
      %v5373 = vpop.f32.mrf.mxu0
      %v5374 = vpop.f32.mrf.mxu0
      %v5375 = vadd.f32 %v2639, %v5374
      %v5376 = vpop.f32.mrf.mxu0
      %5377 = vmatprep.mubr.bf16.mxu0 0
      %5378 = vmatmul.mubr.bf16.gmra.mxu0 %v5228
      %v5379 = vpop.f32.mrf.mxu0
      %v5380 = vadd.f32 %v2639, %v5379
      %v5381 = vpop.f32.mrf.mxu0
      %v5382 = vpop.f32.mrf.mxu0
      %v5383 = vadd.f32 %v2639, %v5382
      %v5384 = vpop.f32.mrf.mxu0
      %5385 = vmatprep.mubr.bf16.mxu0 0
      %5386 = vmatmul.mubr.bf16.gmra.mxu0 %v5231
      %v5387 = vpop.f32.mrf.mxu0
      %v5388 = vadd.f32 %v2639, %v5387
      %v5389 = vpop.f32.mrf.mxu0
      %v5390 = vpop.f32.mrf.mxu0
      %v5391 = vpop.f32.mrf.mxu0
      %5392 = vdwg.mxu0
      %v5393 = vxor.u32 %v5268, 2147483648
      %v5394 = vxor.u32 %v5271, 2147483648
      %v5395 = vxor.u32 %v5276, 2147483648
      %v5396 = vxor.u32 %v5279, 2147483648
      %v5397 = vxor.u32 %v5284, 2147483648
      %v5398 = vxor.u32 %v5287, 2147483648
      %v5399 = vxor.u32 %v5292, 2147483648
      %v5400 = vxor.u32 %v5295, 2147483648
      %v5401 = vxor.u32 %v5300, 2147483648
      %v5402 = vxor.u32 %v5303, 2147483648
      %v5403 = vxor.u32 %v5308, 2147483648
      %v5404 = vxor.u32 %v5311, 2147483648
      %v5405 = vxor.u32 %v5316, 2147483648
      %v5406 = vxor.u32 %v5319, 2147483648
      %v5407 = vxor.u32 %v5324, 2147483648
      %v5408 = vxor.u32 %v5327, 2147483648
      %v5409 = vxor.u32 %v5332, 2147483648
      %v5410 = vxor.u32 %v5335, 2147483648
      %v5411 = vxor.u32 %v5340, 2147483648
      %v5412 = vxor.u32 %v5343, 2147483648
      %v5413 = vxor.u32 %v5348, 2147483648
      %v5414 = vxor.u32 %v5351, 2147483648
      %v5415 = vxor.u32 %v5356, 2147483648
      %v5416 = vxor.u32 %v5359, 2147483648
      %v5417 = vxor.u32 %v5364, 2147483648
      %v5418 = vxor.u32 %v5367, 2147483648
      %v5419 = vxor.u32 %v5372, 2147483648
      %v5420 = vxor.u32 %v5375, 2147483648
      %v5421 = vxor.u32 %v5380, 2147483648
      %v5422 = vxor.u32 %v5383, 2147483648
      %v5423 = vxor.u32 %v5388, 2147483648
      %v5424 = vmul.f32 %v5393, 1.442695
      %v5425 = vpow.pop %v5424
      %v5426 = vmul.f32 %v5394, 1.442695
      %v5427 = vpow.pop %v5426
      %v5428 = vmul.f32 %v5395, 1.442695
      %v5429 = vpow.pop %v5428
      %v5430 = vmul.f32 %v5396, 1.442695
      %v5431 = vpow.pop %v5430
      %v5432 = vmul.f32 %v5397, 1.442695
      %v5433 = vpow.pop %v5432
      %v5434 = vmul.f32 %v5398, 1.442695
      %v5435 = vpow.pop %v5434
      %v5436 = vmul.f32 %v5399, 1.442695
      %v5437 = vpow.pop %v5436
      %v5438 = vmul.f32 %v5400, 1.442695
      %v5439 = vpow.pop %v5438
      %v5440 = vmul.f32 %v5401, 1.442695
      %v5441 = vpow.pop %v5440
      %v5442 = vmul.f32 %v5402, 1.442695
      %v5443 = vpow.pop %v5442
      %v5444 = vmul.f32 %v5403, 1.442695
      %v5445 = vpow.pop %v5444
      %v5446 = vmul.f32 %v5404, 1.442695
      %v5447 = vpow.pop %v5446
      %v5448 = vmul.f32 %v5405, 1.442695
      %v5449 = vpow.pop %v5448
      %v5450 = vmul.f32 %v5406, 1.442695
      %v5451 = vpow.pop %v5450
      %v5452 = vmul.f32 %v5407, 1.442695
      %v5453 = vpow.pop %v5452
      %v5454 = vmul.f32 %v5408, 1.442695
      %v5455 = vpow.pop %v5454
      %v5456 = vmul.f32 %v5409, 1.442695
      %v5457 = vpow.pop %v5456
      %v5458 = vmul.f32 %v5410, 1.442695
      %v5459 = vpow.pop %v5458
      %v5460 = vmul.f32 %v5411, 1.442695
      %v5461 = vpow.pop %v5460
      %v5462 = vmul.f32 %v5412, 1.442695
      %v5463 = vpow.pop %v5462
      %v5464 = vmul.f32 %v5413, 1.442695
      %v5465 = vpow.pop %v5464
      %v5466 = vmul.f32 %v5414, 1.442695
      %v5467 = vpow.pop %v5466
      %v5468 = vmul.f32 %v5415, 1.442695
      %v5469 = vpow.pop %v5468
      %v5470 = vmul.f32 %v5416, 1.442695
      %v5471 = vpow.pop %v5470
      %v5472 = vmul.f32 %v5417, 1.442695
      %v5473 = vpow.pop %v5472
      %v5474 = vmul.f32 %v5418, 1.442695
      %v5475 = vpow.pop %v5474
      %v5476 = vmul.f32 %v5419, 1.442695
      %v5477 = vpow.pop %v5476
      %v5478 = vmul.f32 %v5420, 1.442695
      %v5479 = vpow.pop %v5478
      %v5480 = vmul.f32 %v5421, 1.442695
      %v5481 = vpow.pop %v5480
      %v5482 = vmul.f32 %v5422, 1.442695
      %v5483 = vpow.pop %v5482
      %v5484 = vmul.f32 %v5423, 1.442695
      %v5485 = vpow.pop %v5484
      %v5486 = vadd.f32 %v5425, 1.0
      %v5487 = vadd.f32 %v5427, 1.0
      %v5488 = vadd.f32 %v5429, 1.0
      %v5489 = vadd.f32 %v5431, 1.0
      %v5490 = vadd.f32 %v5433, 1.0
      %v5491 = vadd.f32 %v5435, 1.0
      %v5492 = vadd.f32 %v5437, 1.0
      %v5493 = vadd.f32 %v5439, 1.0
      %v5494 = vadd.f32 %v5441, 1.0
      %v5495 = vadd.f32 %v5443, 1.0
      %v5496 = vadd.f32 %v5445, 1.0
      %v5497 = vadd.f32 %v5447, 1.0
      %v5498 = vadd.f32 %v5449, 1.0
      %v5499 = vadd.f32 %v5451, 1.0
      %v5500 = vadd.f32 %v5453, 1.0
      %v5501 = vadd.f32 %v5455, 1.0
      %v5502 = vadd.f32 %v5457, 1.0
      %v5503 = vadd.f32 %v5459, 1.0
      %v5504 = vadd.f32 %v5461, 1.0
      %v5505 = vadd.f32 %v5463, 1.0
      %v5506 = vadd.f32 %v5465, 1.0
      %v5507 = vadd.f32 %v5467, 1.0
      %v5508 = vadd.f32 %v5469, 1.0
      %v5509 = vadd.f32 %v5471, 1.0
      %v5510 = vadd.f32 %v5473, 1.0
      %v5511 = vadd.f32 %v5475, 1.0
      %v5512 = vadd.f32 %v5477, 1.0
      %v5513 = vadd.f32 %v5479, 1.0
      %v5514 = vadd.f32 %v5481, 1.0
      %v5515 = vadd.f32 %v5483, 1.0
      %v5516 = vadd.f32 %v5485, 1.0
      %v5517 = vrcp.pop %v5486
      %v5518 = vmul.f32 1.0, %v5517
      %v5519 = vrcp.pop %v5487
      %v5520 = vmul.f32 1.0, %v5519
      %v5521 = vrcp.pop %v5488
      %v5522 = vmul.f32 1.0, %v5521
      %v5523 = vrcp.pop %v5489
      %v5524 = vmul.f32 1.0, %v5523
      %v5525 = vrcp.pop %v5490
      %v5526 = vmul.f32 1.0, %v5525
      %v5527 = vrcp.pop %v5491
      %v5528 = vmul.f32 1.0, %v5527
      %v5529 = vrcp.pop %v5492
      %v5530 = vmul.f32 1.0, %v5529
      %v5531 = vrcp.pop %v5493
      %v5532 = vmul.f32 1.0, %v5531
      %v5533 = vrcp.pop %v5494
      %v5534 = vmul.f32 1.0, %v5533
      %v5535 = vrcp.pop %v5495
      %v5536 = vmul.f32 1.0, %v5535
      %v5537 = vrcp.pop %v5496
      %v5538 = vmul.f32 1.0, %v5537
      %v5539 = vrcp.pop %v5497
      %v5540 = vmul.f32 1.0, %v5539
      %v5541 = vrcp.pop %v5498
      %v5542 = vmul.f32 1.0, %v5541
      %v5543 = vrcp.pop %v5499
      %v5544 = vmul.f32 1.0, %v5543
      %v5545 = vrcp.pop %v5500
      %v5546 = vmul.f32 1.0, %v5545
      %v5547 = vrcp.pop %v5501
      %v5548 = vmul.f32 1.0, %v5547
      %v5549 = vrcp.pop %v5502
      %v5550 = vmul.f32 1.0, %v5549
      %v5551 = vrcp.pop %v5503
      %v5552 = vmul.f32 1.0, %v5551
      %v5553 = vrcp.pop %v5504
      %v5554 = vmul.f32 1.0, %v5553
      %v5555 = vrcp.pop %v5505
      %v5556 = vmul.f32 1.0, %v5555
      %v5557 = vrcp.pop %v5506
      %v5558 = vmul.f32 1.0, %v5557
      %v5559 = vrcp.pop %v5507
      %v5560 = vmul.f32 1.0, %v5559
      %v5561 = vrcp.pop %v5508
      %v5562 = vmul.f32 1.0, %v5561
      %v5563 = vrcp.pop %v5509
      %v5564 = vmul.f32 1.0, %v5563
      %v5565 = vrcp.pop %v5510
      %v5566 = vmul.f32 1.0, %v5565
      %v5567 = vrcp.pop %v5511
      %v5568 = vmul.f32 1.0, %v5567
      %v5569 = vrcp.pop %v5512
      %v5570 = vmul.f32 1.0, %v5569
      %v5571 = vrcp.pop %v5513
      %v5572 = vmul.f32 1.0, %v5571
      %v5573 = vrcp.pop %v5514
      %v5574 = vmul.f32 1.0, %v5573
      %v5575 = vrcp.pop %v5515
      %v5576 = vmul.f32 1.0, %v5575
      %v5577 = vrcp.pop %v5516
      %v5578 = vmul.f32 1.0, %v5577
      %v5579 = vsel %vm3050, %v5518, %v5268
      %v5580 = vsel %vm3050, %v5520, %v5271
      %v5581 = vsel %vm3050, %v5522, %v5276
      %v5582 = vsel %vm3050, %v5524, %v5279
      %v5583 = vsel %vm3050, %v5526, %v5284
      %v5584 = vsel %vm3050, %v5528, %v5287
      %v5585 = vsel %vm3050, %v5530, %v5292
      %v5586 = vsel %vm3050, %v5532, %v5295
      %v5587 = vsel %vm3050, %v5534, %v5300
      %v5588 = vsel %vm3050, %v5536, %v5303
      %v5589 = vsel %vm3050, %v5538, %v5308
      %v5590 = vsel %vm3050, %v5540, %v5311
      %v5591 = vsel %vm3050, %v5542, %v5316
      %v5592 = vsel %vm3050, %v5544, %v5319
      %v5593 = vsel %vm3050, %v5546, %v5324
      %v5594 = vsel %vm3050, %v5548, %v5327
      %v5595 = vsel %vm3050, %v5550, %v5332
      %v5596 = vsel %vm3050, %v5552, %v5335
      %v5597 = vsel %vm3050, %v5554, %v5340
      %v5598 = vsel %vm3050, %v5556, %v5343
      %v5599 = vsel %vm3050, %v5558, %v5348
      %v5600 = vsel %vm3050, %v5560, %v5351
      %v5601 = vsel %vm3050, %v5562, %v5356
      %v5602 = vsel %vm3050, %v5564, %v5359
      %v5603 = vsel %vm3050, %v5566, %v5364
      %v5604 = vsel %vm3050, %v5568, %v5367
      %v5605 = vsel %vm3050, %v5570, %v5372
      %v5606 = vsel %vm3050, %v5572, %v5375
      %v5607 = vsel %vm3050, %v5574, %v5380
      %v5608 = vsel %vm3050, %v5576, %v5383
      %v5609 = vsel %vm3050, %v5578, %v5388
      %5610 = vst.msk [vmem:[%s496 + $0x100] sm:$0xff] %vm3083, %v5579
      %5611 = vst.msk [vmem:[%s496 + $0x108] sm:$0xff] %vm3083, %v5580
      %5612 = vst.msk [vmem:[%s496 + $0x110] sm:$0xff] %vm3083, %v5581
      %5613 = vst.msk [vmem:[%s496 + $0x118] sm:$0xff] %vm3083, %v5582
      %5614 = vst.msk [vmem:[%s496 + $0x120] sm:$0xff] %vm3083, %v5583
      %5615 = vst.msk [vmem:[%s496 + $0x128] sm:$0xff] %vm3083, %v5584
      %5616 = vst.msk [vmem:[%s496 + $0x130] sm:$0xff] %vm3083, %v5585
      %5617 = vst.msk [vmem:[%s496 + $0x138] sm:$0xff] %vm3083, %v5586
      %5618 = vst.msk [vmem:[%s496 + $0x140] sm:$0xff] %vm3083, %v5587
      %5619 = vst.msk [vmem:[%s496 + $0x148] sm:$0xff] %vm3083, %v5588
      %5620 = vst.msk [vmem:[%s496 + $0x150] sm:$0xff] %vm3083, %v5589
      %5621 = vst.msk [vmem:[%s496 + $0x158] sm:$0xff] %vm3083, %v5590
      %5622 = vst.msk [vmem:[%s496 + $0x160] sm:$0xff] %vm3083, %v5591
      %5623 = vst.msk [vmem:[%s496 + $0x168] sm:$0xff] %vm3083, %v5592
      %5624 = vst.msk [vmem:[%s496 + $0x170] sm:$0xff] %vm3083, %v5593
      %5625 = vst.msk [vmem:[%s496 + $0x178] sm:$0xff] %vm3083, %v5594
      %5626 = vst.msk [vmem:[%s496 + $0x180] sm:$0xff] %vm3083, %v5595
      %5627 = vst.msk [vmem:[%s496 + $0x188] sm:$0xff] %vm3083, %v5596
      %5628 = vst.msk [vmem:[%s496 + $0x190] sm:$0xff] %vm3083, %v5597
      %5629 = vst.msk [vmem:[%s496 + $0x198] sm:$0xff] %vm3083, %v5598
      %5630 = vst.msk [vmem:[%s496 + $0x1a0] sm:$0xff] %vm3083, %v5599
      %5631 = vst.msk [vmem:[%s496 + $0x1a8] sm:$0xff] %vm3083, %v5600
      %5632 = vst.msk [vmem:[%s496 + $0x1b0] sm:$0xff] %vm3083, %v5601
      %5633 = vst.msk [vmem:[%s496 + $0x1b8] sm:$0xff] %vm3083, %v5602
      %5634 = vst.msk [vmem:[%s496 + $0x1c0] sm:$0xff] %vm3083, %v5603
      %5635 = vst.msk [vmem:[%s496 + $0x1c8] sm:$0xff] %vm3083, %v5604
      %5636 = vst.msk [vmem:[%s496 + $0x1d0] sm:$0xff] %vm3083, %v5605
      %5637 = vst.msk [vmem:[%s496 + $0x1d8] sm:$0xff] %vm3083, %v5606
      %5638 = vst.msk [vmem:[%s496 + $0x1e0] sm:$0xff] %vm3083, %v5607
      %5639 = vst.msk [vmem:[%s496 + $0x1e8] sm:$0xff] %vm3083, %v5608
      %5640 = vst.msk [vmem:[%s496 + $0x1f0] sm:$0xff] %vm3083, %v5609
      %s5641 = smul.u32 63, %s26
      %p5642 = scmp.lt.s32.totalorder %s5641, 125
      %s5643 = scalar_select %p5642, %s5641, 125
      %s5644 = smul.addr %s5643, 8
      %s5645 = scalar_lea.vmem %s15, %s5644
      // Predicated region
      $region81: #{tpu_custom_call.1} parent=79 // pred_check
        %p5646 = pneg %p364
      $region82: #{tpu_custom_call.1} parent=79 // pred_check_branch
        %5648 = sbr.rel (%p5646) target = $region84
      $region83: #{tpu_custom_call.1} parent=79 // pred_region
        %s5649 = smul.u32 63, %s26
      $region84: #{tpu_custom_call.1} parent=79 // pred_fallthru
        _
    $region80: #{tpu_custom_call.1} parent=5 // pred_fallthru
      _
    %p5650 = scmp.le.s32.totalorder 2, %s21
    // Predicated region
    $region85: #{tpu_custom_call.1} parent=5 // pred_check
      %p5651 = pneg %p5650
    $region86: #{tpu_custom_call.1} parent=5 // pred_check_branch
      %5653 = sbr.rel (%p5651) target = $region88
    $region87: #{tpu_custom_call.1} parent=5 // pred_region
      %s5654 = ssub.s32 %s21, 2
      // Predicated region
      $region89: #{tpu_custom_call.1} parent=87 // pred_check
        %p5655 = pneg %p370
      $region90: #{tpu_custom_call.1} parent=87 // pred_check_branch
        %5657 = sbr.rel (%p5655) target = $region92
      $region91: #{tpu_custom_call.1} parent=87 // pred_region
        %s5658 = smul.u32 63, %s27
        %p5659 = scmp.lt.s32.totalorder %s5658, 125
        %s5660 = scalar_select %p5659, %s5658, 125
        %s5661 = smul.addr %s5660, 8
        %s5662 = scalar_lea.vmem %s15, %s5661
      $region92: #{tpu_custom_call.1} parent=87 // pred_fallthru
        _
    $region88: #{tpu_custom_call.1} parent=5 // pred_fallthru
      _
  $region6: #{tpu_custom_call.1} parent=0 // loop_footer
    %s25 = sadd.s32 1, %s21
  $region7: #{tpu_custom_call.1} parent=0 // loop_footer_branch
    %20 = sbr.rel target = $region3
  $region8: #{tpu_custom_call.1} parent=0 // loop_exit
    _

</llo_original>
